<compile_context>
chip_gen: v5e
topology: v5e:2x2
jax: 0.10.0
libtpu: 0.0.40
codegen_flags: <defaults>
</compile_context>

<pallas_src>
import jax
import jax.numpy as jnp
from jax import lax
from jax.experimental import pallas as pl
from jax.experimental.pallas import tpu as pltpu

LANE = 128     # lane width / MXU-friendly padding
SUBLANE = 8    # f32 sublane count


def _round_up(x, m):
    return (x + m - 1) // m * m


# ---------------------------------------------------------------------------
# Kernel A: masked GRU recurrence over time -> final hidden state (Bp, Hp).
# ---------------------------------------------------------------------------
def gru_recurrence_kernel(max_len_ref,   # SMEM (1,) int32   (scalar prefetch)
                          len_ref,       # VMEM (BT, 1) int32
                          emb_ref,       # VMEM (T, BT, Hp) f32
                          wih_ref,       # VMEM (Hp, 3Hp) bf16
                          bih_ref,       # VMEM (1, 3Hp) f32
                          whh_ref,       # VMEM (Hp, 3Hp) bf16
                          bhh_ref,       # VMEM (1, 3Hp) f32
                          h_ref,         # VMEM out (BT, Hp) f32 (also the state)
                          gi_scratch):   # VMEM (T, BT, 3Hp) f32
    T, BT, Hp = emb_ref.shape
    G = 3 * Hp

    # ---- Hoisted input projection: one big MXU matmul for all timesteps ----
    x_all = emb_ref[...].reshape(T * BT, Hp).astype(whh_ref.dtype)
    gi_all = (jnp.dot(x_all, wih_ref[...], preferred_element_type=jnp.float32)
              + bih_ref[...])
    gi_scratch[...] = gi_all.reshape(T, BT, G)

    # ---- Hoisted loop invariants -------------------------------------------
    bhh = jnp.broadcast_to(bhh_ref[...], (BT, G))     # (BT, 3Hp) f32
    lens = len_ref[...]                               # (BT, 1) int32
    max_len = max_len_ref[0]

    h_ref[...] = jnp.zeros_like(h_ref)

    def step(t, carry):
        # Skip steps past the longest valid sequence in the batch.
        @pl.when(t < max_len)
        def _():
            h_prev = h_ref[...]                       # (BT, Hp) f32
            gi = gi_scratch[t]                        # (BT, 3Hp) f32
            gh = jnp.dot(h_prev.astype(whh_ref.dtype), whh_ref[...],
                         preferred_element_type=jnp.float32) + bhh

            # Gate slices are lane-aligned (Hp = 128): free views.
            i_r, i_z, i_n = gi[:, 0:Hp], gi[:, Hp:2 * Hp], gi[:, 2 * Hp:3 * Hp]
            h_r, h_z, h_n = gh[:, 0:Hp], gh[:, Hp:2 * Hp], gh[:, 2 * Hp:3 * Hp]

            r = jax.nn.sigmoid(i_r + h_r)
            z = jax.nn.sigmoid(i_z + h_z)
            n = jnp.tanh(i_n + r * h_n)
            h_new = (1.0 - z) * n + z * h_prev

            # pack_padded_sequence semantics: freeze h once t >= len.
            mask = lens > t                           # (BT, 1) bool
            h_ref[...] = jnp.where(mask, h_new, h_prev)
        return carry

    lax.fori_loop(0, T, step, 0, unroll=True)


# ---------------------------------------------------------------------------
# Kernel B: s_fc linear layer, gridded & pipelined over item_num tiles.
# ---------------------------------------------------------------------------
def fc_kernel(h_ref, w_ref, b_ref, o_ref):
    o_ref[...] = (jnp.dot(h_ref[...].astype(w_ref.dtype), w_ref[...],
                          preferred_element_type=jnp.float32)
                  + b_ref[...])


# ---------------------------------------------------------------------------
# Wrapper: embedding gather, padding / layout, two pallas_calls.
# ---------------------------------------------------------------------------
def gru_forward(states, len_states, params, *, item_tile=LANE):
    emb_table = params["emb"]                      # (item_num + 1, H)
    w_ih, b_ih = params["w_ih"], params["b_ih"]    # (H, 3H), (1, 3H)
    w_hh, b_hh = params["w_hh"], params["b_hh"]    # (H, 3H), (1, 3H)
    w_fc, b_fc = params["w_fc"], params["b_fc"]    # (H, item_num), (1, item_num)

    B, T = states.shape
    H = emb_table.shape[1]
    item_num = w_fc.shape[1]

    Hp = _round_up(H, LANE)
    Bp = _round_up(B, SUBLANE)
    Np = _round_up(item_num, item_tile)
    BT = Bp                                        # one batch tile at this size

    # --- embedding gather (JAX glue) + padding / layout ---------------------
    emb = jnp.take(emb_table, states, axis=0)                      # (B, T, H)
    emb = jnp.pad(emb, ((0, Bp - B), (0, 0), (0, Hp - H)))
    emb = jnp.transpose(emb, (1, 0, 2)).astype(jnp.float32)        # (T, Bp, Hp)

    lens = jnp.pad(len_states.astype(jnp.int32), (0, Bp - B)).reshape(Bp, 1)
    max_len = jnp.max(len_states).astype(jnp.int32).reshape(1)

    # Pad per gate (r, z, n) so each gate block is Hp(=128)-lane aligned.
    def pad_gates(w, rows):
        w3 = w.reshape(w.shape[0], 3, H)
        w3 = jnp.pad(w3, ((0, rows - w.shape[0]), (0, 0), (0, Hp - H)))
        return w3.reshape(rows, 3 * Hp)

    w_ih_p = pad_gates(w_ih, Hp).astype(jnp.bfloat16)              # (Hp, 3Hp)
    w_hh_p = pad_gates(w_hh, Hp).astype(jnp.bfloat16)              # (Hp, 3Hp)
    b_ih_p = pad_gates(b_ih, 1).astype(jnp.float32)                # (1, 3Hp)
    b_hh_p = pad_gates(b_hh, 1).astype(jnp.float32)                # (1, 3Hp)

    w_fc_p = jnp.pad(w_fc, ((0, Hp - H), (0, Np - item_num))).astype(jnp.bfloat16)
    b_fc_p = jnp.pad(b_fc, ((0, 0), (0, Np - item_num))).astype(jnp.float32)

    # --- Kernel A: recurrence -> h_final (Bp, Hp) ---------------------------
    n_btiles = Bp // BT
    grid_a = pltpu.PrefetchScalarGridSpec(
        num_scalar_prefetch=1,
        grid=(n_btiles,),
        in_specs=[
            pl.BlockSpec((BT, 1), lambda i, ml: (i, 0)),             # lens
            pl.BlockSpec((T, BT, Hp), lambda i, ml: (0, i, 0)),      # emb
            pl.BlockSpec((Hp, 3 * Hp), lambda i, ml: (0, 0)),        # w_ih
            pl.BlockSpec((1, 3 * Hp), lambda i, ml: (0, 0)),         # b_ih
            pl.BlockSpec((Hp, 3 * Hp), lambda i, ml: (0, 0)),        # w_hh
            pl.BlockSpec((1, 3 * Hp), lambda i, ml: (0, 0)),         # b_hh
        ],
        out_specs=pl.BlockSpec((BT, Hp), lambda i, ml: (i, 0)),
        scratch_shapes=[pltpu.VMEM((T, BT, 3 * Hp), jnp.float32)],
    )
    h_final = pl.pallas_call(
        gru_recurrence_kernel,
        out_shape=jax.ShapeDtypeStruct((Bp, Hp), jnp.float32),
        grid_spec=grid_a,
        compiler_params=pltpu.CompilerParams(
            dimension_semantics=("parallel",)),
    )(max_len, lens, emb, w_ih_p, b_ih_p, w_hh_p, b_hh_p)

    # --- Kernel B: lane-dense FC, pipelined over item tiles -----------------
    n_itiles = Np // item_tile
    grid_b = pltpu.PrefetchScalarGridSpec(
        num_scalar_prefetch=0,
        grid=(n_itiles,),
        in_specs=[
            pl.BlockSpec((Bp, Hp), lambda j: (0, 0)),                # h
            pl.BlockSpec((Hp, item_tile), lambda j: (0, j)),         # w_fc
            pl.BlockSpec((1, item_tile), lambda j: (0, j)),          # b_fc
        ],
        out_specs=pl.BlockSpec((Bp, item_tile), lambda j: (0, j)),
    )
    logits = pl.pallas_call(
        fc_kernel,
        out_shape=jax.ShapeDtypeStruct((Bp, Np), jnp.float32),
        grid_spec=grid_b,
        compiler_params=pltpu.CompilerParams(
            dimension_semantics=("parallel",)),
    )(h_final, w_fc_p, b_fc_p)

    return logits[:B, :item_num]


def init_params(key, hidden_size, item_num):
    """Deterministic synthetic parameters mirroring the PyTorch module init."""
    k_emb, k1, k2, k3, k4, k5, k6 = jax.random.split(key, 7)
    H = hidden_size
    bound = 1.0 / jnp.sqrt(H)

    emb = 0.01 * jax.random.normal(k_emb, (item_num + 1, H), jnp.float32)

    # PyTorch nn.GRU stores weight_ih_l0 as (3H, H); we pre-transpose so the
    # kernel computes x @ w_ih.  Gate ordering is (r, z, n), same as PyTorch.
    w_ih = jax.random.uniform(k1, (H, 3 * H), jnp.float32, -bound, bound)
    w_hh = jax.random.uniform(k2, (H, 3 * H), jnp.float32, -bound, bound)
    b_ih = jax.random.uniform(k3, (1, 3 * H), jnp.float32, -bound, bound)
    b_hh = jax.random.uniform(k4, (1, 3 * H), jnp.float32, -bound, bound)

    # nn.Linear(H, item_num): weight (item_num, H) -> transpose to (H, item_num).
    w_fc = jax.random.uniform(k5, (H, item_num), jnp.float32, -bound, bound)
    b_fc = jax.random.uniform(k6, (1, item_num), jnp.float32, -bound, bound)

    return dict(emb=emb, w_ih=w_ih, b_ih=b_ih, w_hh=w_hh, b_hh=b_hh,
                w_fc=w_fc, b_fc=b_fc)


if __name__ == "__main__":
    hidden_size = 32
    item_num = 50
    state_size = 10   # max sequence length T
    batch = 4

    key = jax.random.PRNGKey(0)
    k_params, k_states = jax.random.split(key)

    params = init_params(k_params, hidden_size, item_num)

    # states: padded item-id sequences (B, T); entries past len are ignored
    # via length masking (pack_padded_sequence semantics).
    states = jax.random.randint(k_states, (batch, state_size), 0, item_num,
                                dtype=jnp.int32)
    len_states = jnp.array([10, 7, 3, 1], dtype=jnp.int32)

    out = gru_forward(states, len_states, params)
    out = jax.block_until_ready(out)

    assert out.shape == (batch, item_num), out.shape
    assert out.dtype == jnp.float32
    assert bool(jnp.all(jnp.isfinite(out)))
    print("KERNEL_OK")
</pallas_src>

<mosaic_0001>
module attributes {stable_mosaic.version = 11 : i64} {
  func.func @gru_recurrence_kernel(%arg0: i32, %arg1: memref<1xi32, #tpu.memory_space<smem>>, %arg2: memref<8x1xi32, #tpu.memory_space<vmem>>, %arg3: memref<10x8x128xf32, #tpu.memory_space<vmem>>, %arg4: memref<128x384xbf16, #tpu.memory_space<vmem>>, %arg5: memref<1x384xf32, #tpu.memory_space<vmem>>, %arg6: memref<128x384xbf16, #tpu.memory_space<vmem>>, %arg7: memref<1x384xf32, #tpu.memory_space<vmem>>, %arg8: memref<8x128xf32, #tpu.memory_space<vmem>>, %arg9: memref<10x8x384xf32, #tpu.memory_space<vmem>>) attributes {dimension_semantics = [#tpu.dimension_semantics<parallel>], iteration_bounds = array<i64: 1>, scalar_prefetch = 1 : i64, scratch_operands = 1 : i64, tpu.core_type = #tpu.core_type<tc>, window_params = [{transform_indices = @transform_0, window_bounds = array<i64: 8, 1>}, {transform_indices = @transform_1, window_bounds = array<i64: 10, 8, 128>}, {pipeline_mode = #tpu.pipeline_mode<synchronous>, transform_indices = @transform_2, window_bounds = array<i64: 128, 384>}, {pipeline_mode = #tpu.pipeline_mode<synchronous>, transform_indices = @transform_3, window_bounds = array<i64: 1, 384>}, {pipeline_mode = #tpu.pipeline_mode<synchronous>, transform_indices = @transform_4, window_bounds = array<i64: 128, 384>}, {pipeline_mode = #tpu.pipeline_mode<synchronous>, transform_indices = @transform_5, window_bounds = array<i64: 1, 384>}, {transform_indices = @transform_6, window_bounds = array<i64: 8, 128>}]} {
    %c0 = arith.constant 0 : index
    %c0_0 = arith.constant 0 : index
    %c0_1 = arith.constant 0 : index
    %0 = vector.load %arg3[%c0, %c0_0, %c0_1] : memref<10x8x128xf32, #tpu.memory_space<vmem>>, vector<10x8x128xf32>
    %1 = vector.shape_cast %0 : vector<10x8x128xf32> to vector<80x128xf32>
    %2 = arith.truncf %1 : vector<80x128xf32> to vector<80x128xbf16>
    %c0_2 = arith.constant 0 : index
    %c0_3 = arith.constant 0 : index
    %3 = vector.load %arg4[%c0_2, %c0_3] : memref<128x384xbf16, #tpu.memory_space<vmem>>, vector<128x384xbf16>
    %cst = arith.constant dense<0.000000e+00> : vector<80x384xf32>
    %4 = tpu.matmul %2, %3, %cst {dimension_numbers = #tpu.dot_dimension_numbers<[1], [0], [0], [1], [0, 0, 1, 1], [], []>} : vector<80x128xbf16>, vector<128x384xbf16>, vector<80x384xf32> -> vector<80x384xf32>
    %c0_4 = arith.constant 0 : index
    %c0_5 = arith.constant 0 : index
    %5 = vector.load %arg5[%c0_4, %c0_5] : memref<1x384xf32, #tpu.memory_space<vmem>>, vector<1x384xf32>
    %6 = vector.broadcast %5 : vector<1x384xf32> to vector<80x384xf32>
    %7 = arith.addf %4, %6 : vector<80x384xf32>
    %8 = vector.shape_cast %7 : vector<80x384xf32> to vector<10x8x384xf32>
    %c0_6 = arith.constant 0 : index
    %c0_7 = arith.constant 0 : index
    %c0_8 = arith.constant 0 : index
    %9 = vector.load %arg9[%c0_6, %c0_7, %c0_8] : memref<10x8x384xf32, #tpu.memory_space<vmem>>, vector<10x8x384xf32>
    tpu.vector_store %arg9[%c0_6, %c0_7, %c0_8], %8 {strides = array<i32>} : memref<10x8x384xf32, #tpu.memory_space<vmem>>, vector<10x8x384xf32>,
    %c0_9 = arith.constant 0 : index
    %c0_10 = arith.constant 0 : index
    %10 = vector.load %arg7[%c0_9, %c0_10] : memref<1x384xf32, #tpu.memory_space<vmem>>, vector<1x384xf32>
    %11 = vector.shape_cast %10 : vector<1x384xf32> to vector<1x384xf32>
    %12 = vector.broadcast %11 : vector<1x384xf32> to vector<8x384xf32>
    %c0_11 = arith.constant 0 : index
    %c0_12 = arith.constant 0 : index
    %13 = vector.load %arg2[%c0_11, %c0_12] : memref<8x1xi32, #tpu.memory_space<vmem>>, vector<8x1xi32>
    %c0_13 = arith.constant 0 : index
    %14 = memref.load %arg1[%c0_13] : memref<1xi32, #tpu.memory_space<smem>>
    %cst_14 = arith.constant 0.000000e+00 : f32
    %15 = vector.broadcast %cst_14 : f32 to vector<8x128xf32>
    %c0_15 = arith.constant 0 : index
    %c0_16 = arith.constant 0 : index
    %16 = vector.load %arg8[%c0_15, %c0_16] : memref<8x128xf32, #tpu.memory_space<vmem>>, vector<8x128xf32>
    tpu.vector_store %arg8[%c0_15, %c0_16], %15 {strides = array<i32>} : memref<8x128xf32, #tpu.memory_space<vmem>>, vector<8x128xf32>,
    %c0_i32 = arith.constant 0 : i32
    %17 = arith.cmpi slt, %c0_i32, %14 : i32
    %18 = arith.extui %17 : i1 to i32
    %c0_i32_17 = arith.constant 0 : i32
    %19 = arith.cmpi ne, %18, %c0_i32_17 : i32
    scf.if %19 {
      %c0_27 = arith.constant 0 : index
      %c0_28 = arith.constant 0 : index
      %47 = vector.load %arg8[%c0_27, %c0_28] : memref<8x128xf32, #tpu.memory_space<vmem>>, vector<8x128xf32>
      %48 = arith.index_cast %c0_i32 : i32 to index
      %c0_29 = arith.constant 0 : index
      %c0_30 = arith.constant 0 : index
      %49 = vector.load %arg9[%48, %c0_29, %c0_30] : memref<10x8x384xf32, #tpu.memory_space<vmem>>, vector<1x8x384xf32>
      %50 = vector.shape_cast %49 : vector<1x8x384xf32> to vector<8x384xf32>
      %51 = arith.truncf %47 : vector<8x128xf32> to vector<8x128xbf16>
      %c0_31 = arith.constant 0 : index
      %c0_32 = arith.constant 0 : index
      %52 = vector.load %arg6[%c0_31, %c0_32] : memref<128x384xbf16, #tpu.memory_space<vmem>>, vector<128x384xbf16>
      %cst_33 = arith.constant dense<0.000000e+00> : vector<8x384xf32>
      %53 = tpu.matmul %51, %52, %cst_33 {dimension_numbers = #tpu.dot_dimension_numbers<[1], [0], [0], [1], [0, 0, 1, 1], [], []>} : vector<8x128xbf16>, vector<128x384xbf16>, vector<8x384xf32> -> vector<8x384xf32>
      %54 = arith.addf %53, %12 : vector<8x384xf32>
      %55 = vector.extract_strided_slice %50 {offsets = [0, 0], sizes = [8, 128], strides = [1, 1]} : vector<8x384xf32> to vector<8x128xf32>
      %56 = vector.extract_strided_slice %50 {offsets = [0, 128], sizes = [8, 128], strides = [1, 1]} : vector<8x384xf32> to vector<8x128xf32>
      %57 = vector.extract_strided_slice %50 {offsets = [0, 256], sizes = [8, 128], strides = [1, 1]} : vector<8x384xf32> to vector<8x128xf32>
      %58 = vector.extract_strided_slice %54 {offsets = [0, 0], sizes = [8, 128], strides = [1, 1]} : vector<8x384xf32> to vector<8x128xf32>
      %59 = vector.extract_strided_slice %54 {offsets = [0, 128], sizes = [8, 128], strides = [1, 1]} : vector<8x384xf32> to vector<8x128xf32>
      %60 = vector.extract_strided_slice %54 {offsets = [0, 256], sizes = [8, 128], strides = [1, 1]} : vector<8x384xf32> to vector<8x128xf32>
      %61 = arith.addf %55, %58 : vector<8x128xf32>
      %62 = arith.negf %61 : vector<8x128xf32>
      %63 = math.exp %62 : vector<8x128xf32>
      %cst_34 = arith.constant 1.000000e+00 : f32
      %64 = vector.broadcast %cst_34 : f32 to vector<8x128xf32>
      %65 = arith.addf %64, %63 : vector<8x128xf32>
      %66 = arith.divf %64, %65 : vector<8x128xf32>
      %67 = arith.addf %56, %59 : vector<8x128xf32>
      %68 = arith.negf %67 : vector<8x128xf32>
      %69 = math.exp %68 : vector<8x128xf32>
      %cst_35 = arith.constant 1.000000e+00 : f32
      %70 = vector.broadcast %cst_35 : f32 to vector<8x128xf32>
      %71 = arith.addf %70, %69 : vector<8x128xf32>
      %72 = arith.divf %70, %71 : vector<8x128xf32>
      %73 = arith.mulf %66, %60 : vector<8x128xf32>
      %74 = arith.addf %57, %73 : vector<8x128xf32>
      %75 = math.tanh %74 : vector<8x128xf32>
      %cst_36 = arith.constant 1.000000e+00 : f32
      %76 = vector.broadcast %cst_36 : f32 to vector<8x128xf32>
      %77 = arith.subf %76, %72 : vector<8x128xf32>
      %78 = arith.mulf %77, %75 : vector<8x128xf32>
      %79 = arith.mulf %72, %47 : vector<8x128xf32>
      %80 = arith.addf %78, %79 : vector<8x128xf32>
      %81 = vector.broadcast %c0_i32 : i32 to vector<8x1xi32>
      %82 = arith.cmpi sgt, %13, %81 : vector<8x1xi32>
      %83 = vector.shape_cast %82 : vector<8x1xi1> to vector<8x1xi1>
      %84 = vector.broadcast %83 : vector<8x1xi1> to vector<8x128xi1>
      %85 = arith.select %84, %80, %47 : vector<8x128xi1>, vector<8x128xf32>
      %c0_37 = arith.constant 0 : index
      %c0_38 = arith.constant 0 : index
      %86 = vector.load %arg8[%c0_37, %c0_38] : memref<8x128xf32, #tpu.memory_space<vmem>>, vector<8x128xf32>
      tpu.vector_store %arg8[%c0_37, %c0_38], %85 {strides = array<i32>} : memref<8x128xf32, #tpu.memory_space<vmem>>, vector<8x128xf32>,
    } else {
    }
    %c1_i32 = arith.constant 1 : i32
    %20 = arith.cmpi slt, %c1_i32, %14 : i32
    %21 = arith.extui %20 : i1 to i32
    %c0_i32_18 = arith.constant 0 : i32
    %22 = arith.cmpi ne, %21, %c0_i32_18 : i32
    scf.if %22 {
      %c0_27 = arith.constant 0 : index
      %c0_28 = arith.constant 0 : index
      %47 = vector.load %arg8[%c0_27, %c0_28] : memref<8x128xf32, #tpu.memory_space<vmem>>, vector<8x128xf32>
      %48 = arith.index_cast %c1_i32 : i32 to index
      %c0_29 = arith.constant 0 : index
      %c0_30 = arith.constant 0 : index
      %49 = vector.load %arg9[%48, %c0_29, %c0_30] : memref<10x8x384xf32, #tpu.memory_space<vmem>>, vector<1x8x384xf32>
      %50 = vector.shape_cast %49 : vector<1x8x384xf32> to vector<8x384xf32>
      %51 = arith.truncf %47 : vector<8x128xf32> to vector<8x128xbf16>
      %c0_31 = arith.constant 0 : index
      %c0_32 = arith.constant 0 : index
      %52 = vector.load %arg6[%c0_31, %c0_32] : memref<128x384xbf16, #tpu.memory_space<vmem>>, vector<128x384xbf16>
      %cst_33 = arith.constant dense<0.000000e+00> : vector<8x384xf32>
      %53 = tpu.matmul %51, %52, %cst_33 {dimension_numbers = #tpu.dot_dimension_numbers<[1], [0], [0], [1], [0, 0, 1, 1], [], []>} : vector<8x128xbf16>, vector<128x384xbf16>, vector<8x384xf32> -> vector<8x384xf32>
      %54 = arith.addf %53, %12 : vector<8x384xf32>
      %55 = vector.extract_strided_slice %50 {offsets = [0, 0], sizes = [8, 128], strides = [1, 1]} : vector<8x384xf32> to vector<8x128xf32>
      %56 = vector.extract_strided_slice %50 {offsets = [0, 128], sizes = [8, 128], strides = [1, 1]} : vector<8x384xf32> to vector<8x128xf32>
      %57 = vector.extract_strided_slice %50 {offsets = [0, 256], sizes = [8, 128], strides = [1, 1]} : vector<8x384xf32> to vector<8x128xf32>
      %58 = vector.extract_strided_slice %54 {offsets = [0, 0], sizes = [8, 128], strides = [1, 1]} : vector<8x384xf32> to vector<8x128xf32>
      %59 = vector.extract_strided_slice %54 {offsets = [0, 128], sizes = [8, 128], strides = [1, 1]} : vector<8x384xf32> to vector<8x128xf32>
      %60 = vector.extract_strided_slice %54 {offsets = [0, 256], sizes = [8, 128], strides = [1, 1]} : vector<8x384xf32> to vector<8x128xf32>
      %61 = arith.addf %55, %58 : vector<8x128xf32>
      %62 = arith.negf %61 : vector<8x128xf32>
      %63 = math.exp %62 : vector<8x128xf32>
      %cst_34 = arith.constant 1.000000e+00 : f32
      %64 = vector.broadcast %cst_34 : f32 to vector<8x128xf32>
      %65 = arith.addf %64, %63 : vector<8x128xf32>
      %66 = arith.divf %64, %65 : vector<8x128xf32>
      %67 = arith.addf %56, %59 : vector<8x128xf32>
      %68 = arith.negf %67 : vector<8x128xf32>
      %69 = math.exp %68 : vector<8x128xf32>
      %cst_35 = arith.constant 1.000000e+00 : f32
      %70 = vector.broadcast %cst_35 : f32 to vector<8x128xf32>
      %71 = arith.addf %70, %69 : vector<8x128xf32>
      %72 = arith.divf %70, %71 : vector<8x128xf32>
      %73 = arith.mulf %66, %60 : vector<8x128xf32>
      %74 = arith.addf %57, %73 : vector<8x128xf32>
      %75 = math.tanh %74 : vector<8x128xf32>
      %cst_36 = arith.constant 1.000000e+00 : f32
      %76 = vector.broadcast %cst_36 : f32 to vector<8x128xf32>
      %77 = arith.subf %76, %72 : vector<8x128xf32>
      %78 = arith.mulf %77, %75 : vector<8x128xf32>
      %79 = arith.mulf %72, %47 : vector<8x128xf32>
      %80 = arith.addf %78, %79 : vector<8x128xf32>
      %81 = vector.broadcast %c1_i32 : i32 to vector<8x1xi32>
      %82 = arith.cmpi sgt, %13, %81 : vector<8x1xi32>
      %83 = vector.shape_cast %82 : vector<8x1xi1> to vector<8x1xi1>
      %84 = vector.broadcast %83 : vector<8x1xi1> to vector<8x128xi1>
      %85 = arith.select %84, %80, %47 : vector<8x128xi1>, vector<8x128xf32>
      %c0_37 = arith.constant 0 : index
      %c0_38 = arith.constant 0 : index
      %86 = vector.load %arg8[%c0_37, %c0_38] : memref<8x128xf32, #tpu.memory_space<vmem>>, vector<8x128xf32>
      tpu.vector_store %arg8[%c0_37, %c0_38], %85 {strides = array<i32>} : memref<8x128xf32, #tpu.memory_space<vmem>>, vector<8x128xf32>,
    } else {
    }
    %c2_i32 = arith.constant 2 : i32
    %23 = arith.cmpi slt, %c2_i32, %14 : i32
    %24 = arith.extui %23 : i1 to i32
    %c0_i32_19 = arith.constant 0 : i32
    %25 = arith.cmpi ne, %24, %c0_i32_19 : i32
    scf.if %25 {
      %c0_27 = arith.constant 0 : index
      %c0_28 = arith.constant 0 : index
      %47 = vector.load %arg8[%c0_27, %c0_28] : memref<8x128xf32, #tpu.memory_space<vmem>>, vector<8x128xf32>
      %48 = arith.index_cast %c2_i32 : i32 to index
      %c0_29 = arith.constant 0 : index
      %c0_30 = arith.constant 0 : index
      %49 = vector.load %arg9[%48, %c0_29, %c0_30] : memref<10x8x384xf32, #tpu.memory_space<vmem>>, vector<1x8x384xf32>
      %50 = vector.shape_cast %49 : vector<1x8x384xf32> to vector<8x384xf32>
      %51 = arith.truncf %47 : vector<8x128xf32> to vector<8x128xbf16>
      %c0_31 = arith.constant 0 : index
      %c0_32 = arith.constant 0 : index
      %52 = vector.load %arg6[%c0_31, %c0_32] : memref<128x384xbf16, #tpu.memory_space<vmem>>, vector<128x384xbf16>
      %cst_33 = arith.constant dense<0.000000e+00> : vector<8x384xf32>
      %53 = tpu.matmul %51, %52, %cst_33 {dimension_numbers = #tpu.dot_dimension_numbers<[1], [0], [0], [1], [0, 0, 1, 1], [], []>} : vector<8x128xbf16>, vector<128x384xbf16>, vector<8x384xf32> -> vector<8x384xf32>
      %54 = arith.addf %53, %12 : vector<8x384xf32>
      %55 = vector.extract_strided_slice %50 {offsets = [0, 0], sizes = [8, 128], strides = [1, 1]} : vector<8x384xf32> to vector<8x128xf32>
      %56 = vector.extract_strided_slice %50 {offsets = [0, 128], sizes = [8, 128], strides = [1, 1]} : vector<8x384xf32> to vector<8x128xf32>
      %57 = vector.extract_strided_slice %50 {offsets = [0, 256], sizes = [8, 128], strides = [1, 1]} : vector<8x384xf32> to vector<8x128xf32>
      %58 = vector.extract_strided_slice %54 {offsets = [0, 0], sizes = [8, 128], strides = [1, 1]} : vector<8x384xf32> to vector<8x128xf32>
      %59 = vector.extract_strided_slice %54 {offsets = [0, 128], sizes = [8, 128], strides = [1, 1]} : vector<8x384xf32> to vector<8x128xf32>
      %60 = vector.extract_strided_slice %54 {offsets = [0, 256], sizes = [8, 128], strides = [1, 1]} : vector<8x384xf32> to vector<8x128xf32>
      %61 = arith.addf %55, %58 : vector<8x128xf32>
      %62 = arith.negf %61 : vector<8x128xf32>
      %63 = math.exp %62 : vector<8x128xf32>
      %cst_34 = arith.constant 1.000000e+00 : f32
      %64 = vector.broadcast %cst_34 : f32 to vector<8x128xf32>
      %65 = arith.addf %64, %63 : vector<8x128xf32>
      %66 = arith.divf %64, %65 : vector<8x128xf32>
      %67 = arith.addf %56, %59 : vector<8x128xf32>
      %68 = arith.negf %67 : vector<8x128xf32>
      %69 = math.exp %68 : vector<8x128xf32>
      %cst_35 = arith.constant 1.000000e+00 : f32
      %70 = vector.broadcast %cst_35 : f32 to vector<8x128xf32>
      %71 = arith.addf %70, %69 : vector<8x128xf32>
      %72 = arith.divf %70, %71 : vector<8x128xf32>
      %73 = arith.mulf %66, %60 : vector<8x128xf32>
      %74 = arith.addf %57, %73 : vector<8x128xf32>
      %75 = math.tanh %74 : vector<8x128xf32>
      %cst_36 = arith.constant 1.000000e+00 : f32
      %76 = vector.broadcast %cst_36 : f32 to vector<8x128xf32>
      %77 = arith.subf %76, %72 : vector<8x128xf32>
      %78 = arith.mulf %77, %75 : vector<8x128xf32>
      %79 = arith.mulf %72, %47 : vector<8x128xf32>
      %80 = arith.addf %78, %79 : vector<8x128xf32>
      %81 = vector.broadcast %c2_i32 : i32 to vector<8x1xi32>
      %82 = arith.cmpi sgt, %13, %81 : vector<8x1xi32>
      %83 = vector.shape_cast %82 : vector<8x1xi1> to vector<8x1xi1>
      %84 = vector.broadcast %83 : vector<8x1xi1> to vector<8x128xi1>
      %85 = arith.select %84, %80, %47 : vector<8x128xi1>, vector<8x128xf32>
      %c0_37 = arith.constant 0 : index
      %c0_38 = arith.constant 0 : index
      %86 = vector.load %arg8[%c0_37, %c0_38] : memref<8x128xf32, #tpu.memory_space<vmem>>, vector<8x128xf32>
      tpu.vector_store %arg8[%c0_37, %c0_38], %85 {strides = array<i32>} : memref<8x128xf32, #tpu.memory_space<vmem>>, vector<8x128xf32>,
    } else {
    }
    %c3_i32 = arith.constant 3 : i32
    %26 = arith.cmpi slt, %c3_i32, %14 : i32
    %27 = arith.extui %26 : i1 to i32
    %c0_i32_20 = arith.constant 0 : i32
    %28 = arith.cmpi ne, %27, %c0_i32_20 : i32
    scf.if %28 {
      %c0_27 = arith.constant 0 : index
      %c0_28 = arith.constant 0 : index
      %47 = vector.load %arg8[%c0_27, %c0_28] : memref<8x128xf32, #tpu.memory_space<vmem>>, vector<8x128xf32>
      %48 = arith.index_cast %c3_i32 : i32 to index
      %c0_29 = arith.constant 0 : index
      %c0_30 = arith.constant 0 : index
      %49 = vector.load %arg9[%48, %c0_29, %c0_30] : memref<10x8x384xf32, #tpu.memory_space<vmem>>, vector<1x8x384xf32>
      %50 = vector.shape_cast %49 : vector<1x8x384xf32> to vector<8x384xf32>
      %51 = arith.truncf %47 : vector<8x128xf32> to vector<8x128xbf16>
      %c0_31 = arith.constant 0 : index
      %c0_32 = arith.constant 0 : index
      %52 = vector.load %arg6[%c0_31, %c0_32] : memref<128x384xbf16, #tpu.memory_space<vmem>>, vector<128x384xbf16>
      %cst_33 = arith.constant dense<0.000000e+00> : vector<8x384xf32>
      %53 = tpu.matmul %51, %52, %cst_33 {dimension_numbers = #tpu.dot_dimension_numbers<[1], [0], [0], [1], [0, 0, 1, 1], [], []>} : vector<8x128xbf16>, vector<128x384xbf16>, vector<8x384xf32> -> vector<8x384xf32>
      %54 = arith.addf %53, %12 : vector<8x384xf32>
      %55 = vector.extract_strided_slice %50 {offsets = [0, 0], sizes = [8, 128], strides = [1, 1]} : vector<8x384xf32> to vector<8x128xf32>
      %56 = vector.extract_strided_slice %50 {offsets = [0, 128], sizes = [8, 128], strides = [1, 1]} : vector<8x384xf32> to vector<8x128xf32>
      %57 = vector.extract_strided_slice %50 {offsets = [0, 256], sizes = [8, 128], strides = [1, 1]} : vector<8x384xf32> to vector<8x128xf32>
      %58 = vector.extract_strided_slice %54 {offsets = [0, 0], sizes = [8, 128], strides = [1, 1]} : vector<8x384xf32> to vector<8x128xf32>
      %59 = vector.extract_strided_slice %54 {offsets = [0, 128], sizes = [8, 128], strides = [1, 1]} : vector<8x384xf32> to vector<8x128xf32>
      %60 = vector.extract_strided_slice %54 {offsets = [0, 256], sizes = [8, 128], strides = [1, 1]} : vector<8x384xf32> to vector<8x128xf32>
      %61 = arith.addf %55, %58 : vector<8x128xf32>
      %62 = arith.negf %61 : vector<8x128xf32>
      %63 = math.exp %62 : vector<8x128xf32>
      %cst_34 = arith.constant 1.000000e+00 : f32
      %64 = vector.broadcast %cst_34 : f32 to vector<8x128xf32>
      %65 = arith.addf %64, %63 : vector<8x128xf32>
      %66 = arith.divf %64, %65 : vector<8x128xf32>
      %67 = arith.addf %56, %59 : vector<8x128xf32>
      %68 = arith.negf %67 : vector<8x128xf32>
      %69 = math.exp %68 : vector<8x128xf32>
      %cst_35 = arith.constant 1.000000e+00 : f32
      %70 = vector.broadcast %cst_35 : f32 to vector<8x128xf32>
      %71 = arith.addf %70, %69 : vector<8x128xf32>
      %72 = arith.divf %70, %71 : vector<8x128xf32>
      %73 = arith.mulf %66, %60 : vector<8x128xf32>
      %74 = arith.addf %57, %73 : vector<8x128xf32>
      %75 = math.tanh %74 : vector<8x128xf32>
      %cst_36 = arith.constant 1.000000e+00 : f32
      %76 = vector.broadcast %cst_36 : f32 to vector<8x128xf32>
      %77 = arith.subf %76, %72 : vector<8x128xf32>
      %78 = arith.mulf %77, %75 : vector<8x128xf32>
      %79 = arith.mulf %72, %47 : vector<8x128xf32>
      %80 = arith.addf %78, %79 : vector<8x128xf32>
      %81 = vector.broadcast %c3_i32 : i32 to vector<8x1xi32>
      %82 = arith.cmpi sgt, %13, %81 : vector<8x1xi32>
      %83 = vector.shape_cast %82 : vector<8x1xi1> to vector<8x1xi1>
      %84 = vector.broadcast %83 : vector<8x1xi1> to vector<8x128xi1>
      %85 = arith.select %84, %80, %47 : vector<8x128xi1>, vector<8x128xf32>
      %c0_37 = arith.constant 0 : index
      %c0_38 = arith.constant 0 : index
      %86 = vector.load %arg8[%c0_37, %c0_38] : memref<8x128xf32, #tpu.memory_space<vmem>>, vector<8x128xf32>
      tpu.vector_store %arg8[%c0_37, %c0_38], %85 {strides = array<i32>} : memref<8x128xf32, #tpu.memory_space<vmem>>, vector<8x128xf32>,
    } else {
    }
    %c4_i32 = arith.constant 4 : i32
    %29 = arith.cmpi slt, %c4_i32, %14 : i32
    %30 = arith.extui %29 : i1 to i32
    %c0_i32_21 = arith.constant 0 : i32
    %31 = arith.cmpi ne, %30, %c0_i32_21 : i32
    scf.if %31 {
      %c0_27 = arith.constant 0 : index
      %c0_28 = arith.constant 0 : index
      %47 = vector.load %arg8[%c0_27, %c0_28] : memref<8x128xf32, #tpu.memory_space<vmem>>, vector<8x128xf32>
      %48 = arith.index_cast %c4_i32 : i32 to index
      %c0_29 = arith.constant 0 : index
      %c0_30 = arith.constant 0 : index
      %49 = vector.load %arg9[%48, %c0_29, %c0_30] : memref<10x8x384xf32, #tpu.memory_space<vmem>>, vector<1x8x384xf32>
      %50 = vector.shape_cast %49 : vector<1x8x384xf32> to vector<8x384xf32>
      %51 = arith.truncf %47 : vector<8x128xf32> to vector<8x128xbf16>
      %c0_31 = arith.constant 0 : index
      %c0_32 = arith.constant 0 : index
      %52 = vector.load %arg6[%c0_31, %c0_32] : memref<128x384xbf16, #tpu.memory_space<vmem>>, vector<128x384xbf16>
      %cst_33 = arith.constant dense<0.000000e+00> : vector<8x384xf32>
      %53 = tpu.matmul %51, %52, %cst_33 {dimension_numbers = #tpu.dot_dimension_numbers<[1], [0], [0], [1], [0, 0, 1, 1], [], []>} : vector<8x128xbf16>, vector<128x384xbf16>, vector<8x384xf32> -> vector<8x384xf32>
      %54 = arith.addf %53, %12 : vector<8x384xf32>
      %55 = vector.extract_strided_slice %50 {offsets = [0, 0], sizes = [8, 128], strides = [1, 1]} : vector<8x384xf32> to vector<8x128xf32>
      %56 = vector.extract_strided_slice %50 {offsets = [0, 128], sizes = [8, 128], strides = [1, 1]} : vector<8x384xf32> to vector<8x128xf32>
      %57 = vector.extract_strided_slice %50 {offsets = [0, 256], sizes = [8, 128], strides = [1, 1]} : vector<8x384xf32> to vector<8x128xf32>
      %58 = vector.extract_strided_slice %54 {offsets = [0, 0], sizes = [8, 128], strides = [1, 1]} : vector<8x384xf32> to vector<8x128xf32>
      %59 = vector.extract_strided_slice %54 {offsets = [0, 128], sizes = [8, 128], strides = [1, 1]} : vector<8x384xf32> to vector<8x128xf32>
      %60 = vector.extract_strided_slice %54 {offsets = [0, 256], sizes = [8, 128], strides = [1, 1]} : vector<8x384xf32> to vector<8x128xf32>
      %61 = arith.addf %55, %58 : vector<8x128xf32>
      %62 = arith.negf %61 : vector<8x128xf32>
      %63 = math.exp %62 : vector<8x128xf32>
      %cst_34 = arith.constant 1.000000e+00 : f32
      %64 = vector.broadcast %cst_34 : f32 to vector<8x128xf32>
      %65 = arith.addf %64, %63 : vector<8x128xf32>
      %66 = arith.divf %64, %65 : vector<8x128xf32>
      %67 = arith.addf %56, %59 : vector<8x128xf32>
      %68 = arith.negf %67 : vector<8x128xf32>
      %69 = math.exp %68 : vector<8x128xf32>
      %cst_35 = arith.constant 1.000000e+00 : f32
      %70 = vector.broadcast %cst_35 : f32 to vector<8x128xf32>
      %71 = arith.addf %70, %69 : vector<8x128xf32>
      %72 = arith.divf %70, %71 : vector<8x128xf32>
      %73 = arith.mulf %66, %60 : vector<8x128xf32>
      %74 = arith.addf %57, %73 : vector<8x128xf32>
      %75 = math.tanh %74 : vector<8x128xf32>
      %cst_36 = arith.constant 1.000000e+00 : f32
      %76 = vector.broadcast %cst_36 : f32 to vector<8x128xf32>
      %77 = arith.subf %76, %72 : vector<8x128xf32>
      %78 = arith.mulf %77, %75 : vector<8x128xf32>
      %79 = arith.mulf %72, %47 : vector<8x128xf32>
      %80 = arith.addf %78, %79 : vector<8x128xf32>
      %81 = vector.broadcast %c4_i32 : i32 to vector<8x1xi32>
      %82 = arith.cmpi sgt, %13, %81 : vector<8x1xi32>
      %83 = vector.shape_cast %82 : vector<8x1xi1> to vector<8x1xi1>
      %84 = vector.broadcast %83 : vector<8x1xi1> to vector<8x128xi1>
      %85 = arith.select %84, %80, %47 : vector<8x128xi1>, vector<8x128xf32>
      %c0_37 = arith.constant 0 : index
      %c0_38 = arith.constant 0 : index
      %86 = vector.load %arg8[%c0_37, %c0_38] : memref<8x128xf32, #tpu.memory_space<vmem>>, vector<8x128xf32>
      tpu.vector_store %arg8[%c0_37, %c0_38], %85 {strides = array<i32>} : memref<8x128xf32, #tpu.memory_space<vmem>>, vector<8x128xf32>,
    } else {
    }
    %c5_i32 = arith.constant 5 : i32
    %32 = arith.cmpi slt, %c5_i32, %14 : i32
    %33 = arith.extui %32 : i1 to i32
    %c0_i32_22 = arith.constant 0 : i32
    %34 = arith.cmpi ne, %33, %c0_i32_22 : i32
    scf.if %34 {
      %c0_27 = arith.constant 0 : index
      %c0_28 = arith.constant 0 : index
      %47 = vector.load %arg8[%c0_27, %c0_28] : memref<8x128xf32, #tpu.memory_space<vmem>>, vector<8x128xf32>
      %48 = arith.index_cast %c5_i32 : i32 to index
      %c0_29 = arith.constant 0 : index
      %c0_30 = arith.constant 0 : index
      %49 = vector.load %arg9[%48, %c0_29, %c0_30] : memref<10x8x384xf32, #tpu.memory_space<vmem>>, vector<1x8x384xf32>
      %50 = vector.shape_cast %49 : vector<1x8x384xf32> to vector<8x384xf32>
      %51 = arith.truncf %47 : vector<8x128xf32> to vector<8x128xbf16>
      %c0_31 = arith.constant 0 : index
      %c0_32 = arith.constant 0 : index
      %52 = vector.load %arg6[%c0_31, %c0_32] : memref<128x384xbf16, #tpu.memory_space<vmem>>, vector<128x384xbf16>
      %cst_33 = arith.constant dense<0.000000e+00> : vector<8x384xf32>
      %53 = tpu.matmul %51, %52, %cst_33 {dimension_numbers = #tpu.dot_dimension_numbers<[1], [0], [0], [1], [0, 0, 1, 1], [], []>} : vector<8x128xbf16>, vector<128x384xbf16>, vector<8x384xf32> -> vector<8x384xf32>
      %54 = arith.addf %53, %12 : vector<8x384xf32>
      %55 = vector.extract_strided_slice %50 {offsets = [0, 0], sizes = [8, 128], strides = [1, 1]} : vector<8x384xf32> to vector<8x128xf32>
      %56 = vector.extract_strided_slice %50 {offsets = [0, 128], sizes = [8, 128], strides = [1, 1]} : vector<8x384xf32> to vector<8x128xf32>
      %57 = vector.extract_strided_slice %50 {offsets = [0, 256], sizes = [8, 128], strides = [1, 1]} : vector<8x384xf32> to vector<8x128xf32>
      %58 = vector.extract_strided_slice %54 {offsets = [0, 0], sizes = [8, 128], strides = [1, 1]} : vector<8x384xf32> to vector<8x128xf32>
      %59 = vector.extract_strided_slice %54 {offsets = [0, 128], sizes = [8, 128], strides = [1, 1]} : vector<8x384xf32> to vector<8x128xf32>
      %60 = vector.extract_strided_slice %54 {offsets = [0, 256], sizes = [8, 128], strides = [1, 1]} : vector<8x384xf32> to vector<8x128xf32>
      %61 = arith.addf %55, %58 : vector<8x128xf32>
      %62 = arith.negf %61 : vector<8x128xf32>
      %63 = math.exp %62 : vector<8x128xf32>
      %cst_34 = arith.constant 1.000000e+00 : f32
      %64 = vector.broadcast %cst_34 : f32 to vector<8x128xf32>
      %65 = arith.addf %64, %63 : vector<8x128xf32>
      %66 = arith.divf %64, %65 : vector<8x128xf32>
      %67 = arith.addf %56, %59 : vector<8x128xf32>
      %68 = arith.negf %67 : vector<8x128xf32>
      %69 = math.exp %68 : vector<8x128xf32>
      %cst_35 = arith.constant 1.000000e+00 : f32
      %70 = vector.broadcast %cst_35 : f32 to vector<8x128xf32>
      %71 = arith.addf %70, %69 : vector<8x128xf32>
      %72 = arith.divf %70, %71 : vector<8x128xf32>
      %73 = arith.mulf %66, %60 : vector<8x128xf32>
      %74 = arith.addf %57, %73 : vector<8x128xf32>
      %75 = math.tanh %74 : vector<8x128xf32>
      %cst_36 = arith.constant 1.000000e+00 : f32
      %76 = vector.broadcast %cst_36 : f32 to vector<8x128xf32>
      %77 = arith.subf %76, %72 : vector<8x128xf32>
      %78 = arith.mulf %77, %75 : vector<8x128xf32>
      %79 = arith.mulf %72, %47 : vector<8x128xf32>
      %80 = arith.addf %78, %79 : vector<8x128xf32>
      %81 = vector.broadcast %c5_i32 : i32 to vector<8x1xi32>
      %82 = arith.cmpi sgt, %13, %81 : vector<8x1xi32>
      %83 = vector.shape_cast %82 : vector<8x1xi1> to vector<8x1xi1>
      %84 = vector.broadcast %83 : vector<8x1xi1> to vector<8x128xi1>
      %85 = arith.select %84, %80, %47 : vector<8x128xi1>, vector<8x128xf32>
      %c0_37 = arith.constant 0 : index
      %c0_38 = arith.constant 0 : index
      %86 = vector.load %arg8[%c0_37, %c0_38] : memref<8x128xf32, #tpu.memory_space<vmem>>, vector<8x128xf32>
      tpu.vector_store %arg8[%c0_37, %c0_38], %85 {strides = array<i32>} : memref<8x128xf32, #tpu.memory_space<vmem>>, vector<8x128xf32>,
    } else {
    }
    %c6_i32 = arith.constant 6 : i32
    %35 = arith.cmpi slt, %c6_i32, %14 : i32
    %36 = arith.extui %35 : i1 to i32
    %c0_i32_23 = arith.constant 0 : i32
    %37 = arith.cmpi ne, %36, %c0_i32_23 : i32
    scf.if %37 {
      %c0_27 = arith.constant 0 : index
      %c0_28 = arith.constant 0 : index
      %47 = vector.load %arg8[%c0_27, %c0_28] : memref<8x128xf32, #tpu.memory_space<vmem>>, vector<8x128xf32>
      %48 = arith.index_cast %c6_i32 : i32 to index
      %c0_29 = arith.constant 0 : index
      %c0_30 = arith.constant 0 : index
      %49 = vector.load %arg9[%48, %c0_29, %c0_30] : memref<10x8x384xf32, #tpu.memory_space<vmem>>, vector<1x8x384xf32>
      %50 = vector.shape_cast %49 : vector<1x8x384xf32> to vector<8x384xf32>
      %51 = arith.truncf %47 : vector<8x128xf32> to vector<8x128xbf16>
      %c0_31 = arith.constant 0 : index
      %c0_32 = arith.constant 0 : index
      %52 = vector.load %arg6[%c0_31, %c0_32] : memref<128x384xbf16, #tpu.memory_space<vmem>>, vector<128x384xbf16>
      %cst_33 = arith.constant dense<0.000000e+00> : vector<8x384xf32>
      %53 = tpu.matmul %51, %52, %cst_33 {dimension_numbers = #tpu.dot_dimension_numbers<[1], [0], [0], [1], [0, 0, 1, 1], [], []>} : vector<8x128xbf16>, vector<128x384xbf16>, vector<8x384xf32> -> vector<8x384xf32>
      %54 = arith.addf %53, %12 : vector<8x384xf32>
      %55 = vector.extract_strided_slice %50 {offsets = [0, 0], sizes = [8, 128], strides = [1, 1]} : vector<8x384xf32> to vector<8x128xf32>
      %56 = vector.extract_strided_slice %50 {offsets = [0, 128], sizes = [8, 128], strides = [1, 1]} : vector<8x384xf32> to vector<8x128xf32>
      %57 = vector.extract_strided_slice %50 {offsets = [0, 256], sizes = [8, 128], strides = [1, 1]} : vector<8x384xf32> to vector<8x128xf32>
      %58 = vector.extract_strided_slice %54 {offsets = [0, 0], sizes = [8, 128], strides = [1, 1]} : vector<8x384xf32> to vector<8x128xf32>
      %59 = vector.extract_strided_slice %54 {offsets = [0, 128], sizes = [8, 128], strides = [1, 1]} : vector<8x384xf32> to vector<8x128xf32>
      %60 = vector.extract_strided_slice %54 {offsets = [0, 256], sizes = [8, 128], strides = [1, 1]} : vector<8x384xf32> to vector<8x128xf32>
      %61 = arith.addf %55, %58 : vector<8x128xf32>
      %62 = arith.negf %61 : vector<8x128xf32>
      %63 = math.exp %62 : vector<8x128xf32>
      %cst_34 = arith.constant 1.000000e+00 : f32
      %64 = vector.broadcast %cst_34 : f32 to vector<8x128xf32>
      %65 = arith.addf %64, %63 : vector<8x128xf32>
      %66 = arith.divf %64, %65 : vector<8x128xf32>
      %67 = arith.addf %56, %59 : vector<8x128xf32>
      %68 = arith.negf %67 : vector<8x128xf32>
      %69 = math.exp %68 : vector<8x128xf32>
      %cst_35 = arith.constant 1.000000e+00 : f32
      %70 = vector.broadcast %cst_35 : f32 to vector<8x128xf32>
      %71 = arith.addf %70, %69 : vector<8x128xf32>
      %72 = arith.divf %70, %71 : vector<8x128xf32>
      %73 = arith.mulf %66, %60 : vector<8x128xf32>
      %74 = arith.addf %57, %73 : vector<8x128xf32>
      %75 = math.tanh %74 : vector<8x128xf32>
      %cst_36 = arith.constant 1.000000e+00 : f32
      %76 = vector.broadcast %cst_36 : f32 to vector<8x128xf32>
      %77 = arith.subf %76, %72 : vector<8x128xf32>
      %78 = arith.mulf %77, %75 : vector<8x128xf32>
      %79 = arith.mulf %72, %47 : vector<8x128xf32>
      %80 = arith.addf %78, %79 : vector<8x128xf32>
      %81 = vector.broadcast %c6_i32 : i32 to vector<8x1xi32>
      %82 = arith.cmpi sgt, %13, %81 : vector<8x1xi32>
      %83 = vector.shape_cast %82 : vector<8x1xi1> to vector<8x1xi1>
      %84 = vector.broadcast %83 : vector<8x1xi1> to vector<8x128xi1>
      %85 = arith.select %84, %80, %47 : vector<8x128xi1>, vector<8x128xf32>
      %c0_37 = arith.constant 0 : index
      %c0_38 = arith.constant 0 : index
      %86 = vector.load %arg8[%c0_37, %c0_38] : memref<8x128xf32, #tpu.memory_space<vmem>>, vector<8x128xf32>
      tpu.vector_store %arg8[%c0_37, %c0_38], %85 {strides = array<i32>} : memref<8x128xf32, #tpu.memory_space<vmem>>, vector<8x128xf32>,
    } else {
    }
    %c7_i32 = arith.constant 7 : i32
    %38 = arith.cmpi slt, %c7_i32, %14 : i32
    %39 = arith.extui %38 : i1 to i32
    %c0_i32_24 = arith.constant 0 : i32
    %40 = arith.cmpi ne, %39, %c0_i32_24 : i32
    scf.if %40 {
      %c0_27 = arith.constant 0 : index
      %c0_28 = arith.constant 0 : index
      %47 = vector.load %arg8[%c0_27, %c0_28] : memref<8x128xf32, #tpu.memory_space<vmem>>, vector<8x128xf32>
      %48 = arith.index_cast %c7_i32 : i32 to index
      %c0_29 = arith.constant 0 : index
      %c0_30 = arith.constant 0 : index
      %49 = vector.load %arg9[%48, %c0_29, %c0_30] : memref<10x8x384xf32, #tpu.memory_space<vmem>>, vector<1x8x384xf32>
      %50 = vector.shape_cast %49 : vector<1x8x384xf32> to vector<8x384xf32>
      %51 = arith.truncf %47 : vector<8x128xf32> to vector<8x128xbf16>
      %c0_31 = arith.constant 0 : index
      %c0_32 = arith.constant 0 : index
      %52 = vector.load %arg6[%c0_31, %c0_32] : memref<128x384xbf16, #tpu.memory_space<vmem>>, vector<128x384xbf16>
      %cst_33 = arith.constant dense<0.000000e+00> : vector<8x384xf32>
      %53 = tpu.matmul %51, %52, %cst_33 {dimension_numbers = #tpu.dot_dimension_numbers<[1], [0], [0], [1], [0, 0, 1, 1], [], []>} : vector<8x128xbf16>, vector<128x384xbf16>, vector<8x384xf32> -> vector<8x384xf32>
      %54 = arith.addf %53, %12 : vector<8x384xf32>
      %55 = vector.extract_strided_slice %50 {offsets = [0, 0], sizes = [8, 128], strides = [1, 1]} : vector<8x384xf32> to vector<8x128xf32>
      %56 = vector.extract_strided_slice %50 {offsets = [0, 128], sizes = [8, 128], strides = [1, 1]} : vector<8x384xf32> to vector<8x128xf32>
      %57 = vector.extract_strided_slice %50 {offsets = [0, 256], sizes = [8, 128], strides = [1, 1]} : vector<8x384xf32> to vector<8x128xf32>
      %58 = vector.extract_strided_slice %54 {offsets = [0, 0], sizes = [8, 128], strides = [1, 1]} : vector<8x384xf32> to vector<8x128xf32>
      %59 = vector.extract_strided_slice %54 {offsets = [0, 128], sizes = [8, 128], strides = [1, 1]} : vector<8x384xf32> to vector<8x128xf32>
      %60 = vector.extract_strided_slice %54 {offsets = [0, 256], sizes = [8, 128], strides = [1, 1]} : vector<8x384xf32> to vector<8x128xf32>
      %61 = arith.addf %55, %58 : vector<8x128xf32>
      %62 = arith.negf %61 : vector<8x128xf32>
      %63 = math.exp %62 : vector<8x128xf32>
      %cst_34 = arith.constant 1.000000e+00 : f32
      %64 = vector.broadcast %cst_34 : f32 to vector<8x128xf32>
      %65 = arith.addf %64, %63 : vector<8x128xf32>
      %66 = arith.divf %64, %65 : vector<8x128xf32>
      %67 = arith.addf %56, %59 : vector<8x128xf32>
      %68 = arith.negf %67 : vector<8x128xf32>
      %69 = math.exp %68 : vector<8x128xf32>
      %cst_35 = arith.constant 1.000000e+00 : f32
      %70 = vector.broadcast %cst_35 : f32 to vector<8x128xf32>
      %71 = arith.addf %70, %69 : vector<8x128xf32>
      %72 = arith.divf %70, %71 : vector<8x128xf32>
      %73 = arith.mulf %66, %60 : vector<8x128xf32>
      %74 = arith.addf %57, %73 : vector<8x128xf32>
      %75 = math.tanh %74 : vector<8x128xf32>
      %cst_36 = arith.constant 1.000000e+00 : f32
      %76 = vector.broadcast %cst_36 : f32 to vector<8x128xf32>
      %77 = arith.subf %76, %72 : vector<8x128xf32>
      %78 = arith.mulf %77, %75 : vector<8x128xf32>
      %79 = arith.mulf %72, %47 : vector<8x128xf32>
      %80 = arith.addf %78, %79 : vector<8x128xf32>
      %81 = vector.broadcast %c7_i32 : i32 to vector<8x1xi32>
      %82 = arith.cmpi sgt, %13, %81 : vector<8x1xi32>
      %83 = vector.shape_cast %82 : vector<8x1xi1> to vector<8x1xi1>
      %84 = vector.broadcast %83 : vector<8x1xi1> to vector<8x128xi1>
      %85 = arith.select %84, %80, %47 : vector<8x128xi1>, vector<8x128xf32>
      %c0_37 = arith.constant 0 : index
      %c0_38 = arith.constant 0 : index
      %86 = vector.load %arg8[%c0_37, %c0_38] : memref<8x128xf32, #tpu.memory_space<vmem>>, vector<8x128xf32>
      tpu.vector_store %arg8[%c0_37, %c0_38], %85 {strides = array<i32>} : memref<8x128xf32, #tpu.memory_space<vmem>>, vector<8x128xf32>,
    } else {
    }
    %c8_i32 = arith.constant 8 : i32
    %41 = arith.cmpi slt, %c8_i32, %14 : i32
    %42 = arith.extui %41 : i1 to i32
    %c0_i32_25 = arith.constant 0 : i32
    %43 = arith.cmpi ne, %42, %c0_i32_25 : i32
    scf.if %43 {
      %c0_27 = arith.constant 0 : index
      %c0_28 = arith.constant 0 : index
      %47 = vector.load %arg8[%c0_27, %c0_28] : memref<8x128xf32, #tpu.memory_space<vmem>>, vector<8x128xf32>
      %48 = arith.index_cast %c8_i32 : i32 to index
      %c0_29 = arith.constant 0 : index
      %c0_30 = arith.constant 0 : index
      %49 = vector.load %arg9[%48, %c0_29, %c0_30] : memref<10x8x384xf32, #tpu.memory_space<vmem>>, vector<1x8x384xf32>
      %50 = vector.shape_cast %49 : vector<1x8x384xf32> to vector<8x384xf32>
      %51 = arith.truncf %47 : vector<8x128xf32> to vector<8x128xbf16>
      %c0_31 = arith.constant 0 : index
      %c0_32 = arith.constant 0 : index
      %52 = vector.load %arg6[%c0_31, %c0_32] : memref<128x384xbf16, #tpu.memory_space<vmem>>, vector<128x384xbf16>
      %cst_33 = arith.constant dense<0.000000e+00> : vector<8x384xf32>
      %53 = tpu.matmul %51, %52, %cst_33 {dimension_numbers = #tpu.dot_dimension_numbers<[1], [0], [0], [1], [0, 0, 1, 1], [], []>} : vector<8x128xbf16>, vector<128x384xbf16>, vector<8x384xf32> -> vector<8x384xf32>
      %54 = arith.addf %53, %12 : vector<8x384xf32>
      %55 = vector.extract_strided_slice %50 {offsets = [0, 0], sizes = [8, 128], strides = [1, 1]} : vector<8x384xf32> to vector<8x128xf32>
      %56 = vector.extract_strided_slice %50 {offsets = [0, 128], sizes = [8, 128], strides = [1, 1]} : vector<8x384xf32> to vector<8x128xf32>
      %57 = vector.extract_strided_slice %50 {offsets = [0, 256], sizes = [8, 128], strides = [1, 1]} : vector<8x384xf32> to vector<8x128xf32>
      %58 = vector.extract_strided_slice %54 {offsets = [0, 0], sizes = [8, 128], strides = [1, 1]} : vector<8x384xf32> to vector<8x128xf32>
      %59 = vector.extract_strided_slice %54 {offsets = [0, 128], sizes = [8, 128], strides = [1, 1]} : vector<8x384xf32> to vector<8x128xf32>
      %60 = vector.extract_strided_slice %54 {offsets = [0, 256], sizes = [8, 128], strides = [1, 1]} : vector<8x384xf32> to vector<8x128xf32>
      %61 = arith.addf %55, %58 : vector<8x128xf32>
      %62 = arith.negf %61 : vector<8x128xf32>
      %63 = math.exp %62 : vector<8x128xf32>
      %cst_34 = arith.constant 1.000000e+00 : f32
      %64 = vector.broadcast %cst_34 : f32 to vector<8x128xf32>
      %65 = arith.addf %64, %63 : vector<8x128xf32>
      %66 = arith.divf %64, %65 : vector<8x128xf32>
      %67 = arith.addf %56, %59 : vector<8x128xf32>
      %68 = arith.negf %67 : vector<8x128xf32>
      %69 = math.exp %68 : vector<8x128xf32>
      %cst_35 = arith.constant 1.000000e+00 : f32
      %70 = vector.broadcast %cst_35 : f32 to vector<8x128xf32>
      %71 = arith.addf %70, %69 : vector<8x128xf32>
      %72 = arith.divf %70, %71 : vector<8x128xf32>
      %73 = arith.mulf %66, %60 : vector<8x128xf32>
      %74 = arith.addf %57, %73 : vector<8x128xf32>
      %75 = math.tanh %74 : vector<8x128xf32>
      %cst_36 = arith.constant 1.000000e+00 : f32
      %76 = vector.broadcast %cst_36 : f32 to vector<8x128xf32>
      %77 = arith.subf %76, %72 : vector<8x128xf32>
      %78 = arith.mulf %77, %75 : vector<8x128xf32>
      %79 = arith.mulf %72, %47 : vector<8x128xf32>
      %80 = arith.addf %78, %79 : vector<8x128xf32>
      %81 = vector.broadcast %c8_i32 : i32 to vector<8x1xi32>
      %82 = arith.cmpi sgt, %13, %81 : vector<8x1xi32>
      %83 = vector.shape_cast %82 : vector<8x1xi1> to vector<8x1xi1>
      %84 = vector.broadcast %83 : vector<8x1xi1> to vector<8x128xi1>
      %85 = arith.select %84, %80, %47 : vector<8x128xi1>, vector<8x128xf32>
      %c0_37 = arith.constant 0 : index
      %c0_38 = arith.constant 0 : index
      %86 = vector.load %arg8[%c0_37, %c0_38] : memref<8x128xf32, #tpu.memory_space<vmem>>, vector<8x128xf32>
      tpu.vector_store %arg8[%c0_37, %c0_38], %85 {strides = array<i32>} : memref<8x128xf32, #tpu.memory_space<vmem>>, vector<8x128xf32>,
    } else {
    }
    %c9_i32 = arith.constant 9 : i32
    %44 = arith.cmpi slt, %c9_i32, %14 : i32
    %45 = arith.extui %44 : i1 to i32
    %c0_i32_26 = arith.constant 0 : i32
    %46 = arith.cmpi ne, %45, %c0_i32_26 : i32
    scf.if %46 {
      %c0_27 = arith.constant 0 : index
      %c0_28 = arith.constant 0 : index
      %47 = vector.load %arg8[%c0_27, %c0_28] : memref<8x128xf32, #tpu.memory_space<vmem>>, vector<8x128xf32>
      %48 = arith.index_cast %c9_i32 : i32 to index
      %c0_29 = arith.constant 0 : index
      %c0_30 = arith.constant 0 : index
      %49 = vector.load %arg9[%48, %c0_29, %c0_30] : memref<10x8x384xf32, #tpu.memory_space<vmem>>, vector<1x8x384xf32>
      %50 = vector.shape_cast %49 : vector<1x8x384xf32> to vector<8x384xf32>
      %51 = arith.truncf %47 : vector<8x128xf32> to vector<8x128xbf16>
      %c0_31 = arith.constant 0 : index
      %c0_32 = arith.constant 0 : index
      %52 = vector.load %arg6[%c0_31, %c0_32] : memref<128x384xbf16, #tpu.memory_space<vmem>>, vector<128x384xbf16>
      %cst_33 = arith.constant dense<0.000000e+00> : vector<8x384xf32>
      %53 = tpu.matmul %51, %52, %cst_33 {dimension_numbers = #tpu.dot_dimension_numbers<[1], [0], [0], [1], [0, 0, 1, 1], [], []>} : vector<8x128xbf16>, vector<128x384xbf16>, vector<8x384xf32> -> vector<8x384xf32>
      %54 = arith.addf %53, %12 : vector<8x384xf32>
      %55 = vector.extract_strided_slice %50 {offsets = [0, 0], sizes = [8, 128], strides = [1, 1]} : vector<8x384xf32> to vector<8x128xf32>
      %56 = vector.extract_strided_slice %50 {offsets = [0, 128], sizes = [8, 128], strides = [1, 1]} : vector<8x384xf32> to vector<8x128xf32>
      %57 = vector.extract_strided_slice %50 {offsets = [0, 256], sizes = [8, 128], strides = [1, 1]} : vector<8x384xf32> to vector<8x128xf32>
      %58 = vector.extract_strided_slice %54 {offsets = [0, 0], sizes = [8, 128], strides = [1, 1]} : vector<8x384xf32> to vector<8x128xf32>
      %59 = vector.extract_strided_slice %54 {offsets = [0, 128], sizes = [8, 128], strides = [1, 1]} : vector<8x384xf32> to vector<8x128xf32>
      %60 = vector.extract_strided_slice %54 {offsets = [0, 256], sizes = [8, 128], strides = [1, 1]} : vector<8x384xf32> to vector<8x128xf32>
      %61 = arith.addf %55, %58 : vector<8x128xf32>
      %62 = arith.negf %61 : vector<8x128xf32>
      %63 = math.exp %62 : vector<8x128xf32>
      %cst_34 = arith.constant 1.000000e+00 : f32
      %64 = vector.broadcast %cst_34 : f32 to vector<8x128xf32>
      %65 = arith.addf %64, %63 : vector<8x128xf32>
      %66 = arith.divf %64, %65 : vector<8x128xf32>
      %67 = arith.addf %56, %59 : vector<8x128xf32>
      %68 = arith.negf %67 : vector<8x128xf32>
      %69 = math.exp %68 : vector<8x128xf32>
      %cst_35 = arith.constant 1.000000e+00 : f32
      %70 = vector.broadcast %cst_35 : f32 to vector<8x128xf32>
      %71 = arith.addf %70, %69 : vector<8x128xf32>
      %72 = arith.divf %70, %71 : vector<8x128xf32>
      %73 = arith.mulf %66, %60 : vector<8x128xf32>
      %74 = arith.addf %57, %73 : vector<8x128xf32>
      %75 = math.tanh %74 : vector<8x128xf32>
      %cst_36 = arith.constant 1.000000e+00 : f32
      %76 = vector.broadcast %cst_36 : f32 to vector<8x128xf32>
      %77 = arith.subf %76, %72 : vector<8x128xf32>
      %78 = arith.mulf %77, %75 : vector<8x128xf32>
      %79 = arith.mulf %72, %47 : vector<8x128xf32>
      %80 = arith.addf %78, %79 : vector<8x128xf32>
      %81 = vector.broadcast %c9_i32 : i32 to vector<8x1xi32>
      %82 = arith.cmpi sgt, %13, %81 : vector<8x1xi32>
      %83 = vector.shape_cast %82 : vector<8x1xi1> to vector<8x1xi1>
      %84 = vector.broadcast %83 : vector<8x1xi1> to vector<8x128xi1>
      %85 = arith.select %84, %80, %47 : vector<8x128xi1>, vector<8x128xf32>
      %c0_37 = arith.constant 0 : index
      %c0_38 = arith.constant 0 : index
      %86 = vector.load %arg8[%c0_37, %c0_38] : memref<8x128xf32, #tpu.memory_space<vmem>>, vector<8x128xf32>
      tpu.vector_store %arg8[%c0_37, %c0_38], %85 {strides = array<i32>} : memref<8x128xf32, #tpu.memory_space<vmem>>, vector<8x128xf32>,
    } else {
    }
    %c10_i32 = arith.constant 10 : i32
    return
  }
  func.func @transform_0(%arg0: i32, %arg1: memref<1xi32, #tpu.memory_space<smem>>) -> (i32, i32) {
    %c0_i32 = arith.constant 0 : i32
    %c0_i32_0 = arith.constant 0 : i32
    return %arg0, %c0_i32 : i32, i32
  }
  func.func @transform_1(%arg0: i32, %arg1: memref<1xi32, #tpu.memory_space<smem>>) -> (i32, i32, i32) {
    %c0_i32 = arith.constant 0 : i32
    %c0_i32_0 = arith.constant 0 : i32
    %c0_i32_1 = arith.constant 0 : i32
    return %c0_i32, %arg0, %c0_i32_0 : i32, i32, i32
  }
  func.func @transform_2(%arg0: i32, %arg1: memref<1xi32, #tpu.memory_space<smem>>) -> (i32, i32) {
    %c0_i32 = arith.constant 0 : i32
    %c0_i32_0 = arith.constant 0 : i32
    %c0_i32_1 = arith.constant 0 : i32
    return %c0_i32, %c0_i32_0 : i32, i32
  }
  func.func @transform_3(%arg0: i32, %arg1: memref<1xi32, #tpu.memory_space<smem>>) -> (i32, i32) {
    %c0_i32 = arith.constant 0 : i32
    %c0_i32_0 = arith.constant 0 : i32
    %c0_i32_1 = arith.constant 0 : i32
    return %c0_i32, %c0_i32_0 : i32, i32
  }
  func.func @transform_4(%arg0: i32, %arg1: memref<1xi32, #tpu.memory_space<smem>>) -> (i32, i32) {
    %c0_i32 = arith.constant 0 : i32
    %c0_i32_0 = arith.constant 0 : i32
    %c0_i32_1 = arith.constant 0 : i32
    return %c0_i32, %c0_i32_0 : i32, i32
  }
  func.func @transform_5(%arg0: i32, %arg1: memref<1xi32, #tpu.memory_space<smem>>) -> (i32, i32) {
    %c0_i32 = arith.constant 0 : i32
    %c0_i32_0 = arith.constant 0 : i32
    %c0_i32_1 = arith.constant 0 : i32
    return %c0_i32, %c0_i32_0 : i32, i32
  }
  func.func @transform_6(%arg0: i32, %arg1: memref<1xi32, #tpu.memory_space<smem>>) -> (i32, i32) {
    %c0_i32 = arith.constant 0 : i32
    %c0_i32_0 = arith.constant 0 : i32
    return %arg0, %c0_i32 : i32, i32
  }
}

</mosaic_0001>

<llo_original>
// kernel: tpu_custom_call.1
$region0: #{tpu_custom_call.1}
  #allocation0 [shape = 'u32[]', space=smem, size = 0x4, offset = 0x4, fixed_abs, tag = 'smem constant byte address 0x4 - core index']
  #allocation1 [shape = 'u32[72,128]{1,0:T(1,128)}', space=vmem, size = 0x9000, scoped, tag = 'internal scratch']
  #allocation2 [shape = 'f32[10,8,384]{2,1,0:T(8,128)}', space=vmem, size = 0x1e000, scoped, tag = 'scratch operand']
  #allocation3 [shape = 's32[1]{0}', space=sflag, size = 0x4, scoped, tag = 'scoped memory for tpu_custom_call.1']
  #allocation4 [shape = 's32[1]{0:T(128)S(6)}', space=smem, size = 0x200, scoped, tag = 'prefetched SMEM operand 0']
  %s0 = inlined_call_operand.<no memory space> [shape: s32[1], index: 0, kind: input, shape index: {}]
  %s1 = inlined_call_operand.vmem [shape: s32[8,1], index: 1, kind: input, shape index: {}]
  %s2 = inlined_call_operand.hbm [shape: f32[10,8,128], index: 2, kind: input, shape index: {}]
  %s3 = inlined_call_operand.hbm [shape: bf16[128,384], index: 3, kind: input, shape index: {}]
  %s4 = inlined_call_operand.vmem [shape: f32[1,384], index: 4, kind: input, shape index: {}]
  %s5 = inlined_call_operand.hbm [shape: bf16[128,384], index: 5, kind: input, shape index: {}]
  %s6 = inlined_call_operand.vmem [shape: f32[1,384], index: 6, kind: input, shape index: {}]
  %s7 = inlined_call_operand.hbm [shape: f32[8,128], index: 7, kind: output, shape index: {}]
  %s8 = sld [smem:[#allocation0]]
  $region86: #{tpu_custom_call.1} parent=0
    _
  %s10 = ssub.s32 1, %s8
  %s11 = scalar_select 0, %s10, %s8
  %12 = sst [smem:[#allocation4]] %s0
  $region1: #{tpu_custom_call.1} parent=0
    #allocation5 [shape = 'u8[40960]{0}', space=vmem, size = 0xa000, scoped, tag = 'input window, operand 2, single buffered']
    #allocation6 [shape = 's32[1]{0}', space=sflag, size = 0x4, scoped, tag = 'scoped memory for tpu_custom_call.1']
    #allocation7 [shape = 's32[1]{0}', space=sflag, size = 0x4, scoped, tag = 'scoped memory for tpu_custom_call.1']
    #allocation8 [shape = 'u8[98304]{0}', space=vmem, size = 0x18000, scoped, tag = 'input window, operand 3, single buffered']
    #allocation9 [shape = 's32[1]{0}', space=sflag, size = 0x4, scoped, tag = 'scoped memory for tpu_custom_call.1']
    #allocation10 [shape = 'u8[98304]{0}', space=vmem, size = 0x18000, scoped, tag = 'input window, operand 5, single buffered']
    #allocation11 [shape = 'u8[4096]{0}', space=vmem, size = 0x1000, scoped, tag = 'output window, operand 0, single buffered']
    %13 = vsyncpa [#allocation6], 0
    %14 = vsyncpa [#allocation9], 0
    %15 = vsyncpa [#allocation7], 0
    // Predicated region
    $region2: #{tpu_custom_call.1} parent=1 // pred_check
      _
    $region3: #{tpu_custom_call.1} parent=1 // pred_check_branch
      %17 = sbr.rel (0) target = $region5
    $region4: #{tpu_custom_call.1} parent=1 // pred_region
      _
    $region5: #{tpu_custom_call.1} parent=1 // pred_fallthru
      _
    // Predicated region
    $region6: #{tpu_custom_call.1} parent=1 // pred_check
      _
    $region7: #{tpu_custom_call.1} parent=1 // pred_check_branch
      %19 = sbr.rel (0) target = $region9
    $region8: #{tpu_custom_call.1} parent=1 // pred_region
      %21 = vsyncadd [#allocation6], 0
      %s22 = sshll.u32 %s2, 4
      %s23 = int_to_ptr.hbm [resolvable:$true] %s22
      %s24 = sshll.u32 [#allocation5], 4
      %s25 = int_to_ptr.vmem [resolvable:$true] %s24
      %30 = dma.hbm_to_vmem [thread:$0]  %s23, 1280, %s25, [#allocation6], 128, 128, 8
    $region9: #{tpu_custom_call.1} parent=1 // pred_fallthru
      _
    // Predicated region
    $region10: #{tpu_custom_call.1} parent=1 // pred_check
      _
    $region11: #{tpu_custom_call.1} parent=1 // pred_check_branch
      %32 = sbr.rel (0) target = $region13
    $region12: #{tpu_custom_call.1} parent=1 // pred_region
      %34 = vsyncadd [#allocation9], 0
      %s35 = sshll.u32 %s3, 4
      %s36 = int_to_ptr.hbm [resolvable:$true] %s35
      %s37 = sshll.u32 [#allocation8], 4
      %s38 = int_to_ptr.vmem [resolvable:$true] %s37
      %43 = dma.hbm_to_vmem [thread:$0]  %s36, 3072, %s38, [#allocation9], 192, 192, 12
    $region13: #{tpu_custom_call.1} parent=1 // pred_fallthru
      _
    // Predicated region
    $region14: #{tpu_custom_call.1} parent=1 // pred_check
      _
    $region15: #{tpu_custom_call.1} parent=1 // pred_check_branch
      %45 = sbr.rel (0) target = $region17
    $region16: #{tpu_custom_call.1} parent=1 // pred_region
      _
    $region17: #{tpu_custom_call.1} parent=1 // pred_fallthru
      _
    // Predicated region
    $region18: #{tpu_custom_call.1} parent=1 // pred_check
      _
    $region19: #{tpu_custom_call.1} parent=1 // pred_check_branch
      %47 = sbr.rel (0) target = $region21
    $region20: #{tpu_custom_call.1} parent=1 // pred_region
      %49 = vsyncadd [#allocation9], 0
      %s50 = sshll.u32 %s5, 4
      %s51 = int_to_ptr.hbm [resolvable:$true] %s50
      %s52 = sshll.u32 [#allocation10], 4
      %s53 = int_to_ptr.vmem [resolvable:$true] %s52
      %58 = dma.hbm_to_vmem [thread:$0]  %s51, 3072, %s53, [#allocation9], 192, 192, 12
    $region21: #{tpu_custom_call.1} parent=1 // pred_fallthru
      _
    // Predicated region
    $region22: #{tpu_custom_call.1} parent=1 // pred_check
      _
    $region23: #{tpu_custom_call.1} parent=1 // pred_check_branch
      %60 = sbr.rel (0) target = $region25
    $region24: #{tpu_custom_call.1} parent=1 // pred_region
      _
    $region25: #{tpu_custom_call.1} parent=1 // pred_fallthru
      _
    // Predicated region
    $region26: #{tpu_custom_call.1} parent=1 // pred_check
      _
    $region27: #{tpu_custom_call.1} parent=1 // pred_check_branch
      %62 = sbr.rel (0) target = $region29
    $region28: #{tpu_custom_call.1} parent=1 // pred_region
      %64 = dma.done [#allocation6], 1280
    $region29: #{tpu_custom_call.1} parent=1 // pred_fallthru
      _
    // Predicated region
    $region30: #{tpu_custom_call.1} parent=1 // pred_check
      _
    $region31: #{tpu_custom_call.1} parent=1 // pred_check_branch
      %66 = sbr.rel (0) target = $region33
    $region32: #{tpu_custom_call.1} parent=1 // pred_region
      %68 = dma.done [#allocation9], 3072
    $region33: #{tpu_custom_call.1} parent=1 // pred_fallthru
      _
    // Predicated region
    $region34: #{tpu_custom_call.1} parent=1 // pred_check
      _
    $region35: #{tpu_custom_call.1} parent=1 // pred_check_branch
      %70 = sbr.rel (0) target = $region37
    $region36: #{tpu_custom_call.1} parent=1 // pred_region
      %72 = dma.done [#allocation9], 3072
    $region37: #{tpu_custom_call.1} parent=1 // pred_fallthru
      _
    %v73 = vld [vmem:[#allocation5] sm:$0xff]
    %v74 = vld [vmem:[#allocation5 + $0x8] sm:$0xff]
    %v75 = vld [vmem:[#allocation5 + $0x10] sm:$0xff]
    %v76 = vld [vmem:[#allocation5 + $0x18] sm:$0xff]
    %v77 = vld [vmem:[#allocation5 + $0x20] sm:$0xff]
    %v78 = vld [vmem:[#allocation5 + $0x28] sm:$0xff]
    %v79 = vld [vmem:[#allocation5 + $0x30] sm:$0xff]
    %v80 = vld [vmem:[#allocation5 + $0x38] sm:$0xff]
    %v81 = vld [vmem:[#allocation5 + $0x40] sm:$0xff]
    %v82 = vld [vmem:[#allocation5 + $0x48] sm:$0xff]
    %v83 = vpack.c.bf16 %v74, %v73
    %v84 = vpack.c.bf16 %v76, %v75
    %v85 = vpack.c.bf16 %v78, %v77
    %v86 = vpack.c.bf16 %v80, %v79
    %v87 = vpack.c.bf16 %v82, %v81
    %v88 = vld [vmem:[#allocation8] sm:$0xff]
    %v89 = vld [vmem:[#allocation8 + $0x8] sm:$0xf]
    %v90 = vld [vmem:[#allocation8 + $0xc] sm:$0xff]
    %v91 = vld [vmem:[#allocation8 + $0x14] sm:$0xf]
    %v92 = vld [vmem:[#allocation8 + $0x18] sm:$0xff]
    %v93 = vld [vmem:[#allocation8 + $0x20] sm:$0xf]
    %v94 = vld [vmem:[#allocation8 + $0x24] sm:$0xff]
    %v95 = vld [vmem:[#allocation8 + $0x2c] sm:$0xf]
    %v96 = vld [vmem:[#allocation8 + $0x30] sm:$0xff]
    %v97 = vld [vmem:[#allocation8 + $0x38] sm:$0xf]
    %v98 = vld [vmem:[#allocation8 + $0x3c] sm:$0xff]
    %v99 = vld [vmem:[#allocation8 + $0x44] sm:$0xf]
    %v100 = vld [vmem:[#allocation8 + $0x48] sm:$0xff]
    %v101 = vld [vmem:[#allocation8 + $0x50] sm:$0xf]
    %v102 = vld [vmem:[#allocation8 + $0x54] sm:$0xff]
    %v103 = vld [vmem:[#allocation8 + $0x5c] sm:$0xf]
    %v104 = vld [vmem:[#allocation8 + $0x60] sm:$0xff]
    %v105 = vld [vmem:[#allocation8 + $0x68] sm:$0xf]
    %v106 = vld [vmem:[#allocation8 + $0x6c] sm:$0xff]
    %v107 = vld [vmem:[#allocation8 + $0x74] sm:$0xf]
    %v108 = vld [vmem:[#allocation8 + $0x78] sm:$0xff]
    %v109 = vld [vmem:[#allocation8 + $0x80] sm:$0xf]
    %v110 = vld [vmem:[#allocation8 + $0x84] sm:$0xff]
    %v111 = vld [vmem:[#allocation8 + $0x8c] sm:$0xf]
    %v112 = vld [vmem:[#allocation8 + $0x90] sm:$0xff]
    %v113 = vld [vmem:[#allocation8 + $0x98] sm:$0xf]
    %v114 = vld [vmem:[#allocation8 + $0x9c] sm:$0xff]
    %v115 = vld [vmem:[#allocation8 + $0xa4] sm:$0xf]
    %v116 = vld [vmem:[#allocation8 + $0xa8] sm:$0xff]
    %v117 = vld [vmem:[#allocation8 + $0xb0] sm:$0xf]
    %v118 = vld [vmem:[#allocation8 + $0xb4] sm:$0xff]
    %v119 = vld [vmem:[#allocation8 + $0xbc] sm:$0xf]
    %v120 = vld [vmem:[%s4] sm:$0x7]
    %v122 = vperm.slane %v120, 0
    %v123 = vperm.slane %v120, 1
    %v124 = vperm.slane %v120, 2
    %v160 = vunpack.c.l.b16 %v88
    %v161 = vunpack.c.h.b16 %v88
    %v162 = vunpack.c.l.b16 %v89
    %v163 = vunpack.c.l.b16 %v90
    %v164 = vunpack.c.h.b16 %v90
    %v165 = vunpack.c.l.b16 %v91
    %v166 = vunpack.c.l.b16 %v92
    %v167 = vunpack.c.h.b16 %v92
    %v168 = vunpack.c.l.b16 %v93
    %v169 = vunpack.c.l.b16 %v94
    %v170 = vunpack.c.h.b16 %v94
    %v171 = vunpack.c.l.b16 %v95
    %v172 = vunpack.c.l.b16 %v96
    %v173 = vunpack.c.h.b16 %v96
    %v174 = vunpack.c.l.b16 %v97
    %v175 = vunpack.c.l.b16 %v98
    %v176 = vunpack.c.h.b16 %v98
    %v177 = vunpack.c.l.b16 %v99
    %v178 = vunpack.c.l.b16 %v100
    %v179 = vunpack.c.h.b16 %v100
    %v180 = vunpack.c.l.b16 %v101
    %v181 = vunpack.c.l.b16 %v102
    %v182 = vunpack.c.h.b16 %v102
    %v183 = vunpack.c.l.b16 %v103
    %v184 = vunpack.c.l.b16 %v104
    %v185 = vunpack.c.h.b16 %v104
    %v186 = vunpack.c.l.b16 %v105
    %v187 = vunpack.c.l.b16 %v106
    %v188 = vunpack.c.h.b16 %v106
    %v189 = vunpack.c.l.b16 %v107
    %v190 = vunpack.c.l.b16 %v108
    %v191 = vunpack.c.h.b16 %v108
    %v192 = vunpack.c.l.b16 %v109
    %v193 = vunpack.c.l.b16 %v110
    %v194 = vunpack.c.h.b16 %v110
    %v195 = vunpack.c.l.b16 %v111
    %v196 = vunpack.c.l.b16 %v112
    %v197 = vunpack.c.h.b16 %v112
    %v198 = vunpack.c.l.b16 %v113
    %v199 = vunpack.c.l.b16 %v114
    %v200 = vunpack.c.h.b16 %v114
    %v201 = vunpack.c.l.b16 %v115
    %v202 = vunpack.c.l.b16 %v116
    %v203 = vunpack.c.h.b16 %v116
    %v204 = vunpack.c.l.b16 %v117
    %v205 = vunpack.c.l.b16 %v118
    %v206 = vunpack.c.h.b16 %v118
    %v207 = vunpack.c.l.b16 %v119
    %v208 = vpack.c.b16 %v163, %v160
    %v209 = vpack.c.b16 %v164, %v161
    %v210 = vpack.c.b16 %v165, %v162
    %v211 = vpack.c.b16 %v169, %v166
    %v212 = vpack.c.b16 %v170, %v167
    %v213 = vpack.c.b16 %v171, %v168
    %v214 = vpack.c.b16 %v175, %v172
    %v215 = vpack.c.b16 %v176, %v173
    %v216 = vpack.c.b16 %v177, %v174
    %v217 = vpack.c.b16 %v181, %v178
    %v218 = vpack.c.b16 %v182, %v179
    %v219 = vpack.c.b16 %v183, %v180
    %v220 = vpack.c.b16 %v187, %v184
    %v221 = vpack.c.b16 %v188, %v185
    %v222 = vpack.c.b16 %v189, %v186
    %v223 = vpack.c.b16 %v193, %v190
    %v224 = vpack.c.b16 %v194, %v191
    %v225 = vpack.c.b16 %v195, %v192
    %v226 = vpack.c.b16 %v199, %v196
    %v227 = vpack.c.b16 %v200, %v197
    %v228 = vpack.c.b16 %v201, %v198
    %v229 = vpack.c.b16 %v205, %v202
    %v230 = vpack.c.b16 %v206, %v203
    %v231 = vpack.c.b16 %v207, %v204
    %256 = vmatpush.bf16.msra.mxu0 %v229
    %257 = vmatpush.bf16.msra.mxu0 %v226
    %258 = vmatpush.bf16.msra.mxu0 %v223
    %259 = vmatpush.bf16.msra.mxu0 %v220
    %260 = vmatpush.bf16.msra.mxu0 %v217
    %261 = vmatpush.bf16.msra.mxu0 %v214
    %262 = vmatpush.bf16.msra.mxu0 %v211
    %263 = vmatpush.bf16.msra.mxu0 %v208
    %264 = vmatmul.bf16.gmra.mxu0 %v83
    %v265 = vpop.f32.mrf.mxu0
    %v266 = vadd.f32 %v122, %v265
    %v267 = vpop.f32.mrf.mxu0
    %v268 = vadd.f32 %v122, %v267
    %269 = vmatmul.bf16.gmra.mxu0 %v84
    %v270 = vpop.f32.mrf.mxu0
    %v271 = vadd.f32 %v122, %v270
    %v272 = vpop.f32.mrf.mxu0
    %v273 = vadd.f32 %v122, %v272
    %274 = vmatmul.bf16.gmra.mxu0 %v85
    %v275 = vpop.f32.mrf.mxu0
    %v276 = vadd.f32 %v122, %v275
    %v277 = vpop.f32.mrf.mxu0
    %v278 = vadd.f32 %v122, %v277
    %279 = vmatmul.bf16.gmra.mxu0 %v86
    %v280 = vpop.f32.mrf.mxu0
    %v281 = vadd.f32 %v122, %v280
    %v282 = vpop.f32.mrf.mxu0
    %v283 = vadd.f32 %v122, %v282
    %284 = vmatmul.bf16.gmra.mxu0 %v87
    %v285 = vpop.f32.mrf.mxu0
    %v286 = vadd.f32 %v122, %v285
    %v287 = vpop.f32.mrf.mxu0
    %v288 = vadd.f32 %v122, %v287
    %289 = vdwg.mxu0
    %290 = vmatpush.bf16.msra.mxu0 %v230
    %291 = vmatpush.bf16.msra.mxu0 %v227
    %292 = vmatpush.bf16.msra.mxu0 %v224
    %293 = vmatpush.bf16.msra.mxu0 %v221
    %294 = vmatpush.bf16.msra.mxu0 %v218
    %295 = vmatpush.bf16.msra.mxu0 %v215
    %296 = vmatpush.bf16.msra.mxu0 %v212
    %297 = vmatpush.bf16.msra.mxu0 %v209
    %298 = vmatmul.bf16.gmra.mxu0 %v83
    %v299 = vpop.f32.mrf.mxu0
    %v300 = vadd.f32 %v123, %v299
    %v301 = vpop.f32.mrf.mxu0
    %v302 = vadd.f32 %v123, %v301
    %303 = vmatmul.bf16.gmra.mxu0 %v84
    %v304 = vpop.f32.mrf.mxu0
    %v305 = vadd.f32 %v123, %v304
    %v306 = vpop.f32.mrf.mxu0
    %v307 = vadd.f32 %v123, %v306
    %308 = vmatmul.bf16.gmra.mxu0 %v85
    %v309 = vpop.f32.mrf.mxu0
    %v310 = vadd.f32 %v123, %v309
    %v311 = vpop.f32.mrf.mxu0
    %v312 = vadd.f32 %v123, %v311
    %313 = vmatmul.bf16.gmra.mxu0 %v86
    %v314 = vpop.f32.mrf.mxu0
    %v315 = vadd.f32 %v123, %v314
    %v316 = vpop.f32.mrf.mxu0
    %v317 = vadd.f32 %v123, %v316
    %318 = vmatmul.bf16.gmra.mxu0 %v87
    %v319 = vpop.f32.mrf.mxu0
    %v320 = vadd.f32 %v123, %v319
    %v321 = vpop.f32.mrf.mxu0
    %v322 = vadd.f32 %v123, %v321
    %323 = vdwg.mxu0
    %324 = vmatpush.bf16.msra.mxu0 %v231
    %325 = vmatpush.bf16.msra.mxu0 %v228
    %326 = vmatpush.bf16.msra.mxu0 %v225
    %327 = vmatpush.bf16.msra.mxu0 %v222
    %328 = vmatpush.bf16.msra.mxu0 %v219
    %329 = vmatpush.bf16.msra.mxu0 %v216
    %330 = vmatpush.bf16.msra.mxu0 %v213
    %331 = vmatpush.bf16.msra.mxu0 %v210
    %332 = vmatmul.bf16.gmra.mxu0 %v83
    %v333 = vpop.f32.mrf.mxu0
    %v334 = vadd.f32 %v124, %v333
    %v335 = vpop.f32.mrf.mxu0
    %v336 = vadd.f32 %v124, %v335
    %337 = vmatmul.bf16.gmra.mxu0 %v84
    %v338 = vpop.f32.mrf.mxu0
    %v339 = vadd.f32 %v124, %v338
    %v340 = vpop.f32.mrf.mxu0
    %v341 = vadd.f32 %v124, %v340
    %342 = vmatmul.bf16.gmra.mxu0 %v85
    %v343 = vpop.f32.mrf.mxu0
    %v344 = vadd.f32 %v124, %v343
    %v345 = vpop.f32.mrf.mxu0
    %v346 = vadd.f32 %v124, %v345
    %347 = vmatmul.bf16.gmra.mxu0 %v86
    %v348 = vpop.f32.mrf.mxu0
    %v349 = vadd.f32 %v124, %v348
    %v350 = vpop.f32.mrf.mxu0
    %v351 = vadd.f32 %v124, %v350
    %352 = vmatmul.bf16.gmra.mxu0 %v87
    %v353 = vpop.f32.mrf.mxu0
    %v354 = vadd.f32 %v124, %v353
    %v355 = vpop.f32.mrf.mxu0
    %v356 = vadd.f32 %v124, %v355
    %357 = vdwg.mxu0
    %358 = vst [vmem:[#allocation2] sm:$0xff] %v266
    %359 = vst [vmem:[#allocation2 + $0x8] sm:$0xff] %v300
    %360 = vst [vmem:[#allocation2 + $0x10] sm:$0xff] %v334
    %361 = vst [vmem:[#allocation2 + $0x18] sm:$0xff] %v268
    %362 = vst [vmem:[#allocation2 + $0x20] sm:$0xff] %v302
    %363 = vst [vmem:[#allocation2 + $0x28] sm:$0xff] %v336
    %364 = vst [vmem:[#allocation2 + $0x30] sm:$0xff] %v271
    %365 = vst [vmem:[#allocation2 + $0x38] sm:$0xff] %v305
    %366 = vst [vmem:[#allocation2 + $0x40] sm:$0xff] %v339
    %367 = vst [vmem:[#allocation2 + $0x48] sm:$0xff] %v273
    %368 = vst [vmem:[#allocation2 + $0x50] sm:$0xff] %v307
    %369 = vst [vmem:[#allocation2 + $0x58] sm:$0xff] %v341
    %370 = vst [vmem:[#allocation2 + $0x60] sm:$0xff] %v276
    %371 = vst [vmem:[#allocation2 + $0x68] sm:$0xff] %v310
    %372 = vst [vmem:[#allocation2 + $0x70] sm:$0xff] %v344
    %373 = vst [vmem:[#allocation2 + $0x78] sm:$0xff] %v278
    %374 = vst [vmem:[#allocation2 + $0x80] sm:$0xff] %v312
    %375 = vst [vmem:[#allocation2 + $0x88] sm:$0xff] %v346
    %376 = vst [vmem:[#allocation2 + $0x90] sm:$0xff] %v281
    %377 = vst [vmem:[#allocation2 + $0x98] sm:$0xff] %v315
    %378 = vst [vmem:[#allocation2 + $0xa0] sm:$0xff] %v349
    %379 = vst [vmem:[#allocation2 + $0xa8] sm:$0xff] %v283
    %380 = vst [vmem:[#allocation2 + $0xb0] sm:$0xff] %v317
    %381 = vst [vmem:[#allocation2 + $0xb8] sm:$0xff] %v351
    %382 = vst [vmem:[#allocation2 + $0xc0] sm:$0xff] %v286
    %383 = vst [vmem:[#allocation2 + $0xc8] sm:$0xff] %v320
    %384 = vst [vmem:[#allocation2 + $0xd0] sm:$0xff] %v354
    %385 = vst [vmem:[#allocation2 + $0xd8] sm:$0xff] %v288
    %386 = vst [vmem:[#allocation2 + $0xe0] sm:$0xff] %v322
    %387 = vst [vmem:[#allocation2 + $0xe8] sm:$0xff] %v356
    %v388 = vld [vmem:[%s6] sm:$0x7]
    %v390 = vperm.slane %v388, 0
    %v391 = vperm.slane %v388, 1
    %v392 = vperm.slane %v388, 2
    %v396 = vld [vmem:[%s1] sm:$0xff]
    %s397 = sld [smem:[#allocation4]]
    %398 = vst [vmem:[#allocation11] sm:$0xff] 0.0
    %p399 = scmp.gt.s32.totalorder %s397, 0
    // Predicated region
    $region38: #{tpu_custom_call.1} parent=1 // pred_check
      %p400 = pneg %p399
    $region39: #{tpu_custom_call.1} parent=1 // pred_check_branch
      %402 = sbr.rel (%p400) target = $region41
    $region40: #{tpu_custom_call.1} parent=1 // pred_region
      %v403 = vld [vmem:[#allocation11] sm:$0xff]
      %v404 = vld [vmem:[#allocation2] sm:$0xff]
      %v405 = vld [vmem:[#allocation2 + $0x8] sm:$0xff]
      %v406 = vld [vmem:[#allocation2 + $0x10] sm:$0xff]
      %v407 = vpack.c.bf16 %v403, %v403
      %v408 = vld [vmem:[#allocation10] sm:$0xff]
      %v409 = vld [vmem:[#allocation10 + $0x8] sm:$0xf]
      %v410 = vld [vmem:[#allocation10 + $0xc] sm:$0xff]
      %v411 = vld [vmem:[#allocation10 + $0x14] sm:$0xf]
      %v412 = vld [vmem:[#allocation10 + $0x18] sm:$0xff]
      %v413 = vld [vmem:[#allocation10 + $0x20] sm:$0xf]
      %v414 = vld [vmem:[#allocation10 + $0x24] sm:$0xff]
      %v415 = vld [vmem:[#allocation10 + $0x2c] sm:$0xf]
      %v416 = vld [vmem:[#allocation10 + $0x30] sm:$0xff]
      %v417 = vld [vmem:[#allocation10 + $0x38] sm:$0xf]
      %v418 = vld [vmem:[#allocation10 + $0x3c] sm:$0xff]
      %v419 = vld [vmem:[#allocation10 + $0x44] sm:$0xf]
      %v420 = vld [vmem:[#allocation10 + $0x48] sm:$0xff]
      %v421 = vld [vmem:[#allocation10 + $0x50] sm:$0xf]
      %v422 = vld [vmem:[#allocation10 + $0x54] sm:$0xff]
      %v423 = vld [vmem:[#allocation10 + $0x5c] sm:$0xf]
      %v424 = vld [vmem:[#allocation10 + $0x60] sm:$0xff]
      %v425 = vld [vmem:[#allocation10 + $0x68] sm:$0xf]
      %v426 = vld [vmem:[#allocation10 + $0x6c] sm:$0xff]
      %v427 = vld [vmem:[#allocation10 + $0x74] sm:$0xf]
      %v428 = vld [vmem:[#allocation10 + $0x78] sm:$0xff]
      %v429 = vld [vmem:[#allocation10 + $0x80] sm:$0xf]
      %v430 = vld [vmem:[#allocation10 + $0x84] sm:$0xff]
      %v431 = vld [vmem:[#allocation10 + $0x8c] sm:$0xf]
      %v432 = vld [vmem:[#allocation10 + $0x90] sm:$0xff]
      %v433 = vld [vmem:[#allocation10 + $0x98] sm:$0xf]
      %v434 = vld [vmem:[#allocation10 + $0x9c] sm:$0xff]
      %v435 = vld [vmem:[#allocation10 + $0xa4] sm:$0xf]
      %v436 = vld [vmem:[#allocation10 + $0xa8] sm:$0xff]
      %v437 = vld [vmem:[#allocation10 + $0xb0] sm:$0xf]
      %v438 = vld [vmem:[#allocation10 + $0xb4] sm:$0xff]
      %v439 = vld [vmem:[#allocation10 + $0xbc] sm:$0xf]
      %v472 = vunpack.c.l.b16 %v408
      %v473 = vunpack.c.h.b16 %v408
      %v474 = vunpack.c.l.b16 %v409
      %v475 = vunpack.c.l.b16 %v410
      %v476 = vunpack.c.h.b16 %v410
      %v477 = vunpack.c.l.b16 %v411
      %v478 = vunpack.c.l.b16 %v412
      %v479 = vunpack.c.h.b16 %v412
      %v480 = vunpack.c.l.b16 %v413
      %v481 = vunpack.c.l.b16 %v414
      %v482 = vunpack.c.h.b16 %v414
      %v483 = vunpack.c.l.b16 %v415
      %v484 = vunpack.c.l.b16 %v416
      %v485 = vunpack.c.h.b16 %v416
      %v486 = vunpack.c.l.b16 %v417
      %v487 = vunpack.c.l.b16 %v418
      %v488 = vunpack.c.h.b16 %v418
      %v489 = vunpack.c.l.b16 %v419
      %v490 = vunpack.c.l.b16 %v420
      %v491 = vunpack.c.h.b16 %v420
      %v492 = vunpack.c.l.b16 %v421
      %v493 = vunpack.c.l.b16 %v422
      %v494 = vunpack.c.h.b16 %v422
      %v495 = vunpack.c.l.b16 %v423
      %v496 = vunpack.c.l.b16 %v424
      %v497 = vunpack.c.h.b16 %v424
      %v498 = vunpack.c.l.b16 %v425
      %v499 = vunpack.c.l.b16 %v426
      %v500 = vunpack.c.h.b16 %v426
      %v501 = vunpack.c.l.b16 %v427
      %v502 = vunpack.c.l.b16 %v428
      %v503 = vunpack.c.h.b16 %v428
      %v504 = vunpack.c.l.b16 %v429
      %v505 = vunpack.c.l.b16 %v430
      %v506 = vunpack.c.h.b16 %v430
      %v507 = vunpack.c.l.b16 %v431
      %v508 = vunpack.c.l.b16 %v432
      %v509 = vunpack.c.h.b16 %v432
      %v510 = vunpack.c.l.b16 %v433
      %v511 = vunpack.c.l.b16 %v434
      %v512 = vunpack.c.h.b16 %v434
      %v513 = vunpack.c.l.b16 %v435
      %v514 = vunpack.c.l.b16 %v436
      %v515 = vunpack.c.h.b16 %v436
      %v516 = vunpack.c.l.b16 %v437
      %v517 = vunpack.c.l.b16 %v438
      %v518 = vunpack.c.h.b16 %v438
      %v519 = vunpack.c.l.b16 %v439
      %v520 = vpack.c.b16 %v475, %v472
      %v521 = vpack.c.b16 %v476, %v473
      %v522 = vpack.c.b16 %v477, %v474
      %v523 = vpack.c.b16 %v481, %v478
      %v524 = vpack.c.b16 %v482, %v479
      %v525 = vpack.c.b16 %v483, %v480
      %v526 = vpack.c.b16 %v487, %v484
      %v527 = vpack.c.b16 %v488, %v485
      %v528 = vpack.c.b16 %v489, %v486
      %v529 = vpack.c.b16 %v493, %v490
      %v530 = vpack.c.b16 %v494, %v491
      %v531 = vpack.c.b16 %v495, %v492
      %v532 = vpack.c.b16 %v499, %v496
      %v533 = vpack.c.b16 %v500, %v497
      %v534 = vpack.c.b16 %v501, %v498
      %v535 = vpack.c.b16 %v505, %v502
      %v536 = vpack.c.b16 %v506, %v503
      %v537 = vpack.c.b16 %v507, %v504
      %v538 = vpack.c.b16 %v511, %v508
      %v539 = vpack.c.b16 %v512, %v509
      %v540 = vpack.c.b16 %v513, %v510
      %v541 = vpack.c.b16 %v517, %v514
      %v542 = vpack.c.b16 %v518, %v515
      %v543 = vpack.c.b16 %v519, %v516
      %568 = vmatpush.bf16.msra.mxu0 %v541
      %569 = vmatpush.bf16.msra.mxu0 %v538
      %570 = vmatpush.bf16.msra.mxu0 %v535
      %571 = vmatpush.bf16.msra.mxu0 %v532
      %572 = vmatpush.bf16.msra.mxu0 %v529
      %573 = vmatpush.bf16.msra.mxu0 %v526
      %574 = vmatpush.bf16.msra.mxu0 %v523
      %575 = vmatpush.bf16.msra.mxu0 %v520
      %576 = vmatmul.bf16.gmra.mxu0 %v407
      %v577 = vpop.f32.mrf.mxu0
      %v578 = vadd.f32 %v390, %v577
      %v579 = vpop.f32.mrf.mxu0
      %580 = vdwg.mxu0
      %581 = vmatpush.bf16.msra.mxu0 %v542
      %582 = vmatpush.bf16.msra.mxu0 %v539
      %583 = vmatpush.bf16.msra.mxu0 %v536
      %584 = vmatpush.bf16.msra.mxu0 %v533
      %585 = vmatpush.bf16.msra.mxu0 %v530
      %586 = vmatpush.bf16.msra.mxu0 %v527
      %587 = vmatpush.bf16.msra.mxu0 %v524
      %588 = vmatpush.bf16.msra.mxu0 %v521
      %589 = vmatmul.bf16.gmra.mxu0 %v407
      %v590 = vpop.f32.mrf.mxu0
      %v591 = vadd.f32 %v391, %v590
      %v592 = vpop.f32.mrf.mxu0
      %593 = vdwg.mxu0
      %594 = vmatpush.bf16.msra.mxu0 %v543
      %595 = vmatpush.bf16.msra.mxu0 %v540
      %596 = vmatpush.bf16.msra.mxu0 %v537
      %597 = vmatpush.bf16.msra.mxu0 %v534
      %598 = vmatpush.bf16.msra.mxu0 %v531
      %599 = vmatpush.bf16.msra.mxu0 %v528
      %600 = vmatpush.bf16.msra.mxu0 %v525
      %601 = vmatpush.bf16.msra.mxu0 %v522
      %602 = vmatmul.bf16.gmra.mxu0 %v407
      %v603 = vpop.f32.mrf.mxu0
      %v604 = vadd.f32 %v392, %v603
      %v605 = vpop.f32.mrf.mxu0
      %606 = vdwg.mxu0
      %v607 = vadd.f32 %v404, %v578
      %v608 = vxor.u32 %v607, 2147483648
      %v609 = vmul.f32 %v608, 1.442695
      %v610 = vpow.pop %v609
      %v611 = vadd.f32 %v610, 1.0
      %v612 = vrcp.pop %v611
      %v613 = vmul.f32 %v611, %v612
      %v614 = vsub.f32 1.0, %v613
      %v615 = vmul.f32 %v612, %v614
      %v616 = vadd.f32 %v612, %v615
      %vm617 = vweird.f32 %v611
      %vm618 = vweird.f32 %v612
      %vm619 = vmor %vm617, %vm618
      %v620 = vsel %vm619, %v612, %v616
      %v621 = vand.u32 2147483647, %v611
      %vm622 = vcmp.eq.f32.partialorder %v621, 8.507059e+37
      %v623 = vand.u32 %v611, 2147483648
      %v624 = vor.u32 1.1754944e-38, %v623
      %v625 = vsel %vm622, %v624, %v620
      %v626 = vmul.f32 1.0, %v625
      %v627 = vadd.f32 %v405, %v591
      %v628 = vxor.u32 %v627, 2147483648
      %v629 = vmul.f32 %v628, 1.442695
      %v630 = vpow.pop %v629
      %v631 = vadd.f32 %v630, 1.0
      %v632 = vrcp.pop %v631
      %v633 = vmul.f32 %v631, %v632
      %v634 = vsub.f32 1.0, %v633
      %v635 = vmul.f32 %v632, %v634
      %v636 = vadd.f32 %v632, %v635
      %vm637 = vweird.f32 %v631
      %vm638 = vweird.f32 %v632
      %vm639 = vmor %vm637, %vm638
      %v640 = vsel %vm639, %v632, %v636
      %v641 = vand.u32 2147483647, %v631
      %vm642 = vcmp.eq.f32.partialorder %v641, 8.507059e+37
      %v643 = vand.u32 %v631, 2147483648
      %v644 = vor.u32 1.1754944e-38, %v643
      %v645 = vsel %vm642, %v644, %v640
      %v646 = vmul.f32 1.0, %v645
      %v647 = vmul.f32 %v626, %v604
      %v648 = vadd.f32 %v406, %v647
      %v649 = vtanh.pop %v648
      %v650 = vsub.f32 1.0, %v646
      %v651 = vmul.f32 %v650, %v649
      %v652 = vmul.f32 %v646, %v403
      %v653 = vadd.f32 %v651, %v652
      %vm654 = vcmp.gt.s32.totalorder %v396, 0
      %v655 = vsel %vm654, 1, 0
      %656 = vset.pattern.permute.xlu0 0
      %657 = vperm.xlu0 %656, %v655
      %v658 = vpop.permute.xlu0 %657
      %vm659 = vcmp.eq.s32.totalorder %v658, 1
      %v660 = vsel %vm659, %v653, %v403
      %661 = vst [vmem:[#allocation11] sm:$0xff] %v660
    $region41: #{tpu_custom_call.1} parent=1 // pred_fallthru
      _
    %p662 = scmp.gt.s32.totalorder %s397, 1
    // Predicated region
    $region42: #{tpu_custom_call.1} parent=1 // pred_check
      %p663 = pneg %p662
    $region43: #{tpu_custom_call.1} parent=1 // pred_check_branch
      %665 = sbr.rel (%p663) target = $region45
    $region44: #{tpu_custom_call.1} parent=1 // pred_region
      %v666 = vld [vmem:[#allocation11] sm:$0xff]
      %s667 = scalar_lea.vmem [#allocation2], 24
      %v668 = vld [vmem:[%s667] sm:$0xff]
      %v669 = vld [vmem:[%s667 + $0x8] sm:$0xff]
      %v670 = vld [vmem:[%s667 + $0x10] sm:$0xff]
      %v671 = vpack.c.bf16 %v666, %v666
      %v672 = vld [vmem:[#allocation10] sm:$0xff]
      %v673 = vld [vmem:[#allocation10 + $0x8] sm:$0xf]
      %v674 = vld [vmem:[#allocation10 + $0xc] sm:$0xff]
      %v675 = vld [vmem:[#allocation10 + $0x14] sm:$0xf]
      %v676 = vld [vmem:[#allocation10 + $0x18] sm:$0xff]
      %v677 = vld [vmem:[#allocation10 + $0x20] sm:$0xf]
      %v678 = vld [vmem:[#allocation10 + $0x24] sm:$0xff]
      %v679 = vld [vmem:[#allocation10 + $0x2c] sm:$0xf]
      %v680 = vld [vmem:[#allocation10 + $0x30] sm:$0xff]
      %v681 = vld [vmem:[#allocation10 + $0x38] sm:$0xf]
      %v682 = vld [vmem:[#allocation10 + $0x3c] sm:$0xff]
      %v683 = vld [vmem:[#allocation10 + $0x44] sm:$0xf]
      %v684 = vld [vmem:[#allocation10 + $0x48] sm:$0xff]
      %v685 = vld [vmem:[#allocation10 + $0x50] sm:$0xf]
      %v686 = vld [vmem:[#allocation10 + $0x54] sm:$0xff]
      %v687 = vld [vmem:[#allocation10 + $0x5c] sm:$0xf]
      %v688 = vld [vmem:[#allocation10 + $0x60] sm:$0xff]
      %v689 = vld [vmem:[#allocation10 + $0x68] sm:$0xf]
      %v690 = vld [vmem:[#allocation10 + $0x6c] sm:$0xff]
      %v691 = vld [vmem:[#allocation10 + $0x74] sm:$0xf]
      %v692 = vld [vmem:[#allocation10 + $0x78] sm:$0xff]
      %v693 = vld [vmem:[#allocation10 + $0x80] sm:$0xf]
      %v694 = vld [vmem:[#allocation10 + $0x84] sm:$0xff]
      %v695 = vld [vmem:[#allocation10 + $0x8c] sm:$0xf]
      %v696 = vld [vmem:[#allocation10 + $0x90] sm:$0xff]
      %v697 = vld [vmem:[#allocation10 + $0x98] sm:$0xf]
      %v698 = vld [vmem:[#allocation10 + $0x9c] sm:$0xff]
      %v699 = vld [vmem:[#allocation10 + $0xa4] sm:$0xf]
      %v700 = vld [vmem:[#allocation10 + $0xa8] sm:$0xff]
      %v701 = vld [vmem:[#allocation10 + $0xb0] sm:$0xf]
      %v702 = vld [vmem:[#allocation10 + $0xb4] sm:$0xff]
      %v703 = vld [vmem:[#allocation10 + $0xbc] sm:$0xf]
      %v736 = vunpack.c.l.b16 %v672
      %v737 = vunpack.c.h.b16 %v672
      %v738 = vunpack.c.l.b16 %v673
      %v739 = vunpack.c.l.b16 %v674
      %v740 = vunpack.c.h.b16 %v674
      %v741 = vunpack.c.l.b16 %v675
      %v742 = vunpack.c.l.b16 %v676
      %v743 = vunpack.c.h.b16 %v676
      %v744 = vunpack.c.l.b16 %v677
      %v745 = vunpack.c.l.b16 %v678
      %v746 = vunpack.c.h.b16 %v678
      %v747 = vunpack.c.l.b16 %v679
      %v748 = vunpack.c.l.b16 %v680
      %v749 = vunpack.c.h.b16 %v680
      %v750 = vunpack.c.l.b16 %v681
      %v751 = vunpack.c.l.b16 %v682
      %v752 = vunpack.c.h.b16 %v682
      %v753 = vunpack.c.l.b16 %v683
      %v754 = vunpack.c.l.b16 %v684
      %v755 = vunpack.c.h.b16 %v684
      %v756 = vunpack.c.l.b16 %v685
      %v757 = vunpack.c.l.b16 %v686
      %v758 = vunpack.c.h.b16 %v686
      %v759 = vunpack.c.l.b16 %v687
      %v760 = vunpack.c.l.b16 %v688
      %v761 = vunpack.c.h.b16 %v688
      %v762 = vunpack.c.l.b16 %v689
      %v763 = vunpack.c.l.b16 %v690
      %v764 = vunpack.c.h.b16 %v690
      %v765 = vunpack.c.l.b16 %v691
      %v766 = vunpack.c.l.b16 %v692
      %v767 = vunpack.c.h.b16 %v692
      %v768 = vunpack.c.l.b16 %v693
      %v769 = vunpack.c.l.b16 %v694
      %v770 = vunpack.c.h.b16 %v694
      %v771 = vunpack.c.l.b16 %v695
      %v772 = vunpack.c.l.b16 %v696
      %v773 = vunpack.c.h.b16 %v696
      %v774 = vunpack.c.l.b16 %v697
      %v775 = vunpack.c.l.b16 %v698
      %v776 = vunpack.c.h.b16 %v698
      %v777 = vunpack.c.l.b16 %v699
      %v778 = vunpack.c.l.b16 %v700
      %v779 = vunpack.c.h.b16 %v700
      %v780 = vunpack.c.l.b16 %v701
      %v781 = vunpack.c.l.b16 %v702
      %v782 = vunpack.c.h.b16 %v702
      %v783 = vunpack.c.l.b16 %v703
      %v784 = vpack.c.b16 %v739, %v736
      %v785 = vpack.c.b16 %v740, %v737
      %v786 = vpack.c.b16 %v741, %v738
      %v787 = vpack.c.b16 %v745, %v742
      %v788 = vpack.c.b16 %v746, %v743
      %v789 = vpack.c.b16 %v747, %v744
      %v790 = vpack.c.b16 %v751, %v748
      %v791 = vpack.c.b16 %v752, %v749
      %v792 = vpack.c.b16 %v753, %v750
      %v793 = vpack.c.b16 %v757, %v754
      %v794 = vpack.c.b16 %v758, %v755
      %v795 = vpack.c.b16 %v759, %v756
      %v796 = vpack.c.b16 %v763, %v760
      %v797 = vpack.c.b16 %v764, %v761
      %v798 = vpack.c.b16 %v765, %v762
      %v799 = vpack.c.b16 %v769, %v766
      %v800 = vpack.c.b16 %v770, %v767
      %v801 = vpack.c.b16 %v771, %v768
      %v802 = vpack.c.b16 %v775, %v772
      %v803 = vpack.c.b16 %v776, %v773
      %v804 = vpack.c.b16 %v777, %v774
      %v805 = vpack.c.b16 %v781, %v778
      %v806 = vpack.c.b16 %v782, %v779
      %v807 = vpack.c.b16 %v783, %v780
      %832 = vmatpush.bf16.msra.mxu0 %v805
      %833 = vmatpush.bf16.msra.mxu0 %v802
      %834 = vmatpush.bf16.msra.mxu0 %v799
      %835 = vmatpush.bf16.msra.mxu0 %v796
      %836 = vmatpush.bf16.msra.mxu0 %v793
      %837 = vmatpush.bf16.msra.mxu0 %v790
      %838 = vmatpush.bf16.msra.mxu0 %v787
      %839 = vmatpush.bf16.msra.mxu0 %v784
      %840 = vmatmul.bf16.gmra.mxu0 %v671
      %v841 = vpop.f32.mrf.mxu0
      %v842 = vadd.f32 %v390, %v841
      %v843 = vpop.f32.mrf.mxu0
      %844 = vdwg.mxu0
      %845 = vmatpush.bf16.msra.mxu0 %v806
      %846 = vmatpush.bf16.msra.mxu0 %v803
      %847 = vmatpush.bf16.msra.mxu0 %v800
      %848 = vmatpush.bf16.msra.mxu0 %v797
      %849 = vmatpush.bf16.msra.mxu0 %v794
      %850 = vmatpush.bf16.msra.mxu0 %v791
      %851 = vmatpush.bf16.msra.mxu0 %v788
      %852 = vmatpush.bf16.msra.mxu0 %v785
      %853 = vmatmul.bf16.gmra.mxu0 %v671
      %v854 = vpop.f32.mrf.mxu0
      %v855 = vadd.f32 %v391, %v854
      %v856 = vpop.f32.mrf.mxu0
      %857 = vdwg.mxu0
      %858 = vmatpush.bf16.msra.mxu0 %v807
      %859 = vmatpush.bf16.msra.mxu0 %v804
      %860 = vmatpush.bf16.msra.mxu0 %v801
      %861 = vmatpush.bf16.msra.mxu0 %v798
      %862 = vmatpush.bf16.msra.mxu0 %v795
      %863 = vmatpush.bf16.msra.mxu0 %v792
      %864 = vmatpush.bf16.msra.mxu0 %v789
      %865 = vmatpush.bf16.msra.mxu0 %v786
      %866 = vmatmul.bf16.gmra.mxu0 %v671
      %v867 = vpop.f32.mrf.mxu0
      %v868 = vadd.f32 %v392, %v867
      %v869 = vpop.f32.mrf.mxu0
      %870 = vdwg.mxu0
      %v871 = vadd.f32 %v668, %v842
      %v872 = vxor.u32 %v871, 2147483648
      %v873 = vmul.f32 %v872, 1.442695
      %v874 = vpow.pop %v873
      %v875 = vadd.f32 %v874, 1.0
      %v876 = vrcp.pop %v875
      %v877 = vmul.f32 %v875, %v876
      %v878 = vsub.f32 1.0, %v877
      %v879 = vmul.f32 %v876, %v878
      %v880 = vadd.f32 %v876, %v879
      %vm881 = vweird.f32 %v875
      %vm882 = vweird.f32 %v876
      %vm883 = vmor %vm881, %vm882
      %v884 = vsel %vm883, %v876, %v880
      %v885 = vand.u32 2147483647, %v875
      %vm886 = vcmp.eq.f32.partialorder %v885, 8.507059e+37
      %v887 = vand.u32 %v875, 2147483648
      %v888 = vor.u32 1.1754944e-38, %v887
      %v889 = vsel %vm886, %v888, %v884
      %v890 = vmul.f32 1.0, %v889
      %v891 = vadd.f32 %v669, %v855
      %v892 = vxor.u32 %v891, 2147483648
      %v893 = vmul.f32 %v892, 1.442695
      %v894 = vpow.pop %v893
      %v895 = vadd.f32 %v894, 1.0
      %v896 = vrcp.pop %v895
      %v897 = vmul.f32 %v895, %v896
      %v898 = vsub.f32 1.0, %v897
      %v899 = vmul.f32 %v896, %v898
      %v900 = vadd.f32 %v896, %v899
      %vm901 = vweird.f32 %v895
      %vm902 = vweird.f32 %v896
      %vm903 = vmor %vm901, %vm902
      %v904 = vsel %vm903, %v896, %v900
      %v905 = vand.u32 2147483647, %v895
      %vm906 = vcmp.eq.f32.partialorder %v905, 8.507059e+37
      %v907 = vand.u32 %v895, 2147483648
      %v908 = vor.u32 1.1754944e-38, %v907
      %v909 = vsel %vm906, %v908, %v904
      %v910 = vmul.f32 1.0, %v909
      %v911 = vmul.f32 %v890, %v868
      %v912 = vadd.f32 %v670, %v911
      %v913 = vtanh.pop %v912
      %v914 = vsub.f32 1.0, %v910
      %v915 = vmul.f32 %v914, %v913
      %v916 = vmul.f32 %v910, %v666
      %v917 = vadd.f32 %v915, %v916
      %vm918 = vcmp.gt.s32.totalorder %v396, 1
      %v919 = vsel %vm918, 1, 0
      %920 = vset.pattern.permute.xlu0 0
      %921 = vperm.xlu0 %920, %v919
      %v922 = vpop.permute.xlu0 %921
      %vm923 = vcmp.eq.s32.totalorder %v922, 1
      %v924 = vsel %vm923, %v917, %v666
      %925 = vst [vmem:[#allocation11] sm:$0xff] %v924
    $region45: #{tpu_custom_call.1} parent=1 // pred_fallthru
      _
    %p926 = scmp.gt.s32.totalorder %s397, 2
    // Predicated region
    $region46: #{tpu_custom_call.1} parent=1 // pred_check
      %p927 = pneg %p926
    $region47: #{tpu_custom_call.1} parent=1 // pred_check_branch
      %929 = sbr.rel (%p927) target = $region49
    $region48: #{tpu_custom_call.1} parent=1 // pred_region
      %v930 = vld [vmem:[#allocation11] sm:$0xff]
      %s931 = scalar_lea.vmem [#allocation2], 48
      %v932 = vld [vmem:[%s931] sm:$0xff]
      %v933 = vld [vmem:[%s931 + $0x8] sm:$0xff]
      %v934 = vld [vmem:[%s931 + $0x10] sm:$0xff]
      %v935 = vpack.c.bf16 %v930, %v930
      %v936 = vld [vmem:[#allocation10] sm:$0xff]
      %v937 = vld [vmem:[#allocation10 + $0x8] sm:$0xf]
      %v938 = vld [vmem:[#allocation10 + $0xc] sm:$0xff]
      %v939 = vld [vmem:[#allocation10 + $0x14] sm:$0xf]
      %v940 = vld [vmem:[#allocation10 + $0x18] sm:$0xff]
      %v941 = vld [vmem:[#allocation10 + $0x20] sm:$0xf]
      %v942 = vld [vmem:[#allocation10 + $0x24] sm:$0xff]
      %v943 = vld [vmem:[#allocation10 + $0x2c] sm:$0xf]
      %v944 = vld [vmem:[#allocation10 + $0x30] sm:$0xff]
      %v945 = vld [vmem:[#allocation10 + $0x38] sm:$0xf]
      %v946 = vld [vmem:[#allocation10 + $0x3c] sm:$0xff]
      %v947 = vld [vmem:[#allocation10 + $0x44] sm:$0xf]
      %v948 = vld [vmem:[#allocation10 + $0x48] sm:$0xff]
      %v949 = vld [vmem:[#allocation10 + $0x50] sm:$0xf]
      %v950 = vld [vmem:[#allocation10 + $0x54] sm:$0xff]
      %v951 = vld [vmem:[#allocation10 + $0x5c] sm:$0xf]
      %v952 = vld [vmem:[#allocation10 + $0x60] sm:$0xff]
      %v953 = vld [vmem:[#allocation10 + $0x68] sm:$0xf]
      %v954 = vld [vmem:[#allocation10 + $0x6c] sm:$0xff]
      %v955 = vld [vmem:[#allocation10 + $0x74] sm:$0xf]
      %v956 = vld [vmem:[#allocation10 + $0x78] sm:$0xff]
      %v957 = vld [vmem:[#allocation10 + $0x80] sm:$0xf]
      %v958 = vld [vmem:[#allocation10 + $0x84] sm:$0xff]
      %v959 = vld [vmem:[#allocation10 + $0x8c] sm:$0xf]
      %v960 = vld [vmem:[#allocation10 + $0x90] sm:$0xff]
      %v961 = vld [vmem:[#allocation10 + $0x98] sm:$0xf]
      %v962 = vld [vmem:[#allocation10 + $0x9c] sm:$0xff]
      %v963 = vld [vmem:[#allocation10 + $0xa4] sm:$0xf]
      %v964 = vld [vmem:[#allocation10 + $0xa8] sm:$0xff]
      %v965 = vld [vmem:[#allocation10 + $0xb0] sm:$0xf]
      %v966 = vld [vmem:[#allocation10 + $0xb4] sm:$0xff]
      %v967 = vld [vmem:[#allocation10 + $0xbc] sm:$0xf]
      %v1000 = vunpack.c.l.b16 %v936
      %v1001 = vunpack.c.h.b16 %v936
      %v1002 = vunpack.c.l.b16 %v937
      %v1003 = vunpack.c.l.b16 %v938
      %v1004 = vunpack.c.h.b16 %v938
      %v1005 = vunpack.c.l.b16 %v939
      %v1006 = vunpack.c.l.b16 %v940
      %v1007 = vunpack.c.h.b16 %v940
      %v1008 = vunpack.c.l.b16 %v941
      %v1009 = vunpack.c.l.b16 %v942
      %v1010 = vunpack.c.h.b16 %v942
      %v1011 = vunpack.c.l.b16 %v943
      %v1012 = vunpack.c.l.b16 %v944
      %v1013 = vunpack.c.h.b16 %v944
      %v1014 = vunpack.c.l.b16 %v945
      %v1015 = vunpack.c.l.b16 %v946
      %v1016 = vunpack.c.h.b16 %v946
      %v1017 = vunpack.c.l.b16 %v947
      %v1018 = vunpack.c.l.b16 %v948
      %v1019 = vunpack.c.h.b16 %v948
      %v1020 = vunpack.c.l.b16 %v949
      %v1021 = vunpack.c.l.b16 %v950
      %v1022 = vunpack.c.h.b16 %v950
      %v1023 = vunpack.c.l.b16 %v951
      %v1024 = vunpack.c.l.b16 %v952
      %v1025 = vunpack.c.h.b16 %v952
      %v1026 = vunpack.c.l.b16 %v953
      %v1027 = vunpack.c.l.b16 %v954
      %v1028 = vunpack.c.h.b16 %v954
      %v1029 = vunpack.c.l.b16 %v955
      %v1030 = vunpack.c.l.b16 %v956
      %v1031 = vunpack.c.h.b16 %v956
      %v1032 = vunpack.c.l.b16 %v957
      %v1033 = vunpack.c.l.b16 %v958
      %v1034 = vunpack.c.h.b16 %v958
      %v1035 = vunpack.c.l.b16 %v959
      %v1036 = vunpack.c.l.b16 %v960
      %v1037 = vunpack.c.h.b16 %v960
      %v1038 = vunpack.c.l.b16 %v961
      %v1039 = vunpack.c.l.b16 %v962
      %v1040 = vunpack.c.h.b16 %v962
      %v1041 = vunpack.c.l.b16 %v963
      %v1042 = vunpack.c.l.b16 %v964
      %v1043 = vunpack.c.h.b16 %v964
      %v1044 = vunpack.c.l.b16 %v965
      %v1045 = vunpack.c.l.b16 %v966
      %v1046 = vunpack.c.h.b16 %v966
      %v1047 = vunpack.c.l.b16 %v967
      %v1048 = vpack.c.b16 %v1003, %v1000
      %v1049 = vpack.c.b16 %v1004, %v1001
      %v1050 = vpack.c.b16 %v1005, %v1002
      %v1051 = vpack.c.b16 %v1009, %v1006
      %v1052 = vpack.c.b16 %v1010, %v1007
      %v1053 = vpack.c.b16 %v1011, %v1008
      %v1054 = vpack.c.b16 %v1015, %v1012
      %v1055 = vpack.c.b16 %v1016, %v1013
      %v1056 = vpack.c.b16 %v1017, %v1014
      %v1057 = vpack.c.b16 %v1021, %v1018
      %v1058 = vpack.c.b16 %v1022, %v1019
      %v1059 = vpack.c.b16 %v1023, %v1020
      %v1060 = vpack.c.b16 %v1027, %v1024
      %v1061 = vpack.c.b16 %v1028, %v1025
      %v1062 = vpack.c.b16 %v1029, %v1026
      %v1063 = vpack.c.b16 %v1033, %v1030
      %v1064 = vpack.c.b16 %v1034, %v1031
      %v1065 = vpack.c.b16 %v1035, %v1032
      %v1066 = vpack.c.b16 %v1039, %v1036
      %v1067 = vpack.c.b16 %v1040, %v1037
      %v1068 = vpack.c.b16 %v1041, %v1038
      %v1069 = vpack.c.b16 %v1045, %v1042
      %v1070 = vpack.c.b16 %v1046, %v1043
      %v1071 = vpack.c.b16 %v1047, %v1044
      %1096 = vmatpush.bf16.msra.mxu0 %v1069
      %1097 = vmatpush.bf16.msra.mxu0 %v1066
      %1098 = vmatpush.bf16.msra.mxu0 %v1063
      %1099 = vmatpush.bf16.msra.mxu0 %v1060
      %1100 = vmatpush.bf16.msra.mxu0 %v1057
      %1101 = vmatpush.bf16.msra.mxu0 %v1054
      %1102 = vmatpush.bf16.msra.mxu0 %v1051
      %1103 = vmatpush.bf16.msra.mxu0 %v1048
      %1104 = vmatmul.bf16.gmra.mxu0 %v935
      %v1105 = vpop.f32.mrf.mxu0
      %v1106 = vadd.f32 %v390, %v1105
      %v1107 = vpop.f32.mrf.mxu0
      %1108 = vdwg.mxu0
      %1109 = vmatpush.bf16.msra.mxu0 %v1070
      %1110 = vmatpush.bf16.msra.mxu0 %v1067
      %1111 = vmatpush.bf16.msra.mxu0 %v1064
      %1112 = vmatpush.bf16.msra.mxu0 %v1061
      %1113 = vmatpush.bf16.msra.mxu0 %v1058
      %1114 = vmatpush.bf16.msra.mxu0 %v1055
      %1115 = vmatpush.bf16.msra.mxu0 %v1052
      %1116 = vmatpush.bf16.msra.mxu0 %v1049
      %1117 = vmatmul.bf16.gmra.mxu0 %v935
      %v1118 = vpop.f32.mrf.mxu0
      %v1119 = vadd.f32 %v391, %v1118
      %v1120 = vpop.f32.mrf.mxu0
      %1121 = vdwg.mxu0
      %1122 = vmatpush.bf16.msra.mxu0 %v1071
      %1123 = vmatpush.bf16.msra.mxu0 %v1068
      %1124 = vmatpush.bf16.msra.mxu0 %v1065
      %1125 = vmatpush.bf16.msra.mxu0 %v1062
      %1126 = vmatpush.bf16.msra.mxu0 %v1059
      %1127 = vmatpush.bf16.msra.mxu0 %v1056
      %1128 = vmatpush.bf16.msra.mxu0 %v1053
      %1129 = vmatpush.bf16.msra.mxu0 %v1050
      %1130 = vmatmul.bf16.gmra.mxu0 %v935
      %v1131 = vpop.f32.mrf.mxu0
      %v1132 = vadd.f32 %v392, %v1131
      %v1133 = vpop.f32.mrf.mxu0
      %1134 = vdwg.mxu0
      %v1135 = vadd.f32 %v932, %v1106
      %v1136 = vxor.u32 %v1135, 2147483648
      %v1137 = vmul.f32 %v1136, 1.442695
      %v1138 = vpow.pop %v1137
      %v1139 = vadd.f32 %v1138, 1.0
      %v1140 = vrcp.pop %v1139
      %v1141 = vmul.f32 %v1139, %v1140
      %v1142 = vsub.f32 1.0, %v1141
      %v1143 = vmul.f32 %v1140, %v1142
      %v1144 = vadd.f32 %v1140, %v1143
      %vm1145 = vweird.f32 %v1139
      %vm1146 = vweird.f32 %v1140
      %vm1147 = vmor %vm1145, %vm1146
      %v1148 = vsel %vm1147, %v1140, %v1144
      %v1149 = vand.u32 2147483647, %v1139
      %vm1150 = vcmp.eq.f32.partialorder %v1149, 8.507059e+37
      %v1151 = vand.u32 %v1139, 2147483648
      %v1152 = vor.u32 1.1754944e-38, %v1151
      %v1153 = vsel %vm1150, %v1152, %v1148
      %v1154 = vmul.f32 1.0, %v1153
      %v1155 = vadd.f32 %v933, %v1119
      %v1156 = vxor.u32 %v1155, 2147483648
      %v1157 = vmul.f32 %v1156, 1.442695
      %v1158 = vpow.pop %v1157
      %v1159 = vadd.f32 %v1158, 1.0
      %v1160 = vrcp.pop %v1159
      %v1161 = vmul.f32 %v1159, %v1160
      %v1162 = vsub.f32 1.0, %v1161
      %v1163 = vmul.f32 %v1160, %v1162
      %v1164 = vadd.f32 %v1160, %v1163
      %vm1165 = vweird.f32 %v1159
      %vm1166 = vweird.f32 %v1160
      %vm1167 = vmor %vm1165, %vm1166
      %v1168 = vsel %vm1167, %v1160, %v1164
      %v1169 = vand.u32 2147483647, %v1159
      %vm1170 = vcmp.eq.f32.partialorder %v1169, 8.507059e+37
      %v1171 = vand.u32 %v1159, 2147483648
      %v1172 = vor.u32 1.1754944e-38, %v1171
      %v1173 = vsel %vm1170, %v1172, %v1168
      %v1174 = vmul.f32 1.0, %v1173
      %v1175 = vmul.f32 %v1154, %v1132
      %v1176 = vadd.f32 %v934, %v1175
      %v1177 = vtanh.pop %v1176
      %v1178 = vsub.f32 1.0, %v1174
      %v1179 = vmul.f32 %v1178, %v1177
      %v1180 = vmul.f32 %v1174, %v930
      %v1181 = vadd.f32 %v1179, %v1180
      %vm1182 = vcmp.gt.s32.totalorder %v396, 2
      %v1183 = vsel %vm1182, 1, 0
      %1184 = vset.pattern.permute.xlu0 0
      %1185 = vperm.xlu0 %1184, %v1183
      %v1186 = vpop.permute.xlu0 %1185
      %vm1187 = vcmp.eq.s32.totalorder %v1186, 1
      %v1188 = vsel %vm1187, %v1181, %v930
      %1189 = vst [vmem:[#allocation11] sm:$0xff] %v1188
    $region49: #{tpu_custom_call.1} parent=1 // pred_fallthru
      _
    %p1190 = scmp.gt.s32.totalorder %s397, 3
    // Predicated region
    $region50: #{tpu_custom_call.1} parent=1 // pred_check
      %p1191 = pneg %p1190
    $region51: #{tpu_custom_call.1} parent=1 // pred_check_branch
      %1193 = sbr.rel (%p1191) target = $region53
    $region52: #{tpu_custom_call.1} parent=1 // pred_region
      %v1194 = vld [vmem:[#allocation11] sm:$0xff]
      %s1195 = scalar_lea.vmem [#allocation2], 72
      %v1196 = vld [vmem:[%s1195] sm:$0xff]
      %v1197 = vld [vmem:[%s1195 + $0x8] sm:$0xff]
      %v1198 = vld [vmem:[%s1195 + $0x10] sm:$0xff]
      %v1199 = vpack.c.bf16 %v1194, %v1194
      %v1200 = vld [vmem:[#allocation10] sm:$0xff]
      %v1201 = vld [vmem:[#allocation10 + $0x8] sm:$0xf]
      %v1202 = vld [vmem:[#allocation10 + $0xc] sm:$0xff]
      %v1203 = vld [vmem:[#allocation10 + $0x14] sm:$0xf]
      %v1204 = vld [vmem:[#allocation10 + $0x18] sm:$0xff]
      %v1205 = vld [vmem:[#allocation10 + $0x20] sm:$0xf]
      %v1206 = vld [vmem:[#allocation10 + $0x24] sm:$0xff]
      %v1207 = vld [vmem:[#allocation10 + $0x2c] sm:$0xf]
      %v1208 = vld [vmem:[#allocation10 + $0x30] sm:$0xff]
      %v1209 = vld [vmem:[#allocation10 + $0x38] sm:$0xf]
      %v1210 = vld [vmem:[#allocation10 + $0x3c] sm:$0xff]
      %v1211 = vld [vmem:[#allocation10 + $0x44] sm:$0xf]
      %v1212 = vld [vmem:[#allocation10 + $0x48] sm:$0xff]
      %v1213 = vld [vmem:[#allocation10 + $0x50] sm:$0xf]
      %v1214 = vld [vmem:[#allocation10 + $0x54] sm:$0xff]
      %v1215 = vld [vmem:[#allocation10 + $0x5c] sm:$0xf]
      %v1216 = vld [vmem:[#allocation10 + $0x60] sm:$0xff]
      %v1217 = vld [vmem:[#allocation10 + $0x68] sm:$0xf]
      %v1218 = vld [vmem:[#allocation10 + $0x6c] sm:$0xff]
      %v1219 = vld [vmem:[#allocation10 + $0x74] sm:$0xf]
      %v1220 = vld [vmem:[#allocation10 + $0x78] sm:$0xff]
      %v1221 = vld [vmem:[#allocation10 + $0x80] sm:$0xf]
      %v1222 = vld [vmem:[#allocation10 + $0x84] sm:$0xff]
      %v1223 = vld [vmem:[#allocation10 + $0x8c] sm:$0xf]
      %v1224 = vld [vmem:[#allocation10 + $0x90] sm:$0xff]
      %v1225 = vld [vmem:[#allocation10 + $0x98] sm:$0xf]
      %v1226 = vld [vmem:[#allocation10 + $0x9c] sm:$0xff]
      %v1227 = vld [vmem:[#allocation10 + $0xa4] sm:$0xf]
      %v1228 = vld [vmem:[#allocation10 + $0xa8] sm:$0xff]
      %v1229 = vld [vmem:[#allocation10 + $0xb0] sm:$0xf]
      %v1230 = vld [vmem:[#allocation10 + $0xb4] sm:$0xff]
      %v1231 = vld [vmem:[#allocation10 + $0xbc] sm:$0xf]
      %v1264 = vunpack.c.l.b16 %v1200
      %v1265 = vunpack.c.h.b16 %v1200
      %v1266 = vunpack.c.l.b16 %v1201
      %v1267 = vunpack.c.l.b16 %v1202
      %v1268 = vunpack.c.h.b16 %v1202
      %v1269 = vunpack.c.l.b16 %v1203
      %v1270 = vunpack.c.l.b16 %v1204
      %v1271 = vunpack.c.h.b16 %v1204
      %v1272 = vunpack.c.l.b16 %v1205
      %v1273 = vunpack.c.l.b16 %v1206
      %v1274 = vunpack.c.h.b16 %v1206
      %v1275 = vunpack.c.l.b16 %v1207
      %v1276 = vunpack.c.l.b16 %v1208
      %v1277 = vunpack.c.h.b16 %v1208
      %v1278 = vunpack.c.l.b16 %v1209
      %v1279 = vunpack.c.l.b16 %v1210
      %v1280 = vunpack.c.h.b16 %v1210
      %v1281 = vunpack.c.l.b16 %v1211
      %v1282 = vunpack.c.l.b16 %v1212
      %v1283 = vunpack.c.h.b16 %v1212
      %v1284 = vunpack.c.l.b16 %v1213
      %v1285 = vunpack.c.l.b16 %v1214
      %v1286 = vunpack.c.h.b16 %v1214
      %v1287 = vunpack.c.l.b16 %v1215
      %v1288 = vunpack.c.l.b16 %v1216
      %v1289 = vunpack.c.h.b16 %v1216
      %v1290 = vunpack.c.l.b16 %v1217
      %v1291 = vunpack.c.l.b16 %v1218
      %v1292 = vunpack.c.h.b16 %v1218
      %v1293 = vunpack.c.l.b16 %v1219
      %v1294 = vunpack.c.l.b16 %v1220
      %v1295 = vunpack.c.h.b16 %v1220
      %v1296 = vunpack.c.l.b16 %v1221
      %v1297 = vunpack.c.l.b16 %v1222
      %v1298 = vunpack.c.h.b16 %v1222
      %v1299 = vunpack.c.l.b16 %v1223
      %v1300 = vunpack.c.l.b16 %v1224
      %v1301 = vunpack.c.h.b16 %v1224
      %v1302 = vunpack.c.l.b16 %v1225
      %v1303 = vunpack.c.l.b16 %v1226
      %v1304 = vunpack.c.h.b16 %v1226
      %v1305 = vunpack.c.l.b16 %v1227
      %v1306 = vunpack.c.l.b16 %v1228
      %v1307 = vunpack.c.h.b16 %v1228
      %v1308 = vunpack.c.l.b16 %v1229
      %v1309 = vunpack.c.l.b16 %v1230
      %v1310 = vunpack.c.h.b16 %v1230
      %v1311 = vunpack.c.l.b16 %v1231
      %v1312 = vpack.c.b16 %v1267, %v1264
      %v1313 = vpack.c.b16 %v1268, %v1265
      %v1314 = vpack.c.b16 %v1269, %v1266
      %v1315 = vpack.c.b16 %v1273, %v1270
      %v1316 = vpack.c.b16 %v1274, %v1271
      %v1317 = vpack.c.b16 %v1275, %v1272
      %v1318 = vpack.c.b16 %v1279, %v1276
      %v1319 = vpack.c.b16 %v1280, %v1277
      %v1320 = vpack.c.b16 %v1281, %v1278
      %v1321 = vpack.c.b16 %v1285, %v1282
      %v1322 = vpack.c.b16 %v1286, %v1283
      %v1323 = vpack.c.b16 %v1287, %v1284
      %v1324 = vpack.c.b16 %v1291, %v1288
      %v1325 = vpack.c.b16 %v1292, %v1289
      %v1326 = vpack.c.b16 %v1293, %v1290
      %v1327 = vpack.c.b16 %v1297, %v1294
      %v1328 = vpack.c.b16 %v1298, %v1295
      %v1329 = vpack.c.b16 %v1299, %v1296
      %v1330 = vpack.c.b16 %v1303, %v1300
      %v1331 = vpack.c.b16 %v1304, %v1301
      %v1332 = vpack.c.b16 %v1305, %v1302
      %v1333 = vpack.c.b16 %v1309, %v1306
      %v1334 = vpack.c.b16 %v1310, %v1307
      %v1335 = vpack.c.b16 %v1311, %v1308
      %1360 = vmatpush.bf16.msra.mxu0 %v1333
      %1361 = vmatpush.bf16.msra.mxu0 %v1330
      %1362 = vmatpush.bf16.msra.mxu0 %v1327
      %1363 = vmatpush.bf16.msra.mxu0 %v1324
      %1364 = vmatpush.bf16.msra.mxu0 %v1321
      %1365 = vmatpush.bf16.msra.mxu0 %v1318
      %1366 = vmatpush.bf16.msra.mxu0 %v1315
      %1367 = vmatpush.bf16.msra.mxu0 %v1312
      %1368 = vmatmul.bf16.gmra.mxu0 %v1199
      %v1369 = vpop.f32.mrf.mxu0
      %v1370 = vadd.f32 %v390, %v1369
      %v1371 = vpop.f32.mrf.mxu0
      %1372 = vdwg.mxu0
      %1373 = vmatpush.bf16.msra.mxu0 %v1334
      %1374 = vmatpush.bf16.msra.mxu0 %v1331
      %1375 = vmatpush.bf16.msra.mxu0 %v1328
      %1376 = vmatpush.bf16.msra.mxu0 %v1325
      %1377 = vmatpush.bf16.msra.mxu0 %v1322
      %1378 = vmatpush.bf16.msra.mxu0 %v1319
      %1379 = vmatpush.bf16.msra.mxu0 %v1316
      %1380 = vmatpush.bf16.msra.mxu0 %v1313
      %1381 = vmatmul.bf16.gmra.mxu0 %v1199
      %v1382 = vpop.f32.mrf.mxu0
      %v1383 = vadd.f32 %v391, %v1382
      %v1384 = vpop.f32.mrf.mxu0
      %1385 = vdwg.mxu0
      %1386 = vmatpush.bf16.msra.mxu0 %v1335
      %1387 = vmatpush.bf16.msra.mxu0 %v1332
      %1388 = vmatpush.bf16.msra.mxu0 %v1329
      %1389 = vmatpush.bf16.msra.mxu0 %v1326
      %1390 = vmatpush.bf16.msra.mxu0 %v1323
      %1391 = vmatpush.bf16.msra.mxu0 %v1320
      %1392 = vmatpush.bf16.msra.mxu0 %v1317
      %1393 = vmatpush.bf16.msra.mxu0 %v1314
      %1394 = vmatmul.bf16.gmra.mxu0 %v1199
      %v1395 = vpop.f32.mrf.mxu0
      %v1396 = vadd.f32 %v392, %v1395
      %v1397 = vpop.f32.mrf.mxu0
      %1398 = vdwg.mxu0
      %v1399 = vadd.f32 %v1196, %v1370
      %v1400 = vxor.u32 %v1399, 2147483648
      %v1401 = vmul.f32 %v1400, 1.442695
      %v1402 = vpow.pop %v1401
      %v1403 = vadd.f32 %v1402, 1.0
      %v1404 = vrcp.pop %v1403
      %v1405 = vmul.f32 %v1403, %v1404
      %v1406 = vsub.f32 1.0, %v1405
      %v1407 = vmul.f32 %v1404, %v1406
      %v1408 = vadd.f32 %v1404, %v1407
      %vm1409 = vweird.f32 %v1403
      %vm1410 = vweird.f32 %v1404
      %vm1411 = vmor %vm1409, %vm1410
      %v1412 = vsel %vm1411, %v1404, %v1408
      %v1413 = vand.u32 2147483647, %v1403
      %vm1414 = vcmp.eq.f32.partialorder %v1413, 8.507059e+37
      %v1415 = vand.u32 %v1403, 2147483648
      %v1416 = vor.u32 1.1754944e-38, %v1415
      %v1417 = vsel %vm1414, %v1416, %v1412
      %v1418 = vmul.f32 1.0, %v1417
      %v1419 = vadd.f32 %v1197, %v1383
      %v1420 = vxor.u32 %v1419, 2147483648
      %v1421 = vmul.f32 %v1420, 1.442695
      %v1422 = vpow.pop %v1421
      %v1423 = vadd.f32 %v1422, 1.0
      %v1424 = vrcp.pop %v1423
      %v1425 = vmul.f32 %v1423, %v1424
      %v1426 = vsub.f32 1.0, %v1425
      %v1427 = vmul.f32 %v1424, %v1426
      %v1428 = vadd.f32 %v1424, %v1427
      %vm1429 = vweird.f32 %v1423
      %vm1430 = vweird.f32 %v1424
      %vm1431 = vmor %vm1429, %vm1430
      %v1432 = vsel %vm1431, %v1424, %v1428
      %v1433 = vand.u32 2147483647, %v1423
      %vm1434 = vcmp.eq.f32.partialorder %v1433, 8.507059e+37
      %v1435 = vand.u32 %v1423, 2147483648
      %v1436 = vor.u32 1.1754944e-38, %v1435
      %v1437 = vsel %vm1434, %v1436, %v1432
      %v1438 = vmul.f32 1.0, %v1437
      %v1439 = vmul.f32 %v1418, %v1396
      %v1440 = vadd.f32 %v1198, %v1439
      %v1441 = vtanh.pop %v1440
      %v1442 = vsub.f32 1.0, %v1438
      %v1443 = vmul.f32 %v1442, %v1441
      %v1444 = vmul.f32 %v1438, %v1194
      %v1445 = vadd.f32 %v1443, %v1444
      %vm1446 = vcmp.gt.s32.totalorder %v396, 3
      %v1447 = vsel %vm1446, 1, 0
      %1448 = vset.pattern.permute.xlu0 0
      %1449 = vperm.xlu0 %1448, %v1447
      %v1450 = vpop.permute.xlu0 %1449
      %vm1451 = vcmp.eq.s32.totalorder %v1450, 1
      %v1452 = vsel %vm1451, %v1445, %v1194
      %1453 = vst [vmem:[#allocation11] sm:$0xff] %v1452
    $region53: #{tpu_custom_call.1} parent=1 // pred_fallthru
      _
    %p1454 = scmp.gt.s32.totalorder %s397, 4
    // Predicated region
    $region54: #{tpu_custom_call.1} parent=1 // pred_check
      %p1455 = pneg %p1454
    $region55: #{tpu_custom_call.1} parent=1 // pred_check_branch
      %1457 = sbr.rel (%p1455) target = $region57
    $region56: #{tpu_custom_call.1} parent=1 // pred_region
      %v1458 = vld [vmem:[#allocation11] sm:$0xff]
      %s1459 = scalar_lea.vmem [#allocation2], 96
      %v1460 = vld [vmem:[%s1459] sm:$0xff]
      %v1461 = vld [vmem:[%s1459 + $0x8] sm:$0xff]
      %v1462 = vld [vmem:[%s1459 + $0x10] sm:$0xff]
      %v1463 = vpack.c.bf16 %v1458, %v1458
      %v1464 = vld [vmem:[#allocation10] sm:$0xff]
      %v1465 = vld [vmem:[#allocation10 + $0x8] sm:$0xf]
      %v1466 = vld [vmem:[#allocation10 + $0xc] sm:$0xff]
      %v1467 = vld [vmem:[#allocation10 + $0x14] sm:$0xf]
      %v1468 = vld [vmem:[#allocation10 + $0x18] sm:$0xff]
      %v1469 = vld [vmem:[#allocation10 + $0x20] sm:$0xf]
      %v1470 = vld [vmem:[#allocation10 + $0x24] sm:$0xff]
      %v1471 = vld [vmem:[#allocation10 + $0x2c] sm:$0xf]
      %v1472 = vld [vmem:[#allocation10 + $0x30] sm:$0xff]
      %v1473 = vld [vmem:[#allocation10 + $0x38] sm:$0xf]
      %v1474 = vld [vmem:[#allocation10 + $0x3c] sm:$0xff]
      %v1475 = vld [vmem:[#allocation10 + $0x44] sm:$0xf]
      %v1476 = vld [vmem:[#allocation10 + $0x48] sm:$0xff]
      %v1477 = vld [vmem:[#allocation10 + $0x50] sm:$0xf]
      %v1478 = vld [vmem:[#allocation10 + $0x54] sm:$0xff]
      %v1479 = vld [vmem:[#allocation10 + $0x5c] sm:$0xf]
      %v1480 = vld [vmem:[#allocation10 + $0x60] sm:$0xff]
      %v1481 = vld [vmem:[#allocation10 + $0x68] sm:$0xf]
      %v1482 = vld [vmem:[#allocation10 + $0x6c] sm:$0xff]
      %v1483 = vld [vmem:[#allocation10 + $0x74] sm:$0xf]
      %v1484 = vld [vmem:[#allocation10 + $0x78] sm:$0xff]
      %v1485 = vld [vmem:[#allocation10 + $0x80] sm:$0xf]
      %v1486 = vld [vmem:[#allocation10 + $0x84] sm:$0xff]
      %v1487 = vld [vmem:[#allocation10 + $0x8c] sm:$0xf]
      %v1488 = vld [vmem:[#allocation10 + $0x90] sm:$0xff]
      %v1489 = vld [vmem:[#allocation10 + $0x98] sm:$0xf]
      %v1490 = vld [vmem:[#allocation10 + $0x9c] sm:$0xff]
      %v1491 = vld [vmem:[#allocation10 + $0xa4] sm:$0xf]
      %v1492 = vld [vmem:[#allocation10 + $0xa8] sm:$0xff]
      %v1493 = vld [vmem:[#allocation10 + $0xb0] sm:$0xf]
      %v1494 = vld [vmem:[#allocation10 + $0xb4] sm:$0xff]
      %v1495 = vld [vmem:[#allocation10 + $0xbc] sm:$0xf]
      %v1528 = vunpack.c.l.b16 %v1464
      %v1529 = vunpack.c.h.b16 %v1464
      %v1530 = vunpack.c.l.b16 %v1465
      %v1531 = vunpack.c.l.b16 %v1466
      %v1532 = vunpack.c.h.b16 %v1466
      %v1533 = vunpack.c.l.b16 %v1467
      %v1534 = vunpack.c.l.b16 %v1468
      %v1535 = vunpack.c.h.b16 %v1468
      %v1536 = vunpack.c.l.b16 %v1469
      %v1537 = vunpack.c.l.b16 %v1470
      %v1538 = vunpack.c.h.b16 %v1470
      %v1539 = vunpack.c.l.b16 %v1471
      %v1540 = vunpack.c.l.b16 %v1472
      %v1541 = vunpack.c.h.b16 %v1472
      %v1542 = vunpack.c.l.b16 %v1473
      %v1543 = vunpack.c.l.b16 %v1474
      %v1544 = vunpack.c.h.b16 %v1474
      %v1545 = vunpack.c.l.b16 %v1475
      %v1546 = vunpack.c.l.b16 %v1476
      %v1547 = vunpack.c.h.b16 %v1476
      %v1548 = vunpack.c.l.b16 %v1477
      %v1549 = vunpack.c.l.b16 %v1478
      %v1550 = vunpack.c.h.b16 %v1478
      %v1551 = vunpack.c.l.b16 %v1479
      %v1552 = vunpack.c.l.b16 %v1480
      %v1553 = vunpack.c.h.b16 %v1480
      %v1554 = vunpack.c.l.b16 %v1481
      %v1555 = vunpack.c.l.b16 %v1482
      %v1556 = vunpack.c.h.b16 %v1482
      %v1557 = vunpack.c.l.b16 %v1483
      %v1558 = vunpack.c.l.b16 %v1484
      %v1559 = vunpack.c.h.b16 %v1484
      %v1560 = vunpack.c.l.b16 %v1485
      %v1561 = vunpack.c.l.b16 %v1486
      %v1562 = vunpack.c.h.b16 %v1486
      %v1563 = vunpack.c.l.b16 %v1487
      %v1564 = vunpack.c.l.b16 %v1488
      %v1565 = vunpack.c.h.b16 %v1488
      %v1566 = vunpack.c.l.b16 %v1489
      %v1567 = vunpack.c.l.b16 %v1490
      %v1568 = vunpack.c.h.b16 %v1490
      %v1569 = vunpack.c.l.b16 %v1491
      %v1570 = vunpack.c.l.b16 %v1492
      %v1571 = vunpack.c.h.b16 %v1492
      %v1572 = vunpack.c.l.b16 %v1493
      %v1573 = vunpack.c.l.b16 %v1494
      %v1574 = vunpack.c.h.b16 %v1494
      %v1575 = vunpack.c.l.b16 %v1495
      %v1576 = vpack.c.b16 %v1531, %v1528
      %v1577 = vpack.c.b16 %v1532, %v1529
      %v1578 = vpack.c.b16 %v1533, %v1530
      %v1579 = vpack.c.b16 %v1537, %v1534
      %v1580 = vpack.c.b16 %v1538, %v1535
      %v1581 = vpack.c.b16 %v1539, %v1536
      %v1582 = vpack.c.b16 %v1543, %v1540
      %v1583 = vpack.c.b16 %v1544, %v1541
      %v1584 = vpack.c.b16 %v1545, %v1542
      %v1585 = vpack.c.b16 %v1549, %v1546
      %v1586 = vpack.c.b16 %v1550, %v1547
      %v1587 = vpack.c.b16 %v1551, %v1548
      %v1588 = vpack.c.b16 %v1555, %v1552
      %v1589 = vpack.c.b16 %v1556, %v1553
      %v1590 = vpack.c.b16 %v1557, %v1554
      %v1591 = vpack.c.b16 %v1561, %v1558
      %v1592 = vpack.c.b16 %v1562, %v1559
      %v1593 = vpack.c.b16 %v1563, %v1560
      %v1594 = vpack.c.b16 %v1567, %v1564
      %v1595 = vpack.c.b16 %v1568, %v1565
      %v1596 = vpack.c.b16 %v1569, %v1566
      %v1597 = vpack.c.b16 %v1573, %v1570
      %v1598 = vpack.c.b16 %v1574, %v1571
      %v1599 = vpack.c.b16 %v1575, %v1572
      %1624 = vmatpush.bf16.msra.mxu0 %v1597
      %1625 = vmatpush.bf16.msra.mxu0 %v1594
      %1626 = vmatpush.bf16.msra.mxu0 %v1591
      %1627 = vmatpush.bf16.msra.mxu0 %v1588
      %1628 = vmatpush.bf16.msra.mxu0 %v1585
      %1629 = vmatpush.bf16.msra.mxu0 %v1582
      %1630 = vmatpush.bf16.msra.mxu0 %v1579
      %1631 = vmatpush.bf16.msra.mxu0 %v1576
      %1632 = vmatmul.bf16.gmra.mxu0 %v1463
      %v1633 = vpop.f32.mrf.mxu0
      %v1634 = vadd.f32 %v390, %v1633
      %v1635 = vpop.f32.mrf.mxu0
      %1636 = vdwg.mxu0
      %1637 = vmatpush.bf16.msra.mxu0 %v1598
      %1638 = vmatpush.bf16.msra.mxu0 %v1595
      %1639 = vmatpush.bf16.msra.mxu0 %v1592
      %1640 = vmatpush.bf16.msra.mxu0 %v1589
      %1641 = vmatpush.bf16.msra.mxu0 %v1586
      %1642 = vmatpush.bf16.msra.mxu0 %v1583
      %1643 = vmatpush.bf16.msra.mxu0 %v1580
      %1644 = vmatpush.bf16.msra.mxu0 %v1577
      %1645 = vmatmul.bf16.gmra.mxu0 %v1463
      %v1646 = vpop.f32.mrf.mxu0
      %v1647 = vadd.f32 %v391, %v1646
      %v1648 = vpop.f32.mrf.mxu0
      %1649 = vdwg.mxu0
      %1650 = vmatpush.bf16.msra.mxu0 %v1599
      %1651 = vmatpush.bf16.msra.mxu0 %v1596
      %1652 = vmatpush.bf16.msra.mxu0 %v1593
      %1653 = vmatpush.bf16.msra.mxu0 %v1590
      %1654 = vmatpush.bf16.msra.mxu0 %v1587
      %1655 = vmatpush.bf16.msra.mxu0 %v1584
      %1656 = vmatpush.bf16.msra.mxu0 %v1581
      %1657 = vmatpush.bf16.msra.mxu0 %v1578
      %1658 = vmatmul.bf16.gmra.mxu0 %v1463
      %v1659 = vpop.f32.mrf.mxu0
      %v1660 = vadd.f32 %v392, %v1659
      %v1661 = vpop.f32.mrf.mxu0
      %1662 = vdwg.mxu0
      %v1663 = vadd.f32 %v1460, %v1634
      %v1664 = vxor.u32 %v1663, 2147483648
      %v1665 = vmul.f32 %v1664, 1.442695
      %v1666 = vpow.pop %v1665
      %v1667 = vadd.f32 %v1666, 1.0
      %v1668 = vrcp.pop %v1667
      %v1669 = vmul.f32 %v1667, %v1668
      %v1670 = vsub.f32 1.0, %v1669
      %v1671 = vmul.f32 %v1668, %v1670
      %v1672 = vadd.f32 %v1668, %v1671
      %vm1673 = vweird.f32 %v1667
      %vm1674 = vweird.f32 %v1668
      %vm1675 = vmor %vm1673, %vm1674
      %v1676 = vsel %vm1675, %v1668, %v1672
      %v1677 = vand.u32 2147483647, %v1667
      %vm1678 = vcmp.eq.f32.partialorder %v1677, 8.507059e+37
      %v1679 = vand.u32 %v1667, 2147483648
      %v1680 = vor.u32 1.1754944e-38, %v1679
      %v1681 = vsel %vm1678, %v1680, %v1676
      %v1682 = vmul.f32 1.0, %v1681
      %v1683 = vadd.f32 %v1461, %v1647
      %v1684 = vxor.u32 %v1683, 2147483648
      %v1685 = vmul.f32 %v1684, 1.442695
      %v1686 = vpow.pop %v1685
      %v1687 = vadd.f32 %v1686, 1.0
      %v1688 = vrcp.pop %v1687
      %v1689 = vmul.f32 %v1687, %v1688
      %v1690 = vsub.f32 1.0, %v1689
      %v1691 = vmul.f32 %v1688, %v1690
      %v1692 = vadd.f32 %v1688, %v1691
      %vm1693 = vweird.f32 %v1687
      %vm1694 = vweird.f32 %v1688
      %vm1695 = vmor %vm1693, %vm1694
      %v1696 = vsel %vm1695, %v1688, %v1692
      %v1697 = vand.u32 2147483647, %v1687
      %vm1698 = vcmp.eq.f32.partialorder %v1697, 8.507059e+37
      %v1699 = vand.u32 %v1687, 2147483648
      %v1700 = vor.u32 1.1754944e-38, %v1699
      %v1701 = vsel %vm1698, %v1700, %v1696
      %v1702 = vmul.f32 1.0, %v1701
      %v1703 = vmul.f32 %v1682, %v1660
      %v1704 = vadd.f32 %v1462, %v1703
      %v1705 = vtanh.pop %v1704
      %v1706 = vsub.f32 1.0, %v1702
      %v1707 = vmul.f32 %v1706, %v1705
      %v1708 = vmul.f32 %v1702, %v1458
      %v1709 = vadd.f32 %v1707, %v1708
      %vm1710 = vcmp.gt.s32.totalorder %v396, 4
      %v1711 = vsel %vm1710, 1, 0
      %1712 = vset.pattern.permute.xlu0 0
      %1713 = vperm.xlu0 %1712, %v1711
      %v1714 = vpop.permute.xlu0 %1713
      %vm1715 = vcmp.eq.s32.totalorder %v1714, 1
      %v1716 = vsel %vm1715, %v1709, %v1458
      %1717 = vst [vmem:[#allocation11] sm:$0xff] %v1716
    $region57: #{tpu_custom_call.1} parent=1 // pred_fallthru
      _
    %p1718 = scmp.gt.s32.totalorder %s397, 5
    // Predicated region
    $region58: #{tpu_custom_call.1} parent=1 // pred_check
      %p1719 = pneg %p1718
    $region59: #{tpu_custom_call.1} parent=1 // pred_check_branch
      %1721 = sbr.rel (%p1719) target = $region61
    $region60: #{tpu_custom_call.1} parent=1 // pred_region
      %v1722 = vld [vmem:[#allocation11] sm:$0xff]
      %s1723 = scalar_lea.vmem [#allocation2], 120
      %v1724 = vld [vmem:[%s1723] sm:$0xff]
      %v1725 = vld [vmem:[%s1723 + $0x8] sm:$0xff]
      %v1726 = vld [vmem:[%s1723 + $0x10] sm:$0xff]
      %v1727 = vpack.c.bf16 %v1722, %v1722
      %v1728 = vld [vmem:[#allocation10] sm:$0xff]
      %v1729 = vld [vmem:[#allocation10 + $0x8] sm:$0xf]
      %v1730 = vld [vmem:[#allocation10 + $0xc] sm:$0xff]
      %v1731 = vld [vmem:[#allocation10 + $0x14] sm:$0xf]
      %v1732 = vld [vmem:[#allocation10 + $0x18] sm:$0xff]
      %v1733 = vld [vmem:[#allocation10 + $0x20] sm:$0xf]
      %v1734 = vld [vmem:[#allocation10 + $0x24] sm:$0xff]
      %v1735 = vld [vmem:[#allocation10 + $0x2c] sm:$0xf]
      %v1736 = vld [vmem:[#allocation10 + $0x30] sm:$0xff]
      %v1737 = vld [vmem:[#allocation10 + $0x38] sm:$0xf]
      %v1738 = vld [vmem:[#allocation10 + $0x3c] sm:$0xff]
      %v1739 = vld [vmem:[#allocation10 + $0x44] sm:$0xf]
      %v1740 = vld [vmem:[#allocation10 + $0x48] sm:$0xff]
      %v1741 = vld [vmem:[#allocation10 + $0x50] sm:$0xf]
      %v1742 = vld [vmem:[#allocation10 + $0x54] sm:$0xff]
      %v1743 = vld [vmem:[#allocation10 + $0x5c] sm:$0xf]
      %v1744 = vld [vmem:[#allocation10 + $0x60] sm:$0xff]
      %v1745 = vld [vmem:[#allocation10 + $0x68] sm:$0xf]
      %v1746 = vld [vmem:[#allocation10 + $0x6c] sm:$0xff]
      %v1747 = vld [vmem:[#allocation10 + $0x74] sm:$0xf]
      %v1748 = vld [vmem:[#allocation10 + $0x78] sm:$0xff]
      %v1749 = vld [vmem:[#allocation10 + $0x80] sm:$0xf]
      %v1750 = vld [vmem:[#allocation10 + $0x84] sm:$0xff]
      %v1751 = vld [vmem:[#allocation10 + $0x8c] sm:$0xf]
      %v1752 = vld [vmem:[#allocation10 + $0x90] sm:$0xff]
      %v1753 = vld [vmem:[#allocation10 + $0x98] sm:$0xf]
      %v1754 = vld [vmem:[#allocation10 + $0x9c] sm:$0xff]
      %v1755 = vld [vmem:[#allocation10 + $0xa4] sm:$0xf]
      %v1756 = vld [vmem:[#allocation10 + $0xa8] sm:$0xff]
      %v1757 = vld [vmem:[#allocation10 + $0xb0] sm:$0xf]
      %v1758 = vld [vmem:[#allocation10 + $0xb4] sm:$0xff]
      %v1759 = vld [vmem:[#allocation10 + $0xbc] sm:$0xf]
      %v1792 = vunpack.c.l.b16 %v1728
      %v1793 = vunpack.c.h.b16 %v1728
      %v1794 = vunpack.c.l.b16 %v1729
      %v1795 = vunpack.c.l.b16 %v1730
      %v1796 = vunpack.c.h.b16 %v1730
      %v1797 = vunpack.c.l.b16 %v1731
      %v1798 = vunpack.c.l.b16 %v1732
      %v1799 = vunpack.c.h.b16 %v1732
      %v1800 = vunpack.c.l.b16 %v1733
      %v1801 = vunpack.c.l.b16 %v1734
      %v1802 = vunpack.c.h.b16 %v1734
      %v1803 = vunpack.c.l.b16 %v1735
      %v1804 = vunpack.c.l.b16 %v1736
      %v1805 = vunpack.c.h.b16 %v1736
      %v1806 = vunpack.c.l.b16 %v1737
      %v1807 = vunpack.c.l.b16 %v1738
      %v1808 = vunpack.c.h.b16 %v1738
      %v1809 = vunpack.c.l.b16 %v1739
      %v1810 = vunpack.c.l.b16 %v1740
      %v1811 = vunpack.c.h.b16 %v1740
      %v1812 = vunpack.c.l.b16 %v1741
      %v1813 = vunpack.c.l.b16 %v1742
      %v1814 = vunpack.c.h.b16 %v1742
      %v1815 = vunpack.c.l.b16 %v1743
      %v1816 = vunpack.c.l.b16 %v1744
      %v1817 = vunpack.c.h.b16 %v1744
      %v1818 = vunpack.c.l.b16 %v1745
      %v1819 = vunpack.c.l.b16 %v1746
      %v1820 = vunpack.c.h.b16 %v1746
      %v1821 = vunpack.c.l.b16 %v1747
      %v1822 = vunpack.c.l.b16 %v1748
      %v1823 = vunpack.c.h.b16 %v1748
      %v1824 = vunpack.c.l.b16 %v1749
      %v1825 = vunpack.c.l.b16 %v1750
      %v1826 = vunpack.c.h.b16 %v1750
      %v1827 = vunpack.c.l.b16 %v1751
      %v1828 = vunpack.c.l.b16 %v1752
      %v1829 = vunpack.c.h.b16 %v1752
      %v1830 = vunpack.c.l.b16 %v1753
      %v1831 = vunpack.c.l.b16 %v1754
      %v1832 = vunpack.c.h.b16 %v1754
      %v1833 = vunpack.c.l.b16 %v1755
      %v1834 = vunpack.c.l.b16 %v1756
      %v1835 = vunpack.c.h.b16 %v1756
      %v1836 = vunpack.c.l.b16 %v1757
      %v1837 = vunpack.c.l.b16 %v1758
      %v1838 = vunpack.c.h.b16 %v1758
      %v1839 = vunpack.c.l.b16 %v1759
      %v1840 = vpack.c.b16 %v1795, %v1792
      %v1841 = vpack.c.b16 %v1796, %v1793
      %v1842 = vpack.c.b16 %v1797, %v1794
      %v1843 = vpack.c.b16 %v1801, %v1798
      %v1844 = vpack.c.b16 %v1802, %v1799
      %v1845 = vpack.c.b16 %v1803, %v1800
      %v1846 = vpack.c.b16 %v1807, %v1804
      %v1847 = vpack.c.b16 %v1808, %v1805
      %v1848 = vpack.c.b16 %v1809, %v1806
      %v1849 = vpack.c.b16 %v1813, %v1810
      %v1850 = vpack.c.b16 %v1814, %v1811
      %v1851 = vpack.c.b16 %v1815, %v1812
      %v1852 = vpack.c.b16 %v1819, %v1816
      %v1853 = vpack.c.b16 %v1820, %v1817
      %v1854 = vpack.c.b16 %v1821, %v1818
      %v1855 = vpack.c.b16 %v1825, %v1822
      %v1856 = vpack.c.b16 %v1826, %v1823
      %v1857 = vpack.c.b16 %v1827, %v1824
      %v1858 = vpack.c.b16 %v1831, %v1828
      %v1859 = vpack.c.b16 %v1832, %v1829
      %v1860 = vpack.c.b16 %v1833, %v1830
      %v1861 = vpack.c.b16 %v1837, %v1834
      %v1862 = vpack.c.b16 %v1838, %v1835
      %v1863 = vpack.c.b16 %v1839, %v1836
      %1888 = vmatpush.bf16.msra.mxu0 %v1861
      %1889 = vmatpush.bf16.msra.mxu0 %v1858
      %1890 = vmatpush.bf16.msra.mxu0 %v1855
      %1891 = vmatpush.bf16.msra.mxu0 %v1852
      %1892 = vmatpush.bf16.msra.mxu0 %v1849
      %1893 = vmatpush.bf16.msra.mxu0 %v1846
      %1894 = vmatpush.bf16.msra.mxu0 %v1843
      %1895 = vmatpush.bf16.msra.mxu0 %v1840
      %1896 = vmatmul.bf16.gmra.mxu0 %v1727
      %v1897 = vpop.f32.mrf.mxu0
      %v1898 = vadd.f32 %v390, %v1897
      %v1899 = vpop.f32.mrf.mxu0
      %1900 = vdwg.mxu0
      %1901 = vmatpush.bf16.msra.mxu0 %v1862
      %1902 = vmatpush.bf16.msra.mxu0 %v1859
      %1903 = vmatpush.bf16.msra.mxu0 %v1856
      %1904 = vmatpush.bf16.msra.mxu0 %v1853
      %1905 = vmatpush.bf16.msra.mxu0 %v1850
      %1906 = vmatpush.bf16.msra.mxu0 %v1847
      %1907 = vmatpush.bf16.msra.mxu0 %v1844
      %1908 = vmatpush.bf16.msra.mxu0 %v1841
      %1909 = vmatmul.bf16.gmra.mxu0 %v1727
      %v1910 = vpop.f32.mrf.mxu0
      %v1911 = vadd.f32 %v391, %v1910
      %v1912 = vpop.f32.mrf.mxu0
      %1913 = vdwg.mxu0
      %1914 = vmatpush.bf16.msra.mxu0 %v1863
      %1915 = vmatpush.bf16.msra.mxu0 %v1860
      %1916 = vmatpush.bf16.msra.mxu0 %v1857
      %1917 = vmatpush.bf16.msra.mxu0 %v1854
      %1918 = vmatpush.bf16.msra.mxu0 %v1851
      %1919 = vmatpush.bf16.msra.mxu0 %v1848
      %1920 = vmatpush.bf16.msra.mxu0 %v1845
      %1921 = vmatpush.bf16.msra.mxu0 %v1842
      %1922 = vmatmul.bf16.gmra.mxu0 %v1727
      %v1923 = vpop.f32.mrf.mxu0
      %v1924 = vadd.f32 %v392, %v1923
      %v1925 = vpop.f32.mrf.mxu0
      %1926 = vdwg.mxu0
      %v1927 = vadd.f32 %v1724, %v1898
      %v1928 = vxor.u32 %v1927, 2147483648
      %v1929 = vmul.f32 %v1928, 1.442695
      %v1930 = vpow.pop %v1929
      %v1931 = vadd.f32 %v1930, 1.0
      %v1932 = vrcp.pop %v1931
      %v1933 = vmul.f32 %v1931, %v1932
      %v1934 = vsub.f32 1.0, %v1933
      %v1935 = vmul.f32 %v1932, %v1934
      %v1936 = vadd.f32 %v1932, %v1935
      %vm1937 = vweird.f32 %v1931
      %vm1938 = vweird.f32 %v1932
      %vm1939 = vmor %vm1937, %vm1938
      %v1940 = vsel %vm1939, %v1932, %v1936
      %v1941 = vand.u32 2147483647, %v1931
      %vm1942 = vcmp.eq.f32.partialorder %v1941, 8.507059e+37
      %v1943 = vand.u32 %v1931, 2147483648
      %v1944 = vor.u32 1.1754944e-38, %v1943
      %v1945 = vsel %vm1942, %v1944, %v1940
      %v1946 = vmul.f32 1.0, %v1945
      %v1947 = vadd.f32 %v1725, %v1911
      %v1948 = vxor.u32 %v1947, 2147483648
      %v1949 = vmul.f32 %v1948, 1.442695
      %v1950 = vpow.pop %v1949
      %v1951 = vadd.f32 %v1950, 1.0
      %v1952 = vrcp.pop %v1951
      %v1953 = vmul.f32 %v1951, %v1952
      %v1954 = vsub.f32 1.0, %v1953
      %v1955 = vmul.f32 %v1952, %v1954
      %v1956 = vadd.f32 %v1952, %v1955
      %vm1957 = vweird.f32 %v1951
      %vm1958 = vweird.f32 %v1952
      %vm1959 = vmor %vm1957, %vm1958
      %v1960 = vsel %vm1959, %v1952, %v1956
      %v1961 = vand.u32 2147483647, %v1951
      %vm1962 = vcmp.eq.f32.partialorder %v1961, 8.507059e+37
      %v1963 = vand.u32 %v1951, 2147483648
      %v1964 = vor.u32 1.1754944e-38, %v1963
      %v1965 = vsel %vm1962, %v1964, %v1960
      %v1966 = vmul.f32 1.0, %v1965
      %v1967 = vmul.f32 %v1946, %v1924
      %v1968 = vadd.f32 %v1726, %v1967
      %v1969 = vtanh.pop %v1968
      %v1970 = vsub.f32 1.0, %v1966
      %v1971 = vmul.f32 %v1970, %v1969
      %v1972 = vmul.f32 %v1966, %v1722
      %v1973 = vadd.f32 %v1971, %v1972
      %vm1974 = vcmp.gt.s32.totalorder %v396, 5
      %v1975 = vsel %vm1974, 1, 0
      %1976 = vset.pattern.permute.xlu0 0
      %1977 = vperm.xlu0 %1976, %v1975
      %v1978 = vpop.permute.xlu0 %1977
      %vm1979 = vcmp.eq.s32.totalorder %v1978, 1
      %v1980 = vsel %vm1979, %v1973, %v1722
      %1981 = vst [vmem:[#allocation11] sm:$0xff] %v1980
    $region61: #{tpu_custom_call.1} parent=1 // pred_fallthru
      _
    %p1982 = scmp.gt.s32.totalorder %s397, 6
    // Predicated region
    $region62: #{tpu_custom_call.1} parent=1 // pred_check
      %p1983 = pneg %p1982
    $region63: #{tpu_custom_call.1} parent=1 // pred_check_branch
      %1985 = sbr.rel (%p1983) target = $region65
    $region64: #{tpu_custom_call.1} parent=1 // pred_region
      %v1986 = vld [vmem:[#allocation11] sm:$0xff]
      %s1987 = scalar_lea.vmem [#allocation2], 144
      %v1988 = vld [vmem:[%s1987] sm:$0xff]
      %v1989 = vld [vmem:[%s1987 + $0x8] sm:$0xff]
      %v1990 = vld [vmem:[%s1987 + $0x10] sm:$0xff]
      %v1991 = vpack.c.bf16 %v1986, %v1986
      %v1992 = vld [vmem:[#allocation10] sm:$0xff]
      %v1993 = vld [vmem:[#allocation10 + $0x8] sm:$0xf]
      %v1994 = vld [vmem:[#allocation10 + $0xc] sm:$0xff]
      %v1995 = vld [vmem:[#allocation10 + $0x14] sm:$0xf]
      %v1996 = vld [vmem:[#allocation10 + $0x18] sm:$0xff]
      %v1997 = vld [vmem:[#allocation10 + $0x20] sm:$0xf]
      %v1998 = vld [vmem:[#allocation10 + $0x24] sm:$0xff]
      %v1999 = vld [vmem:[#allocation10 + $0x2c] sm:$0xf]
      %v2000 = vld [vmem:[#allocation10 + $0x30] sm:$0xff]
      %v2001 = vld [vmem:[#allocation10 + $0x38] sm:$0xf]
      %v2002 = vld [vmem:[#allocation10 + $0x3c] sm:$0xff]
      %v2003 = vld [vmem:[#allocation10 + $0x44] sm:$0xf]
      %v2004 = vld [vmem:[#allocation10 + $0x48] sm:$0xff]
      %v2005 = vld [vmem:[#allocation10 + $0x50] sm:$0xf]
      %v2006 = vld [vmem:[#allocation10 + $0x54] sm:$0xff]
      %v2007 = vld [vmem:[#allocation10 + $0x5c] sm:$0xf]
      %v2008 = vld [vmem:[#allocation10 + $0x60] sm:$0xff]
      %v2009 = vld [vmem:[#allocation10 + $0x68] sm:$0xf]
      %v2010 = vld [vmem:[#allocation10 + $0x6c] sm:$0xff]
      %v2011 = vld [vmem:[#allocation10 + $0x74] sm:$0xf]
      %v2012 = vld [vmem:[#allocation10 + $0x78] sm:$0xff]
      %v2013 = vld [vmem:[#allocation10 + $0x80] sm:$0xf]
      %v2014 = vld [vmem:[#allocation10 + $0x84] sm:$0xff]
      %v2015 = vld [vmem:[#allocation10 + $0x8c] sm:$0xf]
      %v2016 = vld [vmem:[#allocation10 + $0x90] sm:$0xff]
      %v2017 = vld [vmem:[#allocation10 + $0x98] sm:$0xf]
      %v2018 = vld [vmem:[#allocation10 + $0x9c] sm:$0xff]
      %v2019 = vld [vmem:[#allocation10 + $0xa4] sm:$0xf]
      %v2020 = vld [vmem:[#allocation10 + $0xa8] sm:$0xff]
      %v2021 = vld [vmem:[#allocation10 + $0xb0] sm:$0xf]
      %v2022 = vld [vmem:[#allocation10 + $0xb4] sm:$0xff]
      %v2023 = vld [vmem:[#allocation10 + $0xbc] sm:$0xf]
      %v2056 = vunpack.c.l.b16 %v1992
      %v2057 = vunpack.c.h.b16 %v1992
      %v2058 = vunpack.c.l.b16 %v1993
      %v2059 = vunpack.c.l.b16 %v1994
      %v2060 = vunpack.c.h.b16 %v1994
      %v2061 = vunpack.c.l.b16 %v1995
      %v2062 = vunpack.c.l.b16 %v1996
      %v2063 = vunpack.c.h.b16 %v1996
      %v2064 = vunpack.c.l.b16 %v1997
      %v2065 = vunpack.c.l.b16 %v1998
      %v2066 = vunpack.c.h.b16 %v1998
      %v2067 = vunpack.c.l.b16 %v1999
      %v2068 = vunpack.c.l.b16 %v2000
      %v2069 = vunpack.c.h.b16 %v2000
      %v2070 = vunpack.c.l.b16 %v2001
      %v2071 = vunpack.c.l.b16 %v2002
      %v2072 = vunpack.c.h.b16 %v2002
      %v2073 = vunpack.c.l.b16 %v2003
      %v2074 = vunpack.c.l.b16 %v2004
      %v2075 = vunpack.c.h.b16 %v2004
      %v2076 = vunpack.c.l.b16 %v2005
      %v2077 = vunpack.c.l.b16 %v2006
      %v2078 = vunpack.c.h.b16 %v2006
      %v2079 = vunpack.c.l.b16 %v2007
      %v2080 = vunpack.c.l.b16 %v2008
      %v2081 = vunpack.c.h.b16 %v2008
      %v2082 = vunpack.c.l.b16 %v2009
      %v2083 = vunpack.c.l.b16 %v2010
      %v2084 = vunpack.c.h.b16 %v2010
      %v2085 = vunpack.c.l.b16 %v2011
      %v2086 = vunpack.c.l.b16 %v2012
      %v2087 = vunpack.c.h.b16 %v2012
      %v2088 = vunpack.c.l.b16 %v2013
      %v2089 = vunpack.c.l.b16 %v2014
      %v2090 = vunpack.c.h.b16 %v2014
      %v2091 = vunpack.c.l.b16 %v2015
      %v2092 = vunpack.c.l.b16 %v2016
      %v2093 = vunpack.c.h.b16 %v2016
      %v2094 = vunpack.c.l.b16 %v2017
      %v2095 = vunpack.c.l.b16 %v2018
      %v2096 = vunpack.c.h.b16 %v2018
      %v2097 = vunpack.c.l.b16 %v2019
      %v2098 = vunpack.c.l.b16 %v2020
      %v2099 = vunpack.c.h.b16 %v2020
      %v2100 = vunpack.c.l.b16 %v2021
      %v2101 = vunpack.c.l.b16 %v2022
      %v2102 = vunpack.c.h.b16 %v2022
      %v2103 = vunpack.c.l.b16 %v2023
      %v2104 = vpack.c.b16 %v2059, %v2056
      %v2105 = vpack.c.b16 %v2060, %v2057
      %v2106 = vpack.c.b16 %v2061, %v2058
      %v2107 = vpack.c.b16 %v2065, %v2062
      %v2108 = vpack.c.b16 %v2066, %v2063
      %v2109 = vpack.c.b16 %v2067, %v2064
      %v2110 = vpack.c.b16 %v2071, %v2068
      %v2111 = vpack.c.b16 %v2072, %v2069
      %v2112 = vpack.c.b16 %v2073, %v2070
      %v2113 = vpack.c.b16 %v2077, %v2074
      %v2114 = vpack.c.b16 %v2078, %v2075
      %v2115 = vpack.c.b16 %v2079, %v2076
      %v2116 = vpack.c.b16 %v2083, %v2080
      %v2117 = vpack.c.b16 %v2084, %v2081
      %v2118 = vpack.c.b16 %v2085, %v2082
      %v2119 = vpack.c.b16 %v2089, %v2086
      %v2120 = vpack.c.b16 %v2090, %v2087
      %v2121 = vpack.c.b16 %v2091, %v2088
      %v2122 = vpack.c.b16 %v2095, %v2092
      %v2123 = vpack.c.b16 %v2096, %v2093
      %v2124 = vpack.c.b16 %v2097, %v2094
      %v2125 = vpack.c.b16 %v2101, %v2098
      %v2126 = vpack.c.b16 %v2102, %v2099
      %v2127 = vpack.c.b16 %v2103, %v2100
      %2152 = vmatpush.bf16.msra.mxu0 %v2125
      %2153 = vmatpush.bf16.msra.mxu0 %v2122
      %2154 = vmatpush.bf16.msra.mxu0 %v2119
      %2155 = vmatpush.bf16.msra.mxu0 %v2116
      %2156 = vmatpush.bf16.msra.mxu0 %v2113
      %2157 = vmatpush.bf16.msra.mxu0 %v2110
      %2158 = vmatpush.bf16.msra.mxu0 %v2107
      %2159 = vmatpush.bf16.msra.mxu0 %v2104
      %2160 = vmatmul.bf16.gmra.mxu0 %v1991
      %v2161 = vpop.f32.mrf.mxu0
      %v2162 = vadd.f32 %v390, %v2161
      %v2163 = vpop.f32.mrf.mxu0
      %2164 = vdwg.mxu0
      %2165 = vmatpush.bf16.msra.mxu0 %v2126
      %2166 = vmatpush.bf16.msra.mxu0 %v2123
      %2167 = vmatpush.bf16.msra.mxu0 %v2120
      %2168 = vmatpush.bf16.msra.mxu0 %v2117
      %2169 = vmatpush.bf16.msra.mxu0 %v2114
      %2170 = vmatpush.bf16.msra.mxu0 %v2111
      %2171 = vmatpush.bf16.msra.mxu0 %v2108
      %2172 = vmatpush.bf16.msra.mxu0 %v2105
      %2173 = vmatmul.bf16.gmra.mxu0 %v1991
      %v2174 = vpop.f32.mrf.mxu0
      %v2175 = vadd.f32 %v391, %v2174
      %v2176 = vpop.f32.mrf.mxu0
      %2177 = vdwg.mxu0
      %2178 = vmatpush.bf16.msra.mxu0 %v2127
      %2179 = vmatpush.bf16.msra.mxu0 %v2124
      %2180 = vmatpush.bf16.msra.mxu0 %v2121
      %2181 = vmatpush.bf16.msra.mxu0 %v2118
      %2182 = vmatpush.bf16.msra.mxu0 %v2115
      %2183 = vmatpush.bf16.msra.mxu0 %v2112
      %2184 = vmatpush.bf16.msra.mxu0 %v2109
      %2185 = vmatpush.bf16.msra.mxu0 %v2106
      %2186 = vmatmul.bf16.gmra.mxu0 %v1991
      %v2187 = vpop.f32.mrf.mxu0
      %v2188 = vadd.f32 %v392, %v2187
      %v2189 = vpop.f32.mrf.mxu0
      %2190 = vdwg.mxu0
      %v2191 = vadd.f32 %v1988, %v2162
      %v2192 = vxor.u32 %v2191, 2147483648
      %v2193 = vmul.f32 %v2192, 1.442695
      %v2194 = vpow.pop %v2193
      %v2195 = vadd.f32 %v2194, 1.0
      %v2196 = vrcp.pop %v2195
      %v2197 = vmul.f32 %v2195, %v2196
      %v2198 = vsub.f32 1.0, %v2197
      %v2199 = vmul.f32 %v2196, %v2198
      %v2200 = vadd.f32 %v2196, %v2199
      %vm2201 = vweird.f32 %v2195
      %vm2202 = vweird.f32 %v2196
      %vm2203 = vmor %vm2201, %vm2202
      %v2204 = vsel %vm2203, %v2196, %v2200
      %v2205 = vand.u32 2147483647, %v2195
      %vm2206 = vcmp.eq.f32.partialorder %v2205, 8.507059e+37
      %v2207 = vand.u32 %v2195, 2147483648
      %v2208 = vor.u32 1.1754944e-38, %v2207
      %v2209 = vsel %vm2206, %v2208, %v2204
      %v2210 = vmul.f32 1.0, %v2209
      %v2211 = vadd.f32 %v1989, %v2175
      %v2212 = vxor.u32 %v2211, 2147483648
      %v2213 = vmul.f32 %v2212, 1.442695
      %v2214 = vpow.pop %v2213
      %v2215 = vadd.f32 %v2214, 1.0
      %v2216 = vrcp.pop %v2215
      %v2217 = vmul.f32 %v2215, %v2216
      %v2218 = vsub.f32 1.0, %v2217
      %v2219 = vmul.f32 %v2216, %v2218
      %v2220 = vadd.f32 %v2216, %v2219
      %vm2221 = vweird.f32 %v2215
      %vm2222 = vweird.f32 %v2216
      %vm2223 = vmor %vm2221, %vm2222
      %v2224 = vsel %vm2223, %v2216, %v2220
      %v2225 = vand.u32 2147483647, %v2215
      %vm2226 = vcmp.eq.f32.partialorder %v2225, 8.507059e+37
      %v2227 = vand.u32 %v2215, 2147483648
      %v2228 = vor.u32 1.1754944e-38, %v2227
      %v2229 = vsel %vm2226, %v2228, %v2224
      %v2230 = vmul.f32 1.0, %v2229
      %v2231 = vmul.f32 %v2210, %v2188
      %v2232 = vadd.f32 %v1990, %v2231
      %v2233 = vtanh.pop %v2232
      %v2234 = vsub.f32 1.0, %v2230
      %v2235 = vmul.f32 %v2234, %v2233
      %v2236 = vmul.f32 %v2230, %v1986
      %v2237 = vadd.f32 %v2235, %v2236
      %vm2238 = vcmp.gt.s32.totalorder %v396, 6
      %v2239 = vsel %vm2238, 1, 0
      %2240 = vset.pattern.permute.xlu0 0
      %2241 = vperm.xlu0 %2240, %v2239
      %v2242 = vpop.permute.xlu0 %2241
      %vm2243 = vcmp.eq.s32.totalorder %v2242, 1
      %v2244 = vsel %vm2243, %v2237, %v1986
      %2245 = vst [vmem:[#allocation11] sm:$0xff] %v2244
    $region65: #{tpu_custom_call.1} parent=1 // pred_fallthru
      _
    %p2246 = scmp.gt.s32.totalorder %s397, 7
    // Predicated region
    $region66: #{tpu_custom_call.1} parent=1 // pred_check
      %p2247 = pneg %p2246
    $region67: #{tpu_custom_call.1} parent=1 // pred_check_branch
      %2249 = sbr.rel (%p2247) target = $region69
    $region68: #{tpu_custom_call.1} parent=1 // pred_region
      %v2250 = vld [vmem:[#allocation11] sm:$0xff]
      %s2251 = scalar_lea.vmem [#allocation2], 168
      %v2252 = vld [vmem:[%s2251] sm:$0xff]
      %v2253 = vld [vmem:[%s2251 + $0x8] sm:$0xff]
      %v2254 = vld [vmem:[%s2251 + $0x10] sm:$0xff]
      %v2255 = vpack.c.bf16 %v2250, %v2250
      %v2256 = vld [vmem:[#allocation10] sm:$0xff]
      %v2257 = vld [vmem:[#allocation10 + $0x8] sm:$0xf]
      %v2258 = vld [vmem:[#allocation10 + $0xc] sm:$0xff]
      %v2259 = vld [vmem:[#allocation10 + $0x14] sm:$0xf]
      %v2260 = vld [vmem:[#allocation10 + $0x18] sm:$0xff]
      %v2261 = vld [vmem:[#allocation10 + $0x20] sm:$0xf]
      %v2262 = vld [vmem:[#allocation10 + $0x24] sm:$0xff]
      %v2263 = vld [vmem:[#allocation10 + $0x2c] sm:$0xf]
      %v2264 = vld [vmem:[#allocation10 + $0x30] sm:$0xff]
      %v2265 = vld [vmem:[#allocation10 + $0x38] sm:$0xf]
      %v2266 = vld [vmem:[#allocation10 + $0x3c] sm:$0xff]
      %v2267 = vld [vmem:[#allocation10 + $0x44] sm:$0xf]
      %v2268 = vld [vmem:[#allocation10 + $0x48] sm:$0xff]
      %v2269 = vld [vmem:[#allocation10 + $0x50] sm:$0xf]
      %v2270 = vld [vmem:[#allocation10 + $0x54] sm:$0xff]
      %v2271 = vld [vmem:[#allocation10 + $0x5c] sm:$0xf]
      %v2272 = vld [vmem:[#allocation10 + $0x60] sm:$0xff]
      %v2273 = vld [vmem:[#allocation10 + $0x68] sm:$0xf]
      %v2274 = vld [vmem:[#allocation10 + $0x6c] sm:$0xff]
      %v2275 = vld [vmem:[#allocation10 + $0x74] sm:$0xf]
      %v2276 = vld [vmem:[#allocation10 + $0x78] sm:$0xff]
      %v2277 = vld [vmem:[#allocation10 + $0x80] sm:$0xf]
      %v2278 = vld [vmem:[#allocation10 + $0x84] sm:$0xff]
      %v2279 = vld [vmem:[#allocation10 + $0x8c] sm:$0xf]
      %v2280 = vld [vmem:[#allocation10 + $0x90] sm:$0xff]
      %v2281 = vld [vmem:[#allocation10 + $0x98] sm:$0xf]
      %v2282 = vld [vmem:[#allocation10 + $0x9c] sm:$0xff]
      %v2283 = vld [vmem:[#allocation10 + $0xa4] sm:$0xf]
      %v2284 = vld [vmem:[#allocation10 + $0xa8] sm:$0xff]
      %v2285 = vld [vmem:[#allocation10 + $0xb0] sm:$0xf]
      %v2286 = vld [vmem:[#allocation10 + $0xb4] sm:$0xff]
      %v2287 = vld [vmem:[#allocation10 + $0xbc] sm:$0xf]
      %v2320 = vunpack.c.l.b16 %v2256
      %v2321 = vunpack.c.h.b16 %v2256
      %v2322 = vunpack.c.l.b16 %v2257
      %v2323 = vunpack.c.l.b16 %v2258
      %v2324 = vunpack.c.h.b16 %v2258
      %v2325 = vunpack.c.l.b16 %v2259
      %v2326 = vunpack.c.l.b16 %v2260
      %v2327 = vunpack.c.h.b16 %v2260
      %v2328 = vunpack.c.l.b16 %v2261
      %v2329 = vunpack.c.l.b16 %v2262
      %v2330 = vunpack.c.h.b16 %v2262
      %v2331 = vunpack.c.l.b16 %v2263
      %v2332 = vunpack.c.l.b16 %v2264
      %v2333 = vunpack.c.h.b16 %v2264
      %v2334 = vunpack.c.l.b16 %v2265
      %v2335 = vunpack.c.l.b16 %v2266
      %v2336 = vunpack.c.h.b16 %v2266
      %v2337 = vunpack.c.l.b16 %v2267
      %v2338 = vunpack.c.l.b16 %v2268
      %v2339 = vunpack.c.h.b16 %v2268
      %v2340 = vunpack.c.l.b16 %v2269
      %v2341 = vunpack.c.l.b16 %v2270
      %v2342 = vunpack.c.h.b16 %v2270
      %v2343 = vunpack.c.l.b16 %v2271
      %v2344 = vunpack.c.l.b16 %v2272
      %v2345 = vunpack.c.h.b16 %v2272
      %v2346 = vunpack.c.l.b16 %v2273
      %v2347 = vunpack.c.l.b16 %v2274
      %v2348 = vunpack.c.h.b16 %v2274
      %v2349 = vunpack.c.l.b16 %v2275
      %v2350 = vunpack.c.l.b16 %v2276
      %v2351 = vunpack.c.h.b16 %v2276
      %v2352 = vunpack.c.l.b16 %v2277
      %v2353 = vunpack.c.l.b16 %v2278
      %v2354 = vunpack.c.h.b16 %v2278
      %v2355 = vunpack.c.l.b16 %v2279
      %v2356 = vunpack.c.l.b16 %v2280
      %v2357 = vunpack.c.h.b16 %v2280
      %v2358 = vunpack.c.l.b16 %v2281
      %v2359 = vunpack.c.l.b16 %v2282
      %v2360 = vunpack.c.h.b16 %v2282
      %v2361 = vunpack.c.l.b16 %v2283
      %v2362 = vunpack.c.l.b16 %v2284
      %v2363 = vunpack.c.h.b16 %v2284
      %v2364 = vunpack.c.l.b16 %v2285
      %v2365 = vunpack.c.l.b16 %v2286
      %v2366 = vunpack.c.h.b16 %v2286
      %v2367 = vunpack.c.l.b16 %v2287
      %v2368 = vpack.c.b16 %v2323, %v2320
      %v2369 = vpack.c.b16 %v2324, %v2321
      %v2370 = vpack.c.b16 %v2325, %v2322
      %v2371 = vpack.c.b16 %v2329, %v2326
      %v2372 = vpack.c.b16 %v2330, %v2327
      %v2373 = vpack.c.b16 %v2331, %v2328
      %v2374 = vpack.c.b16 %v2335, %v2332
      %v2375 = vpack.c.b16 %v2336, %v2333
      %v2376 = vpack.c.b16 %v2337, %v2334
      %v2377 = vpack.c.b16 %v2341, %v2338
      %v2378 = vpack.c.b16 %v2342, %v2339
      %v2379 = vpack.c.b16 %v2343, %v2340
      %v2380 = vpack.c.b16 %v2347, %v2344
      %v2381 = vpack.c.b16 %v2348, %v2345
      %v2382 = vpack.c.b16 %v2349, %v2346
      %v2383 = vpack.c.b16 %v2353, %v2350
      %v2384 = vpack.c.b16 %v2354, %v2351
      %v2385 = vpack.c.b16 %v2355, %v2352
      %v2386 = vpack.c.b16 %v2359, %v2356
      %v2387 = vpack.c.b16 %v2360, %v2357
      %v2388 = vpack.c.b16 %v2361, %v2358
      %v2389 = vpack.c.b16 %v2365, %v2362
      %v2390 = vpack.c.b16 %v2366, %v2363
      %v2391 = vpack.c.b16 %v2367, %v2364
      %2416 = vmatpush.bf16.msra.mxu0 %v2389
      %2417 = vmatpush.bf16.msra.mxu0 %v2386
      %2418 = vmatpush.bf16.msra.mxu0 %v2383
      %2419 = vmatpush.bf16.msra.mxu0 %v2380
      %2420 = vmatpush.bf16.msra.mxu0 %v2377
      %2421 = vmatpush.bf16.msra.mxu0 %v2374
      %2422 = vmatpush.bf16.msra.mxu0 %v2371
      %2423 = vmatpush.bf16.msra.mxu0 %v2368
      %2424 = vmatmul.bf16.gmra.mxu0 %v2255
      %v2425 = vpop.f32.mrf.mxu0
      %v2426 = vadd.f32 %v390, %v2425
      %v2427 = vpop.f32.mrf.mxu0
      %2428 = vdwg.mxu0
      %2429 = vmatpush.bf16.msra.mxu0 %v2390
      %2430 = vmatpush.bf16.msra.mxu0 %v2387
      %2431 = vmatpush.bf16.msra.mxu0 %v2384
      %2432 = vmatpush.bf16.msra.mxu0 %v2381
      %2433 = vmatpush.bf16.msra.mxu0 %v2378
      %2434 = vmatpush.bf16.msra.mxu0 %v2375
      %2435 = vmatpush.bf16.msra.mxu0 %v2372
      %2436 = vmatpush.bf16.msra.mxu0 %v2369
      %2437 = vmatmul.bf16.gmra.mxu0 %v2255
      %v2438 = vpop.f32.mrf.mxu0
      %v2439 = vadd.f32 %v391, %v2438
      %v2440 = vpop.f32.mrf.mxu0
      %2441 = vdwg.mxu0
      %2442 = vmatpush.bf16.msra.mxu0 %v2391
      %2443 = vmatpush.bf16.msra.mxu0 %v2388
      %2444 = vmatpush.bf16.msra.mxu0 %v2385
      %2445 = vmatpush.bf16.msra.mxu0 %v2382
      %2446 = vmatpush.bf16.msra.mxu0 %v2379
      %2447 = vmatpush.bf16.msra.mxu0 %v2376
      %2448 = vmatpush.bf16.msra.mxu0 %v2373
      %2449 = vmatpush.bf16.msra.mxu0 %v2370
      %2450 = vmatmul.bf16.gmra.mxu0 %v2255
      %v2451 = vpop.f32.mrf.mxu0
      %v2452 = vadd.f32 %v392, %v2451
      %v2453 = vpop.f32.mrf.mxu0
      %2454 = vdwg.mxu0
      %v2455 = vadd.f32 %v2252, %v2426
      %v2456 = vxor.u32 %v2455, 2147483648
      %v2457 = vmul.f32 %v2456, 1.442695
      %v2458 = vpow.pop %v2457
      %v2459 = vadd.f32 %v2458, 1.0
      %v2460 = vrcp.pop %v2459
      %v2461 = vmul.f32 %v2459, %v2460
      %v2462 = vsub.f32 1.0, %v2461
      %v2463 = vmul.f32 %v2460, %v2462
      %v2464 = vadd.f32 %v2460, %v2463
      %vm2465 = vweird.f32 %v2459
      %vm2466 = vweird.f32 %v2460
      %vm2467 = vmor %vm2465, %vm2466
      %v2468 = vsel %vm2467, %v2460, %v2464
      %v2469 = vand.u32 2147483647, %v2459
      %vm2470 = vcmp.eq.f32.partialorder %v2469, 8.507059e+37
      %v2471 = vand.u32 %v2459, 2147483648
      %v2472 = vor.u32 1.1754944e-38, %v2471
      %v2473 = vsel %vm2470, %v2472, %v2468
      %v2474 = vmul.f32 1.0, %v2473
      %v2475 = vadd.f32 %v2253, %v2439
      %v2476 = vxor.u32 %v2475, 2147483648
      %v2477 = vmul.f32 %v2476, 1.442695
      %v2478 = vpow.pop %v2477
      %v2479 = vadd.f32 %v2478, 1.0
      %v2480 = vrcp.pop %v2479
      %v2481 = vmul.f32 %v2479, %v2480
      %v2482 = vsub.f32 1.0, %v2481
      %v2483 = vmul.f32 %v2480, %v2482
      %v2484 = vadd.f32 %v2480, %v2483
      %vm2485 = vweird.f32 %v2479
      %vm2486 = vweird.f32 %v2480
      %vm2487 = vmor %vm2485, %vm2486
      %v2488 = vsel %vm2487, %v2480, %v2484
      %v2489 = vand.u32 2147483647, %v2479
      %vm2490 = vcmp.eq.f32.partialorder %v2489, 8.507059e+37
      %v2491 = vand.u32 %v2479, 2147483648
      %v2492 = vor.u32 1.1754944e-38, %v2491
      %v2493 = vsel %vm2490, %v2492, %v2488
      %v2494 = vmul.f32 1.0, %v2493
      %v2495 = vmul.f32 %v2474, %v2452
      %v2496 = vadd.f32 %v2254, %v2495
      %v2497 = vtanh.pop %v2496
      %v2498 = vsub.f32 1.0, %v2494
      %v2499 = vmul.f32 %v2498, %v2497
      %v2500 = vmul.f32 %v2494, %v2250
      %v2501 = vadd.f32 %v2499, %v2500
      %vm2502 = vcmp.gt.s32.totalorder %v396, 7
      %v2503 = vsel %vm2502, 1, 0
      %2504 = vset.pattern.permute.xlu0 0
      %2505 = vperm.xlu0 %2504, %v2503
      %v2506 = vpop.permute.xlu0 %2505
      %vm2507 = vcmp.eq.s32.totalorder %v2506, 1
      %v2508 = vsel %vm2507, %v2501, %v2250
      %2509 = vst [vmem:[#allocation11] sm:$0xff] %v2508
    $region69: #{tpu_custom_call.1} parent=1 // pred_fallthru
      _
    %p2510 = scmp.gt.s32.totalorder %s397, 8
    // Predicated region
    $region70: #{tpu_custom_call.1} parent=1 // pred_check
      %p2511 = pneg %p2510
    $region71: #{tpu_custom_call.1} parent=1 // pred_check_branch
      %2513 = sbr.rel (%p2511) target = $region73
    $region72: #{tpu_custom_call.1} parent=1 // pred_region
      %v2514 = vld [vmem:[#allocation11] sm:$0xff]
      %s2515 = scalar_lea.vmem [#allocation2], 192
      %v2516 = vld [vmem:[%s2515] sm:$0xff]
      %v2517 = vld [vmem:[%s2515 + $0x8] sm:$0xff]
      %v2518 = vld [vmem:[%s2515 + $0x10] sm:$0xff]
      %v2519 = vpack.c.bf16 %v2514, %v2514
      %v2520 = vld [vmem:[#allocation10] sm:$0xff]
      %v2521 = vld [vmem:[#allocation10 + $0x8] sm:$0xf]
      %v2522 = vld [vmem:[#allocation10 + $0xc] sm:$0xff]
      %v2523 = vld [vmem:[#allocation10 + $0x14] sm:$0xf]
      %v2524 = vld [vmem:[#allocation10 + $0x18] sm:$0xff]
      %v2525 = vld [vmem:[#allocation10 + $0x20] sm:$0xf]
      %v2526 = vld [vmem:[#allocation10 + $0x24] sm:$0xff]
      %v2527 = vld [vmem:[#allocation10 + $0x2c] sm:$0xf]
      %v2528 = vld [vmem:[#allocation10 + $0x30] sm:$0xff]
      %v2529 = vld [vmem:[#allocation10 + $0x38] sm:$0xf]
      %v2530 = vld [vmem:[#allocation10 + $0x3c] sm:$0xff]
      %v2531 = vld [vmem:[#allocation10 + $0x44] sm:$0xf]
      %v2532 = vld [vmem:[#allocation10 + $0x48] sm:$0xff]
      %v2533 = vld [vmem:[#allocation10 + $0x50] sm:$0xf]
      %v2534 = vld [vmem:[#allocation10 + $0x54] sm:$0xff]
      %v2535 = vld [vmem:[#allocation10 + $0x5c] sm:$0xf]
      %v2536 = vld [vmem:[#allocation10 + $0x60] sm:$0xff]
      %v2537 = vld [vmem:[#allocation10 + $0x68] sm:$0xf]
      %v2538 = vld [vmem:[#allocation10 + $0x6c] sm:$0xff]
      %v2539 = vld [vmem:[#allocation10 + $0x74] sm:$0xf]
      %v2540 = vld [vmem:[#allocation10 + $0x78] sm:$0xff]
      %v2541 = vld [vmem:[#allocation10 + $0x80] sm:$0xf]
      %v2542 = vld [vmem:[#allocation10 + $0x84] sm:$0xff]
      %v2543 = vld [vmem:[#allocation10 + $0x8c] sm:$0xf]
      %v2544 = vld [vmem:[#allocation10 + $0x90] sm:$0xff]
      %v2545 = vld [vmem:[#allocation10 + $0x98] sm:$0xf]
      %v2546 = vld [vmem:[#allocation10 + $0x9c] sm:$0xff]
      %v2547 = vld [vmem:[#allocation10 + $0xa4] sm:$0xf]
      %v2548 = vld [vmem:[#allocation10 + $0xa8] sm:$0xff]
      %v2549 = vld [vmem:[#allocation10 + $0xb0] sm:$0xf]
      %v2550 = vld [vmem:[#allocation10 + $0xb4] sm:$0xff]
      %v2551 = vld [vmem:[#allocation10 + $0xbc] sm:$0xf]
      %v2584 = vunpack.c.l.b16 %v2520
      %v2585 = vunpack.c.h.b16 %v2520
      %v2586 = vunpack.c.l.b16 %v2521
      %v2587 = vunpack.c.l.b16 %v2522
      %v2588 = vunpack.c.h.b16 %v2522
      %v2589 = vunpack.c.l.b16 %v2523
      %v2590 = vunpack.c.l.b16 %v2524
      %v2591 = vunpack.c.h.b16 %v2524
      %v2592 = vunpack.c.l.b16 %v2525
      %v2593 = vunpack.c.l.b16 %v2526
      %v2594 = vunpack.c.h.b16 %v2526
      %v2595 = vunpack.c.l.b16 %v2527
      %v2596 = vunpack.c.l.b16 %v2528
      %v2597 = vunpack.c.h.b16 %v2528
      %v2598 = vunpack.c.l.b16 %v2529
      %v2599 = vunpack.c.l.b16 %v2530
      %v2600 = vunpack.c.h.b16 %v2530
      %v2601 = vunpack.c.l.b16 %v2531
      %v2602 = vunpack.c.l.b16 %v2532
      %v2603 = vunpack.c.h.b16 %v2532
      %v2604 = vunpack.c.l.b16 %v2533
      %v2605 = vunpack.c.l.b16 %v2534
      %v2606 = vunpack.c.h.b16 %v2534
      %v2607 = vunpack.c.l.b16 %v2535
      %v2608 = vunpack.c.l.b16 %v2536
      %v2609 = vunpack.c.h.b16 %v2536
      %v2610 = vunpack.c.l.b16 %v2537
      %v2611 = vunpack.c.l.b16 %v2538
      %v2612 = vunpack.c.h.b16 %v2538
      %v2613 = vunpack.c.l.b16 %v2539
      %v2614 = vunpack.c.l.b16 %v2540
      %v2615 = vunpack.c.h.b16 %v2540
      %v2616 = vunpack.c.l.b16 %v2541
      %v2617 = vunpack.c.l.b16 %v2542
      %v2618 = vunpack.c.h.b16 %v2542
      %v2619 = vunpack.c.l.b16 %v2543
      %v2620 = vunpack.c.l.b16 %v2544
      %v2621 = vunpack.c.h.b16 %v2544
      %v2622 = vunpack.c.l.b16 %v2545
      %v2623 = vunpack.c.l.b16 %v2546
      %v2624 = vunpack.c.h.b16 %v2546
      %v2625 = vunpack.c.l.b16 %v2547
      %v2626 = vunpack.c.l.b16 %v2548
      %v2627 = vunpack.c.h.b16 %v2548
      %v2628 = vunpack.c.l.b16 %v2549
      %v2629 = vunpack.c.l.b16 %v2550
      %v2630 = vunpack.c.h.b16 %v2550
      %v2631 = vunpack.c.l.b16 %v2551
      %v2632 = vpack.c.b16 %v2587, %v2584
      %v2633 = vpack.c.b16 %v2588, %v2585
      %v2634 = vpack.c.b16 %v2589, %v2586
      %v2635 = vpack.c.b16 %v2593, %v2590
      %v2636 = vpack.c.b16 %v2594, %v2591
      %v2637 = vpack.c.b16 %v2595, %v2592
      %v2638 = vpack.c.b16 %v2599, %v2596
      %v2639 = vpack.c.b16 %v2600, %v2597
      %v2640 = vpack.c.b16 %v2601, %v2598
      %v2641 = vpack.c.b16 %v2605, %v2602
      %v2642 = vpack.c.b16 %v2606, %v2603
      %v2643 = vpack.c.b16 %v2607, %v2604
      %v2644 = vpack.c.b16 %v2611, %v2608
      %v2645 = vpack.c.b16 %v2612, %v2609
      %v2646 = vpack.c.b16 %v2613, %v2610
      %v2647 = vpack.c.b16 %v2617, %v2614
      %v2648 = vpack.c.b16 %v2618, %v2615
      %v2649 = vpack.c.b16 %v2619, %v2616
      %v2650 = vpack.c.b16 %v2623, %v2620
      %v2651 = vpack.c.b16 %v2624, %v2621
      %v2652 = vpack.c.b16 %v2625, %v2622
      %v2653 = vpack.c.b16 %v2629, %v2626
      %v2654 = vpack.c.b16 %v2630, %v2627
      %v2655 = vpack.c.b16 %v2631, %v2628
      %2680 = vmatpush.bf16.msra.mxu0 %v2653
      %2681 = vmatpush.bf16.msra.mxu0 %v2650
      %2682 = vmatpush.bf16.msra.mxu0 %v2647
      %2683 = vmatpush.bf16.msra.mxu0 %v2644
      %2684 = vmatpush.bf16.msra.mxu0 %v2641
      %2685 = vmatpush.bf16.msra.mxu0 %v2638
      %2686 = vmatpush.bf16.msra.mxu0 %v2635
      %2687 = vmatpush.bf16.msra.mxu0 %v2632
      %2688 = vmatmul.bf16.gmra.mxu0 %v2519
      %v2689 = vpop.f32.mrf.mxu0
      %v2690 = vadd.f32 %v390, %v2689
      %v2691 = vpop.f32.mrf.mxu0
      %2692 = vdwg.mxu0
      %2693 = vmatpush.bf16.msra.mxu0 %v2654
      %2694 = vmatpush.bf16.msra.mxu0 %v2651
      %2695 = vmatpush.bf16.msra.mxu0 %v2648
      %2696 = vmatpush.bf16.msra.mxu0 %v2645
      %2697 = vmatpush.bf16.msra.mxu0 %v2642
      %2698 = vmatpush.bf16.msra.mxu0 %v2639
      %2699 = vmatpush.bf16.msra.mxu0 %v2636
      %2700 = vmatpush.bf16.msra.mxu0 %v2633
      %2701 = vmatmul.bf16.gmra.mxu0 %v2519
      %v2702 = vpop.f32.mrf.mxu0
      %v2703 = vadd.f32 %v391, %v2702
      %v2704 = vpop.f32.mrf.mxu0
      %2705 = vdwg.mxu0
      %2706 = vmatpush.bf16.msra.mxu0 %v2655
      %2707 = vmatpush.bf16.msra.mxu0 %v2652
      %2708 = vmatpush.bf16.msra.mxu0 %v2649
      %2709 = vmatpush.bf16.msra.mxu0 %v2646
      %2710 = vmatpush.bf16.msra.mxu0 %v2643
      %2711 = vmatpush.bf16.msra.mxu0 %v2640
      %2712 = vmatpush.bf16.msra.mxu0 %v2637
      %2713 = vmatpush.bf16.msra.mxu0 %v2634
      %2714 = vmatmul.bf16.gmra.mxu0 %v2519
      %v2715 = vpop.f32.mrf.mxu0
      %v2716 = vadd.f32 %v392, %v2715
      %v2717 = vpop.f32.mrf.mxu0
      %2718 = vdwg.mxu0
      %v2719 = vadd.f32 %v2516, %v2690
      %v2720 = vxor.u32 %v2719, 2147483648
      %v2721 = vmul.f32 %v2720, 1.442695
      %v2722 = vpow.pop %v2721
      %v2723 = vadd.f32 %v2722, 1.0
      %v2724 = vrcp.pop %v2723
      %v2725 = vmul.f32 %v2723, %v2724
      %v2726 = vsub.f32 1.0, %v2725
      %v2727 = vmul.f32 %v2724, %v2726
      %v2728 = vadd.f32 %v2724, %v2727
      %vm2729 = vweird.f32 %v2723
      %vm2730 = vweird.f32 %v2724
      %vm2731 = vmor %vm2729, %vm2730
      %v2732 = vsel %vm2731, %v2724, %v2728
      %v2733 = vand.u32 2147483647, %v2723
      %vm2734 = vcmp.eq.f32.partialorder %v2733, 8.507059e+37
      %v2735 = vand.u32 %v2723, 2147483648
      %v2736 = vor.u32 1.1754944e-38, %v2735
      %v2737 = vsel %vm2734, %v2736, %v2732
      %v2738 = vmul.f32 1.0, %v2737
      %v2739 = vadd.f32 %v2517, %v2703
      %v2740 = vxor.u32 %v2739, 2147483648
      %v2741 = vmul.f32 %v2740, 1.442695
      %v2742 = vpow.pop %v2741
      %v2743 = vadd.f32 %v2742, 1.0
      %v2744 = vrcp.pop %v2743
      %v2745 = vmul.f32 %v2743, %v2744
      %v2746 = vsub.f32 1.0, %v2745
      %v2747 = vmul.f32 %v2744, %v2746
      %v2748 = vadd.f32 %v2744, %v2747
      %vm2749 = vweird.f32 %v2743
      %vm2750 = vweird.f32 %v2744
      %vm2751 = vmor %vm2749, %vm2750
      %v2752 = vsel %vm2751, %v2744, %v2748
      %v2753 = vand.u32 2147483647, %v2743
      %vm2754 = vcmp.eq.f32.partialorder %v2753, 8.507059e+37
      %v2755 = vand.u32 %v2743, 2147483648
      %v2756 = vor.u32 1.1754944e-38, %v2755
      %v2757 = vsel %vm2754, %v2756, %v2752
      %v2758 = vmul.f32 1.0, %v2757
      %v2759 = vmul.f32 %v2738, %v2716
      %v2760 = vadd.f32 %v2518, %v2759
      %v2761 = vtanh.pop %v2760
      %v2762 = vsub.f32 1.0, %v2758
      %v2763 = vmul.f32 %v2762, %v2761
      %v2764 = vmul.f32 %v2758, %v2514
      %v2765 = vadd.f32 %v2763, %v2764
      %vm2766 = vcmp.gt.s32.totalorder %v396, 8
      %v2767 = vsel %vm2766, 1, 0
      %2768 = vset.pattern.permute.xlu0 0
      %2769 = vperm.xlu0 %2768, %v2767
      %v2770 = vpop.permute.xlu0 %2769
      %vm2771 = vcmp.eq.s32.totalorder %v2770, 1
      %v2772 = vsel %vm2771, %v2765, %v2514
      %2773 = vst [vmem:[#allocation11] sm:$0xff] %v2772
    $region73: #{tpu_custom_call.1} parent=1 // pred_fallthru
      _
    %p2774 = scmp.gt.s32.totalorder %s397, 9
    // Predicated region
    $region74: #{tpu_custom_call.1} parent=1 // pred_check
      %p2775 = pneg %p2774
    $region75: #{tpu_custom_call.1} parent=1 // pred_check_branch
      %2777 = sbr.rel (%p2775) target = $region77
    $region76: #{tpu_custom_call.1} parent=1 // pred_region
      %v2778 = vld [vmem:[#allocation11] sm:$0xff]
      %s2779 = scalar_lea.vmem [#allocation2], 216
      %v2780 = vld [vmem:[%s2779] sm:$0xff]
      %v2781 = vld [vmem:[%s2779 + $0x8] sm:$0xff]
      %v2782 = vld [vmem:[%s2779 + $0x10] sm:$0xff]
      %v2783 = vpack.c.bf16 %v2778, %v2778
      %v2784 = vld [vmem:[#allocation10] sm:$0xff]
      %v2785 = vld [vmem:[#allocation10 + $0x8] sm:$0xf]
      %v2786 = vld [vmem:[#allocation10 + $0xc] sm:$0xff]
      %v2787 = vld [vmem:[#allocation10 + $0x14] sm:$0xf]
      %v2788 = vld [vmem:[#allocation10 + $0x18] sm:$0xff]
      %v2789 = vld [vmem:[#allocation10 + $0x20] sm:$0xf]
      %v2790 = vld [vmem:[#allocation10 + $0x24] sm:$0xff]
      %v2791 = vld [vmem:[#allocation10 + $0x2c] sm:$0xf]
      %v2792 = vld [vmem:[#allocation10 + $0x30] sm:$0xff]
      %v2793 = vld [vmem:[#allocation10 + $0x38] sm:$0xf]
      %v2794 = vld [vmem:[#allocation10 + $0x3c] sm:$0xff]
      %v2795 = vld [vmem:[#allocation10 + $0x44] sm:$0xf]
      %v2796 = vld [vmem:[#allocation10 + $0x48] sm:$0xff]
      %v2797 = vld [vmem:[#allocation10 + $0x50] sm:$0xf]
      %v2798 = vld [vmem:[#allocation10 + $0x54] sm:$0xff]
      %v2799 = vld [vmem:[#allocation10 + $0x5c] sm:$0xf]
      %v2800 = vld [vmem:[#allocation10 + $0x60] sm:$0xff]
      %v2801 = vld [vmem:[#allocation10 + $0x68] sm:$0xf]
      %v2802 = vld [vmem:[#allocation10 + $0x6c] sm:$0xff]
      %v2803 = vld [vmem:[#allocation10 + $0x74] sm:$0xf]
      %v2804 = vld [vmem:[#allocation10 + $0x78] sm:$0xff]
      %v2805 = vld [vmem:[#allocation10 + $0x80] sm:$0xf]
      %v2806 = vld [vmem:[#allocation10 + $0x84] sm:$0xff]
      %v2807 = vld [vmem:[#allocation10 + $0x8c] sm:$0xf]
      %v2808 = vld [vmem:[#allocation10 + $0x90] sm:$0xff]
      %v2809 = vld [vmem:[#allocation10 + $0x98] sm:$0xf]
      %v2810 = vld [vmem:[#allocation10 + $0x9c] sm:$0xff]
      %v2811 = vld [vmem:[#allocation10 + $0xa4] sm:$0xf]
      %v2812 = vld [vmem:[#allocation10 + $0xa8] sm:$0xff]
      %v2813 = vld [vmem:[#allocation10 + $0xb0] sm:$0xf]
      %v2814 = vld [vmem:[#allocation10 + $0xb4] sm:$0xff]
      %v2815 = vld [vmem:[#allocation10 + $0xbc] sm:$0xf]
      %v2848 = vunpack.c.l.b16 %v2784
      %v2849 = vunpack.c.h.b16 %v2784
      %v2850 = vunpack.c.l.b16 %v2785
      %v2851 = vunpack.c.l.b16 %v2786
      %v2852 = vunpack.c.h.b16 %v2786
      %v2853 = vunpack.c.l.b16 %v2787
      %v2854 = vunpack.c.l.b16 %v2788
      %v2855 = vunpack.c.h.b16 %v2788
      %v2856 = vunpack.c.l.b16 %v2789
      %v2857 = vunpack.c.l.b16 %v2790
      %v2858 = vunpack.c.h.b16 %v2790
      %v2859 = vunpack.c.l.b16 %v2791
      %v2860 = vunpack.c.l.b16 %v2792
      %v2861 = vunpack.c.h.b16 %v2792
      %v2862 = vunpack.c.l.b16 %v2793
      %v2863 = vunpack.c.l.b16 %v2794
      %v2864 = vunpack.c.h.b16 %v2794
      %v2865 = vunpack.c.l.b16 %v2795
      %v2866 = vunpack.c.l.b16 %v2796
      %v2867 = vunpack.c.h.b16 %v2796
      %v2868 = vunpack.c.l.b16 %v2797
      %v2869 = vunpack.c.l.b16 %v2798
      %v2870 = vunpack.c.h.b16 %v2798
      %v2871 = vunpack.c.l.b16 %v2799
      %v2872 = vunpack.c.l.b16 %v2800
      %v2873 = vunpack.c.h.b16 %v2800
      %v2874 = vunpack.c.l.b16 %v2801
      %v2875 = vunpack.c.l.b16 %v2802
      %v2876 = vunpack.c.h.b16 %v2802
      %v2877 = vunpack.c.l.b16 %v2803
      %v2878 = vunpack.c.l.b16 %v2804
      %v2879 = vunpack.c.h.b16 %v2804
      %v2880 = vunpack.c.l.b16 %v2805
      %v2881 = vunpack.c.l.b16 %v2806
      %v2882 = vunpack.c.h.b16 %v2806
      %v2883 = vunpack.c.l.b16 %v2807
      %v2884 = vunpack.c.l.b16 %v2808
      %v2885 = vunpack.c.h.b16 %v2808
      %v2886 = vunpack.c.l.b16 %v2809
      %v2887 = vunpack.c.l.b16 %v2810
      %v2888 = vunpack.c.h.b16 %v2810
      %v2889 = vunpack.c.l.b16 %v2811
      %v2890 = vunpack.c.l.b16 %v2812
      %v2891 = vunpack.c.h.b16 %v2812
      %v2892 = vunpack.c.l.b16 %v2813
      %v2893 = vunpack.c.l.b16 %v2814
      %v2894 = vunpack.c.h.b16 %v2814
      %v2895 = vunpack.c.l.b16 %v2815
      %v2896 = vpack.c.b16 %v2851, %v2848
      %v2897 = vpack.c.b16 %v2852, %v2849
      %v2898 = vpack.c.b16 %v2853, %v2850
      %v2899 = vpack.c.b16 %v2857, %v2854
      %v2900 = vpack.c.b16 %v2858, %v2855
      %v2901 = vpack.c.b16 %v2859, %v2856
      %v2902 = vpack.c.b16 %v2863, %v2860
      %v2903 = vpack.c.b16 %v2864, %v2861
      %v2904 = vpack.c.b16 %v2865, %v2862
      %v2905 = vpack.c.b16 %v2869, %v2866
      %v2906 = vpack.c.b16 %v2870, %v2867
      %v2907 = vpack.c.b16 %v2871, %v2868
      %v2908 = vpack.c.b16 %v2875, %v2872
      %v2909 = vpack.c.b16 %v2876, %v2873
      %v2910 = vpack.c.b16 %v2877, %v2874
      %v2911 = vpack.c.b16 %v2881, %v2878
      %v2912 = vpack.c.b16 %v2882, %v2879
      %v2913 = vpack.c.b16 %v2883, %v2880
      %v2914 = vpack.c.b16 %v2887, %v2884
      %v2915 = vpack.c.b16 %v2888, %v2885
      %v2916 = vpack.c.b16 %v2889, %v2886
      %v2917 = vpack.c.b16 %v2893, %v2890
      %v2918 = vpack.c.b16 %v2894, %v2891
      %v2919 = vpack.c.b16 %v2895, %v2892
      %2944 = vmatpush.bf16.msra.mxu0 %v2917
      %2945 = vmatpush.bf16.msra.mxu0 %v2914
      %2946 = vmatpush.bf16.msra.mxu0 %v2911
      %2947 = vmatpush.bf16.msra.mxu0 %v2908
      %2948 = vmatpush.bf16.msra.mxu0 %v2905
      %2949 = vmatpush.bf16.msra.mxu0 %v2902
      %2950 = vmatpush.bf16.msra.mxu0 %v2899
      %2951 = vmatpush.bf16.msra.mxu0 %v2896
      %2952 = vmatmul.bf16.gmra.mxu0 %v2783
      %v2953 = vpop.f32.mrf.mxu0
      %v2954 = vadd.f32 %v390, %v2953
      %v2955 = vpop.f32.mrf.mxu0
      %2956 = vdwg.mxu0
      %2957 = vmatpush.bf16.msra.mxu0 %v2918
      %2958 = vmatpush.bf16.msra.mxu0 %v2915
      %2959 = vmatpush.bf16.msra.mxu0 %v2912
      %2960 = vmatpush.bf16.msra.mxu0 %v2909
      %2961 = vmatpush.bf16.msra.mxu0 %v2906
      %2962 = vmatpush.bf16.msra.mxu0 %v2903
      %2963 = vmatpush.bf16.msra.mxu0 %v2900
      %2964 = vmatpush.bf16.msra.mxu0 %v2897
      %2965 = vmatmul.bf16.gmra.mxu0 %v2783
      %v2966 = vpop.f32.mrf.mxu0
      %v2967 = vadd.f32 %v391, %v2966
      %v2968 = vpop.f32.mrf.mxu0
      %2969 = vdwg.mxu0
      %2970 = vmatpush.bf16.msra.mxu0 %v2919
      %2971 = vmatpush.bf16.msra.mxu0 %v2916
      %2972 = vmatpush.bf16.msra.mxu0 %v2913
      %2973 = vmatpush.bf16.msra.mxu0 %v2910
      %2974 = vmatpush.bf16.msra.mxu0 %v2907
      %2975 = vmatpush.bf16.msra.mxu0 %v2904
      %2976 = vmatpush.bf16.msra.mxu0 %v2901
      %2977 = vmatpush.bf16.msra.mxu0 %v2898
      %2978 = vmatmul.bf16.gmra.mxu0 %v2783
      %v2979 = vpop.f32.mrf.mxu0
      %v2980 = vadd.f32 %v392, %v2979
      %v2981 = vpop.f32.mrf.mxu0
      %2982 = vdwg.mxu0
      %v2983 = vadd.f32 %v2780, %v2954
      %v2984 = vxor.u32 %v2983, 2147483648
      %v2985 = vmul.f32 %v2984, 1.442695
      %v2986 = vpow.pop %v2985
      %v2987 = vadd.f32 %v2986, 1.0
      %v2988 = vrcp.pop %v2987
      %v2989 = vmul.f32 %v2987, %v2988
      %v2990 = vsub.f32 1.0, %v2989
      %v2991 = vmul.f32 %v2988, %v2990
      %v2992 = vadd.f32 %v2988, %v2991
      %vm2993 = vweird.f32 %v2987
      %vm2994 = vweird.f32 %v2988
      %vm2995 = vmor %vm2993, %vm2994
      %v2996 = vsel %vm2995, %v2988, %v2992
      %v2997 = vand.u32 2147483647, %v2987
      %vm2998 = vcmp.eq.f32.partialorder %v2997, 8.507059e+37
      %v2999 = vand.u32 %v2987, 2147483648
      %v3000 = vor.u32 1.1754944e-38, %v2999
      %v3001 = vsel %vm2998, %v3000, %v2996
      %v3002 = vmul.f32 1.0, %v3001
      %v3003 = vadd.f32 %v2781, %v2967
      %v3004 = vxor.u32 %v3003, 2147483648
      %v3005 = vmul.f32 %v3004, 1.442695
      %v3006 = vpow.pop %v3005
      %v3007 = vadd.f32 %v3006, 1.0
      %v3008 = vrcp.pop %v3007
      %v3009 = vmul.f32 %v3007, %v3008
      %v3010 = vsub.f32 1.0, %v3009
      %v3011 = vmul.f32 %v3008, %v3010
      %v3012 = vadd.f32 %v3008, %v3011
      %vm3013 = vweird.f32 %v3007
      %vm3014 = vweird.f32 %v3008
      %vm3015 = vmor %vm3013, %vm3014
      %v3016 = vsel %vm3015, %v3008, %v3012
      %v3017 = vand.u32 2147483647, %v3007
      %vm3018 = vcmp.eq.f32.partialorder %v3017, 8.507059e+37
      %v3019 = vand.u32 %v3007, 2147483648
      %v3020 = vor.u32 1.1754944e-38, %v3019
      %v3021 = vsel %vm3018, %v3020, %v3016
      %v3022 = vmul.f32 1.0, %v3021
      %v3023 = vmul.f32 %v3002, %v2980
      %v3024 = vadd.f32 %v2782, %v3023
      %v3025 = vtanh.pop %v3024
      %v3026 = vsub.f32 1.0, %v3022
      %v3027 = vmul.f32 %v3026, %v3025
      %v3028 = vmul.f32 %v3022, %v2778
      %v3029 = vadd.f32 %v3027, %v3028
      %vm3030 = vcmp.gt.s32.totalorder %v396, 9
      %v3031 = vsel %vm3030, 1, 0
      %3032 = vset.pattern.permute.xlu0 0
      %3033 = vperm.xlu0 %3032, %v3031
      %v3034 = vpop.permute.xlu0 %3033
      %vm3035 = vcmp.eq.s32.totalorder %v3034, 1
      %v3036 = vsel %vm3035, %v3029, %v2778
      %3037 = vst [vmem:[#allocation11] sm:$0xff] %v3036
    $region77: #{tpu_custom_call.1} parent=1 // pred_fallthru
      _
    // Predicated region
    $region78: #{tpu_custom_call.1} parent=1 // pred_check
      _
    $region79: #{tpu_custom_call.1} parent=1 // pred_check_branch
      %3039 = sbr.rel (0) target = $region81
    $region80: #{tpu_custom_call.1} parent=1 // pred_region
      %3041 = vsyncadd [#allocation7], 0
      %s3043 = sshll.u32 [#allocation11], 4
      %s3044 = int_to_ptr.vmem [resolvable:$true] %s3043
      %s3045 = sshll.u32 %s7, 4
      %s3046 = int_to_ptr.hbm [resolvable:$true] %s3045
      %3048 = dma.vmem_to_hbm [thread:$0]  %s3044, 128, %s3046, [#allocation7]
    $region81: #{tpu_custom_call.1} parent=1 // pred_fallthru
      _
    // Predicated region
    $region82: #{tpu_custom_call.1} parent=1 // pred_check
      _
    $region83: #{tpu_custom_call.1} parent=1 // pred_check_branch
      %3050 = sbr.rel (0) target = $region85
    $region84: #{tpu_custom_call.1} parent=1 // pred_region
      %3052 = dma.done [#allocation7], 128
    $region85: #{tpu_custom_call.1} parent=1 // pred_fallthru
      _
    %3053 = vsyncpa [#allocation6], 1
    %3054 = vsyncpa [#allocation9], 1
    %3055 = vsyncpa [#allocation7], 1

</llo_original>
